<compile_context>
chip_gen: v6e
topology: v6e:2x2x1
jax: 0.10.0
libtpu: 0.0.40
codegen_flags: <defaults>
</compile_context>

<pallas_src>
import functools
import math

import jax
import jax.numpy as jnp
from jax.experimental import pallas as pl
from jax.experimental.pallas import tpu as pltpu

HLAYERS = (128, 256, 128)          # NNet hidden layer sizes (nmp_qc default)


# ---------------------------------------------------------------------------
# Per-generation VMEM sizing
# ---------------------------------------------------------------------------
@functools.lru_cache(maxsize=None)
def _vmem_capacity_bytes():
    try:
        cap = getattr(pltpu.get_tpu_info(), "vmem_capacity_bytes", None)
        if cap:
            return int(cap)
    except Exception:
        pass
    return 64 * 1024 * 1024        # conservative default (v7x per-TensorCore)


def _vmem_limit_bytes():
    cap = _vmem_capacity_bytes()
    return max(32 * 1024 * 1024, min(int(cap * 0.75), 100 * 1024 * 1024))


# ---------------------------------------------------------------------------
# Kernel 1: NNet — Linear+ReLU x3, Linear.  Tiled over rows, bf16 MXU GEMMs
# when the weights are stored bf16 (edge network), f32 otherwise (readout).
# ---------------------------------------------------------------------------
def _mlp(x, w1, b1, w2, b2, w3, b3, w4, b4):
    h = jnp.maximum(jnp.dot(x.astype(w1.dtype), w1,
                            preferred_element_type=jnp.float32) + b1, 0.0)
    h = jnp.maximum(jnp.dot(h.astype(w2.dtype), w2,
                            preferred_element_type=jnp.float32) + b2, 0.0)
    h = jnp.maximum(jnp.dot(h.astype(w3.dtype), w3,
                            preferred_element_type=jnp.float32) + b3, 0.0)
    return jnp.dot(h.astype(w4.dtype), w4,
                   preferred_element_type=jnp.float32) + b4


def _nnet_kernel(x_ref, w1, b1, w2, b2, w3, b3, w4, b4, o_ref):
    o_ref[...] = _mlp(x_ref[...], w1[...], b1[...], w2[...], b2[...],
                      w3[...], b3[...], w4[...], b4[...]).astype(o_ref.dtype)


def _scaled_nnet_kernel(x_ref, s_ref, w1, b1, w2, b2, w3, b3, w4, b4, o_ref):
    # adjacency g folded into the edge-network output (kept as a (t,1) block:
    # it must multiply the *output* because NNet(0) != 0, so it cannot be
    # folded into e; the masked 1-lane DMA is negligible next to the 1024-wide
    # bf16 output writeback).
    y = _mlp(x_ref[...], w1[...], b1[...], w2[...], b2[...],
             w3[...], b3[...], w4[...], b4[...])
    o_ref[...] = (s_ref[...] * y).astype(o_ref.dtype)


def nnet_apply(params, x, *, scale=None, out_dtype=jnp.float32, row_tile=None):
    m, n_in = x.shape
    n_out = params[-1][0].shape[1]

    if row_tile is None:
        # 128 MiB parts (v5e/v6e) take bigger row blocks than v7x (64 MiB).
        row_tile = 1024 if _vmem_capacity_bytes() >= 100 * 1024 * 1024 else 512

    if m <= row_tile:
        t = m                                   # single full-row block
        m_pad = m
    else:
        t = row_tile                            # multiple of 16 (bf16-safe)
        m_pad = -(-m // t) * t

    if m_pad != m:
        pad = m_pad - m
        x = jnp.concatenate([x, jnp.zeros((pad, n_in), x.dtype)], axis=0)
        if scale is not None:
            scale = jnp.concatenate(
                [scale, jnp.zeros((pad, 1), scale.dtype)], axis=0)

    rep2 = lambda i: (0, 0)
    flat_params = [p for wb in params for p in wb]      # w1,b1,...,w4,b4
    in_specs = [pl.BlockSpec((t, n_in), lambda i: (i, 0))]
    args = [x]
    kernel = _nnet_kernel
    if scale is not None:
        in_specs.append(pl.BlockSpec((t, 1), lambda i: (i, 0)))
        args.append(scale)
        kernel = _scaled_nnet_kernel
    in_specs += [pl.BlockSpec(p.shape, rep2) for p in flat_params]
    args += flat_params

    out = pl.pallas_call(
        kernel,
        out_shape=jax.ShapeDtypeStruct((m_pad, n_out), out_dtype),
        grid=(m_pad // t,),
        in_specs=in_specs,
        out_specs=pl.BlockSpec((t, n_out), lambda i: (i, 0)),
        compiler_params=pltpu.CompilerParams(
            dimension_semantics=("parallel",),
            vmem_limit_bytes=_vmem_limit_bytes()),
    )(*args)
    return out[:m] if m_pad != m else out


# ---------------------------------------------------------------------------
# Kernel 2a (primary): fused message-passing stack.
# Grid = (batch,), "parallel".  Aw[b] ([N*K, N*O] bf16) is DMA'd to VMEM once
# and stays resident while all n_layers of message (one bf16 MXU matmul over
# the fused (sender, k) axis) + GRU update + mask run inside the kernel.
# ---------------------------------------------------------------------------
def _mp_fused_kernel(aw_ref, h0_ref, mask_ref,
                     w_ih_rz, w_hh_rz, b_rz, w_ih_n, b_in, w_hh_n, b_hn,
                     o_ref, hf_s, mf_s, m2_s, h_s, *, n_layers):
    N, K = h0_ref.shape
    O = m2_s.shape[1]

    h_s[...] = h0_ref[...]
    hf_s[...] = jnp.zeros_like(hf_s)          # rows 1..7 of the matmul LHS
    mask = mask_ref[...]                      # [N, K] (pre-broadcast, lane-dense)

    for _ in range(n_layers):
        # Pack h [N, K] -> row 0 of hf_s [8, N*K] via static ref-slice copies
        # (avoids an in-kernel (N,K)->(1,N*K) reshape across tile boundaries).
        for i in range(N):
            hf_s[0:1, i * K:(i + 1) * K] = h_s[i:i + 1, :]

        # Message for all receivers at once: bf16 MXU matmul over (i, k).
        mf_s[...] = jnp.dot(hf_s[...].astype(jnp.bfloat16), aw_ref[...],
                            preferred_element_type=jnp.float32)   # [8, N*O]

        # Unpack row 0 of mf_s -> m2_s [N, O].
        for j in range(N):
            m2_s[j:j + 1, :] = mf_s[0:1, j * O:(j + 1) * O]

        m = m2_s[...]                          # [N, O]
        h = h_s[...]                           # [N, K]

        # GRU update (PyTorch nn.GRU math, gate order r,z,n) + node mask.
        rz = jax.nn.sigmoid(
            jnp.dot(m, w_ih_rz[...], preferred_element_type=jnp.float32)
            + jnp.dot(h, w_hh_rz[...], preferred_element_type=jnp.float32)
            + b_rz[...])
        r = rz[:, :K]
        z = rz[:, K:]
        n = jnp.tanh(
            jnp.dot(m, w_ih_n[...], preferred_element_type=jnp.float32) + b_in[...]
            + r * (jnp.dot(h, w_hh_n[...], preferred_element_type=jnp.float32)
                   + b_hn[...]))
        h_s[...] = mask * ((1.0 - z) * n + z * h)

    o_ref[...] = h_s[...]


def mp_fused(aw, h0, mask_bc, gru, n_layers):
    B, NK, NO = aw.shape
    _, N, K = h0.shape
    O = NO // N
    gru_args = (gru['w_ih_rz'], gru['w_hh_rz'], gru['b_rz'],
                gru['w_ih_n'], gru['b_in'], gru['w_hh_n'], gru['b_hn'])
    rep2 = lambda b: (0, 0)
    in_specs = [
        pl.BlockSpec((None, NK, NO), lambda b: (b, 0, 0)),   # Aw slab (bf16)
        pl.BlockSpec((None, N, K), lambda b: (b, 0, 0)),     # h0
        pl.BlockSpec((None, N, K), lambda b: (b, 0, 0)),     # node mask (bcast)
    ] + [pl.BlockSpec(p.shape, rep2) for p in gru_args]

    return pl.pallas_call(
        functools.partial(_mp_fused_kernel, n_layers=n_layers),
        out_shape=jax.ShapeDtypeStruct((B, N, K), jnp.float32),
        grid=(B,),
        in_specs=in_specs,
        out_specs=pl.BlockSpec((None, N, K), lambda b: (b, 0, 0)),
        scratch_shapes=[
            pltpu.VMEM((8, NK), jnp.float32),    # flattened-h matmul LHS
            pltpu.VMEM((8, NO), jnp.float32),    # flattened messages
            pltpu.VMEM((N, O), jnp.float32),     # messages [N, O]
            pltpu.VMEM((N, K), jnp.float32),     # hidden state across layers
        ],
        compiler_params=pltpu.CompilerParams(
            dimension_semantics=("parallel",),
            vmem_limit_bytes=_vmem_limit_bytes()),
    )(aw, h0, mask_bc, *gru_args)


# ---------------------------------------------------------------------------
# Kernel 2b (fallback for graphs whose Aw slab does not fit VMEM):
# per-layer sender-tiled MXU reduction; GRU left to XLA (tiny).
# ---------------------------------------------------------------------------
def _message_kernel(aw_ref, hf_ref, o_ref, acc_ref):
    s = pl.program_id(1)

    @pl.when(s == 0)
    def _():
        acc_ref[...] = jnp.zeros_like(acc_ref)

    acc_ref[...] += jnp.dot(hf_ref[...], aw_ref[...],
                            preferred_element_type=jnp.float32)

    @pl.when(s == pl.num_programs(1) - 1)
    def _():
        o_ref[...] = acc_ref[...]


def _pick_sender_tile(N, K, NO, target_bytes=4 << 20):
    step = 128 // math.gcd(K, 128)        # keep the streamed h block 128-lane
    if N % step != 0:
        return N
    target = max(1, target_bytes // max(1, K * NO * 2))
    ti = max(step, (target // step) * step)
    ti = min(ti, N)
    while N % ti != 0:
        ti -= step
    return max(ti, step)


def message_pass(aw, h):
    B, NK, NO = aw.shape
    _, N, K = h.shape
    O = NO // N
    ti = _pick_sender_tile(N, K, NO)
    n_s = N // ti

    hf = h.reshape(B, 1, NK).astype(jnp.bfloat16)
    hf = jnp.concatenate([hf, jnp.zeros((B, 7, NK), jnp.bfloat16)], axis=1)

    out = pl.pallas_call(
        _message_kernel,
        out_shape=jax.ShapeDtypeStruct((B, 8, NO), jnp.float32),
        grid=(B, n_s),
        in_specs=[
            pl.BlockSpec((None, ti * K, NO), lambda b, s: (b, s, 0)),  # Aw tile
            pl.BlockSpec((None, 8, ti * K), lambda b, s: (b, 0, s)),   # h tile
        ],
        out_specs=pl.BlockSpec((None, 8, NO), lambda b, s: (b, 0, 0)),
        scratch_shapes=[pltpu.VMEM((8, NO), jnp.float32)],
        compiler_params=pltpu.CompilerParams(
            dimension_semantics=("parallel", "arbitrary"),
            vmem_limit_bytes=_vmem_limit_bytes()),
    )(aw, hf)
    return out[:, 0, :].reshape(B, N, O)


def _gru_update(m, h, gru):
    K = h.shape[-1]
    rz = jax.nn.sigmoid(m @ gru['w_ih_rz'] + h @ gru['w_hh_rz'] + gru['b_rz'])
    r, z = rz[..., :K], rz[..., K:]
    n = jnp.tanh(m @ gru['w_ih_n'] + gru['b_in']
                 + r * (h @ gru['w_hh_n'] + gru['b_hn']))
    return (1.0 - z) * n + z * h


# ---------------------------------------------------------------------------
# Deterministic parameter init (synthetic, PyTorch-Linear-style uniform)
# ---------------------------------------------------------------------------
def _init_linear(key, n_in, n_out):
    kw, kb = jax.random.split(key)
    bound = 1.0 / (n_in ** 0.5)
    w = jax.random.uniform(kw, (n_in, n_out), jnp.float32, -bound, bound)
    b = jax.random.uniform(kb, (1, n_out), jnp.float32, -bound, bound)
    return w, b


def init_nnet(key, n_in, n_out, hlayers=HLAYERS):
    sizes = [n_in] + list(hlayers) + [n_out]
    keys = jax.random.split(key, len(sizes) - 1)
    return [_init_linear(k, sizes[i], sizes[i + 1]) for i, k in enumerate(keys)]


def init_gru(key, n_in, n_hid):
    k1, k2, k3, k4 = jax.random.split(key, 4)
    bound = 1.0 / (n_hid ** 0.5)
    w_ih = jax.random.uniform(k1, (n_in, 3 * n_hid), jnp.float32, -bound, bound)
    w_hh = jax.random.uniform(k2, (n_hid, 3 * n_hid), jnp.float32, -bound, bound)
    b_ih = jax.random.uniform(k3, (1, 3 * n_hid), jnp.float32, -bound, bound)
    b_hh = jax.random.uniform(k4, (1, 3 * n_hid), jnp.float32, -bound, bound)
    return w_ih, w_hh, b_ih, b_hh


def prepare_mpnn_params(raw):
    K, O = raw['hidden'], raw['message']
    # Edge net: permute the final-layer columns so the per-edge output is laid
    # out (k, o) — contraction dim first, message dim last — matching the
    # [N_i*K, N_j*O] storage used by the MP kernels.  Weights pre-cast to bf16
    # so the edge-net GEMMs run on the bf16 MXU path; biases stay f32.
    edge = list(raw['edge_net'])
    w4, b4 = edge[-1]
    w4 = w4.reshape(w4.shape[0], O, K).transpose(0, 2, 1).reshape(w4.shape[0], K * O)
    b4 = b4.reshape(1, O, K).transpose(0, 2, 1).reshape(1, K * O)
    edge[-1] = (w4, b4)
    edge = [(w.astype(jnp.bfloat16), b.astype(jnp.float32)) for (w, b) in edge]
    # GRU: split weights into a fused r/z block and the n gate (f32).
    w_ih, w_hh, b_ih, b_hh = raw['gru']
    gru = dict(
        w_ih_rz=w_ih[:, :2 * K], w_hh_rz=w_hh[:, :2 * K],
        b_rz=b_ih[:, :2 * K] + b_hh[:, :2 * K],
        w_ih_n=w_ih[:, 2 * K:], b_in=b_ih[:, 2 * K:],
        w_hh_n=w_hh[:, 2 * K:], b_hn=b_hh[:, 2 * K:],
    )
    return dict(edge_net=edge, gru=gru,
                readout_i=raw['readout_i'], readout_j=raw['readout_j'],
                hidden=K, message=O)


def init_mpnn(key, in_n, hidden, message, l_target):
    k1, k2, k3, k4 = jax.random.split(key, 4)
    raw = dict(
        edge_net=init_nnet(k1, in_n[1], hidden * message),   # NNet(e) -> out*in
        gru=init_gru(k2, message, hidden),                   # UpdateFunction 'mpnn'
        readout_i=init_nnet(k3, 2 * hidden, l_target),       # i-net
        readout_j=init_nnet(k4, hidden, l_target),           # j-net
        hidden=hidden,
        message=message,
    )
    return prepare_mpnn_params(raw)


# ---------------------------------------------------------------------------
# Forward (type='Regression')
# ---------------------------------------------------------------------------
def mpnn_forward(params, g, h_in, e, n_layers, force_unfused=False):
    B, N, F = h_in.shape
    K = params['hidden']
    O = params['message']
    E = B * N * N

    # pad node features to hidden_state_size with zeros
    h0 = jnp.concatenate(
        [h_in, jnp.zeros((B, N, K - F), h_in.dtype)], axis=2).astype(jnp.float32)
    # (sum(h_in, 2) > 0) node mask, same as the reference
    mask = (jnp.sum(h_in, axis=2, keepdims=True) > 0).astype(jnp.float32)   # [B,N,1]
    mask_bc = jnp.broadcast_to(mask, (B, N, K))                             # lane-dense

    # Edge network: weight-tied, depends only on e — compute once; g folded in;
    # stored bf16 and laid out lane-dense as [B, N_i*K, N_j*O].
    e_flat = e.reshape(E, e.shape[-1]).astype(jnp.float32)
    g_e = g.reshape(E, 1).astype(jnp.float32)
    aw_flat = nnet_apply(params['edge_net'], e_flat, scale=g_e,
                         out_dtype=jnp.bfloat16)
    aw = (aw_flat.reshape(B, N, N, K, O)          # [b, i, j, k, o]
          .transpose(0, 1, 3, 2, 4)               # [b, i, k, j, o]
          .reshape(B, N * K, N * O))              # row = i*K+k, col = j*O+o

    # Choose fused (Aw resident across all layers) vs. per-layer streamed path
    # based on this generation's VMEM capacity (double-buffered slab + headroom).
    slab = N * K * N * O * 2
    use_fused = (not force_unfused) and \
        (2 * slab + (4 << 20) <= int(_vmem_capacity_bytes() * 0.6))

    if use_fused:
        h_t = mp_fused(aw, h0, mask_bc, params['gru'], n_layers)
    else:
        h_t = h0
        for _ in range(n_layers):
            m = message_pass(aw, h_t)                       # Pallas MXU reduction
            h_t = mask_bc * _gru_update(m, h_t, params['gru'])  # tiny -> XLA

    # Readout: R = sum_v mask_v * sigmoid(i([h0_v, hT_v])) * j(hT_v)
    hcat = jnp.concatenate([h0, h_t], axis=-1).reshape(B * N, 2 * K)
    i_out = nnet_apply(params['readout_i'], hcat)
    j_out = nnet_apply(params['readout_j'], h_t.reshape(B * N, K))
    T = i_out.shape[-1]
    r = jax.nn.sigmoid(i_out) * j_out * mask.reshape(B * N, 1)
    res = jnp.sum(r.reshape(B, N, T), axis=1)
    # type == 'Regression': no LogSoftmax
    return res


# ---------------------------------------------------------------------------
if __name__ == "__main__":
    key = jax.random.PRNGKey(0)
    k1, k2, k3, kp = jax.random.split(key, 4)

    B, N = 2, 16                # batch of graphs, nodes per graph (incl. padding)
    NODE_F, EDGE_F = 4, 4       # in_n = [node_feat, edge_feat]
    HIDDEN, MESSAGE = 32, 32    # hidden_state_size, message_size
    N_LAYERS, TARGET = 2, 4     # n_layer, l_target

    # real nodes per graph, rest are zero-padded nodes
    n_real = jnp.array([12, 9])
    node_mask = (jnp.arange(N)[None, :] < n_real[:, None]).astype(jnp.float32)  # [B,N]

    h_in = jax.random.uniform(k1, (B, N, NODE_F), jnp.float32) * node_mask[:, :, None]
    adj = (jax.random.uniform(k2, (B, N, N)) > 0.5).astype(jnp.float32)
    g = adj * node_mask[:, :, None] * node_mask[:, None, :]                      # [B,N,N]
    e = jax.random.uniform(k3, (B, N, N, EDGE_F), jnp.float32) * g[..., None]    # [B,N,N,EF]

    params = init_mpnn(kp, [NODE_F, EDGE_F], HIDDEN, MESSAGE, TARGET)

    # Primary (fused, Aw-resident) path.
    res = jax.block_until_ready(mpnn_forward(params, g, h_in, e, N_LAYERS))
    assert res.shape == (B, TARGET)
    assert bool(jnp.all(jnp.isfinite(res)))

    # Cross-check the large-graph (sender-tiled, per-layer) path.
    res_unfused = jax.block_until_ready(
        mpnn_forward(params, g, h_in, e, N_LAYERS, force_unfused=True))
    assert bool(jnp.all(jnp.isfinite(res_unfused)))
    assert bool(jnp.allclose(res, res_unfused, rtol=5e-2, atol=5e-2))

    print("KERNEL_OK")
</pallas_src>

<mosaic_0001>
module attributes {stable_mosaic.version = 11 : i64} {
  func.func @_scaled_nnet_kernel(%arg0: i32, %arg1: memref<512x4xf32, #tpu.memory_space<vmem>>, %arg2: memref<512x1xf32, #tpu.memory_space<vmem>>, %arg3: memref<4x128xbf16, #tpu.memory_space<vmem>>, %arg4: memref<1x128xf32, #tpu.memory_space<vmem>>, %arg5: memref<128x256xbf16, #tpu.memory_space<vmem>>, %arg6: memref<1x256xf32, #tpu.memory_space<vmem>>, %arg7: memref<256x128xbf16, #tpu.memory_space<vmem>>, %arg8: memref<1x128xf32, #tpu.memory_space<vmem>>, %arg9: memref<128x1024xbf16, #tpu.memory_space<vmem>>, %arg10: memref<1x1024xf32, #tpu.memory_space<vmem>>, %arg11: memref<512x1024xbf16, #tpu.memory_space<vmem>>) attributes {dimension_semantics = [#tpu.dimension_semantics<parallel>], iteration_bounds = array<i64: 1>, scalar_prefetch = 0 : i64, scratch_operands = 0 : i64, tpu.core_type = #tpu.core_type<tc>, window_params = [{transform_indices = @transform_0, window_bounds = array<i64: 512, 4>}, {transform_indices = @transform_1, window_bounds = array<i64: 512, 1>}, {pipeline_mode = #tpu.pipeline_mode<synchronous>, transform_indices = @transform_2, window_bounds = array<i64: 4, 128>}, {pipeline_mode = #tpu.pipeline_mode<synchronous>, transform_indices = @transform_3, window_bounds = array<i64: 1, 128>}, {pipeline_mode = #tpu.pipeline_mode<synchronous>, transform_indices = @transform_4, window_bounds = array<i64: 128, 256>}, {pipeline_mode = #tpu.pipeline_mode<synchronous>, transform_indices = @transform_5, window_bounds = array<i64: 1, 256>}, {pipeline_mode = #tpu.pipeline_mode<synchronous>, transform_indices = @transform_6, window_bounds = array<i64: 256, 128>}, {pipeline_mode = #tpu.pipeline_mode<synchronous>, transform_indices = @transform_7, window_bounds = array<i64: 1, 128>}, {pipeline_mode = #tpu.pipeline_mode<synchronous>, transform_indices = @transform_8, window_bounds = array<i64: 128, 1024>}, {pipeline_mode = #tpu.pipeline_mode<synchronous>, transform_indices = @transform_9, window_bounds = array<i64: 1, 1024>}, {transform_indices = @transform_10, window_bounds = array<i64: 512, 1024>}]} {
    %c0 = arith.constant 0 : index
    %c0_0 = arith.constant 0 : index
    %0 = vector.load %arg1[%c0, %c0_0] : memref<512x4xf32, #tpu.memory_space<vmem>>, vector<512x4xf32>
    %c0_1 = arith.constant 0 : index
    %c0_2 = arith.constant 0 : index
    %1 = vector.load %arg3[%c0_1, %c0_2] : memref<4x128xbf16, #tpu.memory_space<vmem>>, vector<4x128xbf16>
    %c0_3 = arith.constant 0 : index
    %c0_4 = arith.constant 0 : index
    %2 = vector.load %arg4[%c0_3, %c0_4] : memref<1x128xf32, #tpu.memory_space<vmem>>, vector<1x128xf32>
    %c0_5 = arith.constant 0 : index
    %c0_6 = arith.constant 0 : index
    %3 = vector.load %arg5[%c0_5, %c0_6] : memref<128x256xbf16, #tpu.memory_space<vmem>>, vector<128x256xbf16>
    %c0_7 = arith.constant 0 : index
    %c0_8 = arith.constant 0 : index
    %4 = vector.load %arg6[%c0_7, %c0_8] : memref<1x256xf32, #tpu.memory_space<vmem>>, vector<1x256xf32>
    %c0_9 = arith.constant 0 : index
    %c0_10 = arith.constant 0 : index
    %5 = vector.load %arg7[%c0_9, %c0_10] : memref<256x128xbf16, #tpu.memory_space<vmem>>, vector<256x128xbf16>
    %c0_11 = arith.constant 0 : index
    %c0_12 = arith.constant 0 : index
    %6 = vector.load %arg8[%c0_11, %c0_12] : memref<1x128xf32, #tpu.memory_space<vmem>>, vector<1x128xf32>
    %c0_13 = arith.constant 0 : index
    %c0_14 = arith.constant 0 : index
    %7 = vector.load %arg9[%c0_13, %c0_14] : memref<128x1024xbf16, #tpu.memory_space<vmem>>, vector<128x1024xbf16>
    %c0_15 = arith.constant 0 : index
    %c0_16 = arith.constant 0 : index
    %8 = vector.load %arg10[%c0_15, %c0_16] : memref<1x1024xf32, #tpu.memory_space<vmem>>, vector<1x1024xf32>
    %9 = arith.truncf %0 : vector<512x4xf32> to vector<512x4xbf16>
    %cst = arith.constant dense<0.000000e+00> : vector<512x128xf32>
    %10 = tpu.matmul %9, %1, %cst {dimension_numbers = #tpu.dot_dimension_numbers<[1], [0], [0], [1], [0, 0, 1, 1], [], []>} : vector<512x4xbf16>, vector<4x128xbf16>, vector<512x128xf32> -> vector<512x128xf32>
    %11 = vector.broadcast %2 : vector<1x128xf32> to vector<512x128xf32>
    %12 = arith.addf %10, %11 : vector<512x128xf32>
    %cst_17 = arith.constant 0.000000e+00 : f32
    %13 = vector.broadcast %cst_17 : f32 to vector<512x128xf32>
    %14 = arith.maximumf %12, %13 : vector<512x128xf32>
    %15 = arith.truncf %14 : vector<512x128xf32> to vector<512x128xbf16>
    %cst_18 = arith.constant dense<0.000000e+00> : vector<512x256xf32>
    %16 = tpu.matmul %15, %3, %cst_18 {dimension_numbers = #tpu.dot_dimension_numbers<[1], [0], [0], [1], [0, 0, 1, 1], [], []>} : vector<512x128xbf16>, vector<128x256xbf16>, vector<512x256xf32> -> vector<512x256xf32>
    %17 = vector.broadcast %4 : vector<1x256xf32> to vector<512x256xf32>
    %18 = arith.addf %16, %17 : vector<512x256xf32>
    %cst_19 = arith.constant 0.000000e+00 : f32
    %19 = vector.broadcast %cst_19 : f32 to vector<512x256xf32>
    %20 = arith.maximumf %18, %19 : vector<512x256xf32>
    %21 = arith.truncf %20 : vector<512x256xf32> to vector<512x256xbf16>
    %cst_20 = arith.constant dense<0.000000e+00> : vector<512x128xf32>
    %22 = tpu.matmul %21, %5, %cst_20 {dimension_numbers = #tpu.dot_dimension_numbers<[1], [0], [0], [1], [0, 0, 1, 1], [], []>} : vector<512x256xbf16>, vector<256x128xbf16>, vector<512x128xf32> -> vector<512x128xf32>
    %23 = vector.broadcast %6 : vector<1x128xf32> to vector<512x128xf32>
    %24 = arith.addf %22, %23 : vector<512x128xf32>
    %cst_21 = arith.constant 0.000000e+00 : f32
    %25 = vector.broadcast %cst_21 : f32 to vector<512x128xf32>
    %26 = arith.maximumf %24, %25 : vector<512x128xf32>
    %27 = arith.truncf %26 : vector<512x128xf32> to vector<512x128xbf16>
    %cst_22 = arith.constant dense<0.000000e+00> : vector<512x1024xf32>
    %28 = tpu.matmul %27, %7, %cst_22 {dimension_numbers = #tpu.dot_dimension_numbers<[1], [0], [0], [1], [0, 0, 1, 1], [], []>} : vector<512x128xbf16>, vector<128x1024xbf16>, vector<512x1024xf32> -> vector<512x1024xf32>
    %29 = vector.broadcast %8 : vector<1x1024xf32> to vector<512x1024xf32>
    %30 = arith.addf %28, %29 : vector<512x1024xf32>
    %c0_23 = arith.constant 0 : index
    %c0_24 = arith.constant 0 : index
    %31 = vector.load %arg2[%c0_23, %c0_24] : memref<512x1xf32, #tpu.memory_space<vmem>>, vector<512x1xf32>
    %32 = vector.broadcast %31 : vector<512x1xf32> to vector<512x1024xf32>
    %33 = arith.mulf %32, %30 : vector<512x1024xf32>
    %34 = arith.truncf %33 : vector<512x1024xf32> to vector<512x1024xbf16>
    %c0_25 = arith.constant 0 : index
    %c0_26 = arith.constant 0 : index
    %35 = vector.load %arg11[%c0_25, %c0_26] : memref<512x1024xbf16, #tpu.memory_space<vmem>>, vector<512x1024xbf16>
    tpu.vector_store %arg11[%c0_25, %c0_26], %34 {strides = array<i32>} : memref<512x1024xbf16, #tpu.memory_space<vmem>>, vector<512x1024xbf16>,
    return
  }
  func.func @transform_0(%arg0: i32) -> (i32, i32) {
    %c0_i32 = arith.constant 0 : i32
    %c0_i32_0 = arith.constant 0 : i32
    return %arg0, %c0_i32 : i32, i32
  }
  func.func @transform_1(%arg0: i32) -> (i32, i32) {
    %c0_i32 = arith.constant 0 : i32
    %c0_i32_0 = arith.constant 0 : i32
    return %arg0, %c0_i32 : i32, i32
  }
  func.func @transform_2(%arg0: i32) -> (i32, i32) {
    %c0_i32 = arith.constant 0 : i32
    %c0_i32_0 = arith.constant 0 : i32
    %c0_i32_1 = arith.constant 0 : i32
    return %c0_i32, %c0_i32_0 : i32, i32
  }
  func.func @transform_3(%arg0: i32) -> (i32, i32) {
    %c0_i32 = arith.constant 0 : i32
    %c0_i32_0 = arith.constant 0 : i32
    %c0_i32_1 = arith.constant 0 : i32
    return %c0_i32, %c0_i32_0 : i32, i32
  }
  func.func @transform_4(%arg0: i32) -> (i32, i32) {
    %c0_i32 = arith.constant 0 : i32
    %c0_i32_0 = arith.constant 0 : i32
    %c0_i32_1 = arith.constant 0 : i32
    return %c0_i32, %c0_i32_0 : i32, i32
  }
  func.func @transform_5(%arg0: i32) -> (i32, i32) {
    %c0_i32 = arith.constant 0 : i32
    %c0_i32_0 = arith.constant 0 : i32
    %c0_i32_1 = arith.constant 0 : i32
    return %c0_i32, %c0_i32_0 : i32, i32
  }
  func.func @transform_6(%arg0: i32) -> (i32, i32) {
    %c0_i32 = arith.constant 0 : i32
    %c0_i32_0 = arith.constant 0 : i32
    %c0_i32_1 = arith.constant 0 : i32
    return %c0_i32, %c0_i32_0 : i32, i32
  }
  func.func @transform_7(%arg0: i32) -> (i32, i32) {
    %c0_i32 = arith.constant 0 : i32
    %c0_i32_0 = arith.constant 0 : i32
    %c0_i32_1 = arith.constant 0 : i32
    return %c0_i32, %c0_i32_0 : i32, i32
  }
  func.func @transform_8(%arg0: i32) -> (i32, i32) {
    %c0_i32 = arith.constant 0 : i32
    %c0_i32_0 = arith.constant 0 : i32
    %c0_i32_1 = arith.constant 0 : i32
    return %c0_i32, %c0_i32_0 : i32, i32
  }
  func.func @transform_9(%arg0: i32) -> (i32, i32) {
    %c0_i32 = arith.constant 0 : i32
    %c0_i32_0 = arith.constant 0 : i32
    %c0_i32_1 = arith.constant 0 : i32
    return %c0_i32, %c0_i32_0 : i32, i32
  }
  func.func @transform_10(%arg0: i32) -> (i32, i32) {
    %c0_i32 = arith.constant 0 : i32
    %c0_i32_0 = arith.constant 0 : i32
    return %arg0, %c0_i32 : i32, i32
  }
}

</mosaic_0001>

<llo_original>
// kernel: tpu_custom_call.1
$region0: #{tpu_custom_call.1}
  #allocation0 [shape = 'u32[]', space=smem, size = 0x4, offset = 0x4, fixed_abs, tag = 'smem constant byte address 0x4 - core index']
  #allocation1 [shape = 'u32[144,128]{1,0:T(1,128)}', space=vmem, size = 0x12000, scoped, tag = 'internal scratch']
  %s0 = inlined_call_operand.vmem [shape: f32[512,4], index: 0, kind: input, shape index: {}]
  %s1 = inlined_call_operand.vmem [shape: f32[512,1], index: 1, kind: input, shape index: {}]
  %s2 = inlined_call_operand.vmem [shape: bf16[4,128], index: 2, kind: input, shape index: {}]
  %s3 = inlined_call_operand.vmem [shape: f32[1,128], index: 3, kind: input, shape index: {}]
  %s4 = inlined_call_operand.vmem [shape: bf16[128,256], index: 4, kind: input, shape index: {}]
  %s5 = inlined_call_operand.vmem [shape: f32[1,256], index: 5, kind: input, shape index: {}]
  %s6 = inlined_call_operand.vmem [shape: bf16[256,128], index: 6, kind: input, shape index: {}]
  %s7 = inlined_call_operand.vmem [shape: f32[1,128], index: 7, kind: input, shape index: {}]
  %s8 = inlined_call_operand.vmem [shape: bf16[128,1024], index: 8, kind: input, shape index: {}]
  %s9 = inlined_call_operand.vmem [shape: f32[1,1024], index: 9, kind: input, shape index: {}]
  %s10 = inlined_call_operand.hbm [shape: bf16[512,1024], index: 10, kind: output, shape index: {}]
  %s11 = sld [smem:[#allocation0]]
  $region50: #{tpu_custom_call.1} parent=0
    _
  %s13 = ssub.s32 1, %s11
  %s14 = scalar_select 0, %s13, %s11
  $region1: #{tpu_custom_call.1} parent=0
    #allocation2 [shape = 'u8[1048576]{0}', space=vmem, size = 0x100000, scoped, tag = 'output window, operand 0, single buffered']
    #allocation3 [shape = 's32[1]{0}', space=sflag, size = 0x4, scoped, tag = 'scoped memory for tpu_custom_call.1']
    %15 = vsyncpa [#allocation3], 0
    // Predicated region
    $region2: #{tpu_custom_call.1} parent=1 // pred_check
      _
    $region3: #{tpu_custom_call.1} parent=1 // pred_check_branch
      %17 = sbr.rel (0) target = $region5
    $region4: #{tpu_custom_call.1} parent=1 // pred_region
      _
    $region5: #{tpu_custom_call.1} parent=1 // pred_fallthru
      _
    // Predicated region
    $region6: #{tpu_custom_call.1} parent=1 // pred_check
      _
    $region7: #{tpu_custom_call.1} parent=1 // pred_check_branch
      %19 = sbr.rel (0) target = $region9
    $region8: #{tpu_custom_call.1} parent=1 // pred_region
      _
    $region9: #{tpu_custom_call.1} parent=1 // pred_fallthru
      _
    // Predicated region
    $region10: #{tpu_custom_call.1} parent=1 // pred_check
      _
    $region11: #{tpu_custom_call.1} parent=1 // pred_check_branch
      %21 = sbr.rel (0) target = $region13
    $region12: #{tpu_custom_call.1} parent=1 // pred_region
      _
    $region13: #{tpu_custom_call.1} parent=1 // pred_fallthru
      _
    // Predicated region
    $region14: #{tpu_custom_call.1} parent=1 // pred_check
      _
    $region15: #{tpu_custom_call.1} parent=1 // pred_check_branch
      %23 = sbr.rel (0) target = $region17
    $region16: #{tpu_custom_call.1} parent=1 // pred_region
      _
    $region17: #{tpu_custom_call.1} parent=1 // pred_fallthru
      _
    // Predicated region
    $region18: #{tpu_custom_call.1} parent=1 // pred_check
      _
    $region19: #{tpu_custom_call.1} parent=1 // pred_check_branch
      %25 = sbr.rel (0) target = $region21
    $region20: #{tpu_custom_call.1} parent=1 // pred_region
      _
    $region21: #{tpu_custom_call.1} parent=1 // pred_fallthru
      _
    // Predicated region
    $region22: #{tpu_custom_call.1} parent=1 // pred_check
      _
    $region23: #{tpu_custom_call.1} parent=1 // pred_check_branch
      %27 = sbr.rel (0) target = $region25
    $region24: #{tpu_custom_call.1} parent=1 // pred_region
      _
    $region25: #{tpu_custom_call.1} parent=1 // pred_fallthru
      _
    // Predicated region
    $region26: #{tpu_custom_call.1} parent=1 // pred_check
      _
    $region27: #{tpu_custom_call.1} parent=1 // pred_check_branch
      %29 = sbr.rel (0) target = $region29
    $region28: #{tpu_custom_call.1} parent=1 // pred_region
      _
    $region29: #{tpu_custom_call.1} parent=1 // pred_fallthru
      _
    // Predicated region
    $region30: #{tpu_custom_call.1} parent=1 // pred_check
      _
    $region31: #{tpu_custom_call.1} parent=1 // pred_check_branch
      %31 = sbr.rel (0) target = $region33
    $region32: #{tpu_custom_call.1} parent=1 // pred_region
      _
    $region33: #{tpu_custom_call.1} parent=1 // pred_fallthru
      _
    // Predicated region
    $region34: #{tpu_custom_call.1} parent=1 // pred_check
      _
    $region35: #{tpu_custom_call.1} parent=1 // pred_check_branch
      %33 = sbr.rel (0) target = $region37
    $region36: #{tpu_custom_call.1} parent=1 // pred_region
      _
    $region37: #{tpu_custom_call.1} parent=1 // pred_fallthru
      _
    // Predicated region
    $region38: #{tpu_custom_call.1} parent=1 // pred_check
      _
    $region39: #{tpu_custom_call.1} parent=1 // pred_check_branch
      %35 = sbr.rel (0) target = $region41
    $region40: #{tpu_custom_call.1} parent=1 // pred_region
      _
    $region41: #{tpu_custom_call.1} parent=1 // pred_fallthru
      _
    %v37 = vld [vmem:[%s0] sm:$0xff]
    %v38 = vld [vmem:[%s0 + $0x8] sm:$0xff]
    %v39 = vld [vmem:[%s0 + $0x10] sm:$0xff]
    %v40 = vld [vmem:[%s0 + $0x18] sm:$0xff]
    %v41 = vld [vmem:[%s0 + $0x20] sm:$0xff]
    %v42 = vld [vmem:[%s0 + $0x28] sm:$0xff]
    %v43 = vld [vmem:[%s0 + $0x30] sm:$0xff]
    %v44 = vld [vmem:[%s0 + $0x38] sm:$0xff]
    %v45 = vld [vmem:[%s0 + $0x40] sm:$0xff]
    %v46 = vld [vmem:[%s0 + $0x48] sm:$0xff]
    %v47 = vld [vmem:[%s0 + $0x50] sm:$0xff]
    %v48 = vld [vmem:[%s0 + $0x58] sm:$0xff]
    %v49 = vld [vmem:[%s0 + $0x60] sm:$0xff]
    %v50 = vld [vmem:[%s0 + $0x68] sm:$0xff]
    %v51 = vld [vmem:[%s0 + $0x70] sm:$0xff]
    %v52 = vld [vmem:[%s0 + $0x78] sm:$0xff]
    %v53 = vld [vmem:[%s0 + $0x80] sm:$0xff]
    %v54 = vld [vmem:[%s0 + $0x88] sm:$0xff]
    %v55 = vld [vmem:[%s0 + $0x90] sm:$0xff]
    %v56 = vld [vmem:[%s0 + $0x98] sm:$0xff]
    %v57 = vld [vmem:[%s0 + $0xa0] sm:$0xff]
    %v58 = vld [vmem:[%s0 + $0xa8] sm:$0xff]
    %v59 = vld [vmem:[%s0 + $0xb0] sm:$0xff]
    %v60 = vld [vmem:[%s0 + $0xb8] sm:$0xff]
    %v61 = vld [vmem:[%s0 + $0xc0] sm:$0xff]
    %v62 = vld [vmem:[%s0 + $0xc8] sm:$0xff]
    %v63 = vld [vmem:[%s0 + $0xd0] sm:$0xff]
    %v64 = vld [vmem:[%s0 + $0xd8] sm:$0xff]
    %v65 = vld [vmem:[%s0 + $0xe0] sm:$0xff]
    %v66 = vld [vmem:[%s0 + $0xe8] sm:$0xff]
    %v67 = vld [vmem:[%s0 + $0xf0] sm:$0xff]
    %v68 = vld [vmem:[%s0 + $0xf8] sm:$0xff]
    %v69 = vld [vmem:[%s0 + $0x100] sm:$0xff]
    %v70 = vld [vmem:[%s0 + $0x108] sm:$0xff]
    %v71 = vld [vmem:[%s0 + $0x110] sm:$0xff]
    %v72 = vld [vmem:[%s0 + $0x118] sm:$0xff]
    %v73 = vld [vmem:[%s0 + $0x120] sm:$0xff]
    %v74 = vld [vmem:[%s0 + $0x128] sm:$0xff]
    %v75 = vld [vmem:[%s0 + $0x130] sm:$0xff]
    %v76 = vld [vmem:[%s0 + $0x138] sm:$0xff]
    %v77 = vld [vmem:[%s0 + $0x140] sm:$0xff]
    %v78 = vld [vmem:[%s0 + $0x148] sm:$0xff]
    %v79 = vld [vmem:[%s0 + $0x150] sm:$0xff]
    %v80 = vld [vmem:[%s0 + $0x158] sm:$0xff]
    %v81 = vld [vmem:[%s0 + $0x160] sm:$0xff]
    %v82 = vld [vmem:[%s0 + $0x168] sm:$0xff]
    %v83 = vld [vmem:[%s0 + $0x170] sm:$0xff]
    %v84 = vld [vmem:[%s0 + $0x178] sm:$0xff]
    %v85 = vld [vmem:[%s0 + $0x180] sm:$0xff]
    %v86 = vld [vmem:[%s0 + $0x188] sm:$0xff]
    %v87 = vld [vmem:[%s0 + $0x190] sm:$0xff]
    %v88 = vld [vmem:[%s0 + $0x198] sm:$0xff]
    %v89 = vld [vmem:[%s0 + $0x1a0] sm:$0xff]
    %v90 = vld [vmem:[%s0 + $0x1a8] sm:$0xff]
    %v91 = vld [vmem:[%s0 + $0x1b0] sm:$0xff]
    %v92 = vld [vmem:[%s0 + $0x1b8] sm:$0xff]
    %v93 = vld [vmem:[%s0 + $0x1c0] sm:$0xff]
    %v94 = vld [vmem:[%s0 + $0x1c8] sm:$0xff]
    %v95 = vld [vmem:[%s0 + $0x1d0] sm:$0xff]
    %v96 = vld [vmem:[%s0 + $0x1d8] sm:$0xff]
    %v97 = vld [vmem:[%s0 + $0x1e0] sm:$0xff]
    %v98 = vld [vmem:[%s0 + $0x1e8] sm:$0xff]
    %v99 = vld [vmem:[%s0 + $0x1f0] sm:$0xff]
    %v100 = vld [vmem:[%s0 + $0x1f8] sm:$0xff]
    %v101 = vld [vmem:[%s2] sm:$0x3]
    %v102 = vld [vmem:[%s3] sm:$0x1]
    %v103 = vld [vmem:[%s4] sm:$0xff]
    %v104 = vld [vmem:[%s4 + $0x8] sm:$0xff]
    %v105 = vld [vmem:[%s4 + $0x10] sm:$0xff]
    %v106 = vld [vmem:[%s4 + $0x18] sm:$0xff]
    %v107 = vld [vmem:[%s4 + $0x20] sm:$0xff]
    %v108 = vld [vmem:[%s4 + $0x28] sm:$0xff]
    %v109 = vld [vmem:[%s4 + $0x30] sm:$0xff]
    %v110 = vld [vmem:[%s4 + $0x38] sm:$0xff]
    %v111 = vld [vmem:[%s4 + $0x40] sm:$0xff]
    %v112 = vld [vmem:[%s4 + $0x48] sm:$0xff]
    %v113 = vld [vmem:[%s4 + $0x50] sm:$0xff]
    %v114 = vld [vmem:[%s4 + $0x58] sm:$0xff]
    %v115 = vld [vmem:[%s4 + $0x60] sm:$0xff]
    %v116 = vld [vmem:[%s4 + $0x68] sm:$0xff]
    %v117 = vld [vmem:[%s4 + $0x70] sm:$0xff]
    %v118 = vld [vmem:[%s4 + $0x78] sm:$0xff]
    %v119 = vld [vmem:[%s5] sm:$0x3]
    %v120 = vld [vmem:[%s6] sm:$0xf]
    %v121 = vld [vmem:[%s6 + $0x4] sm:$0xf]
    %v122 = vld [vmem:[%s6 + $0x8] sm:$0xf]
    %v123 = vld [vmem:[%s6 + $0xc] sm:$0xf]
    %v124 = vld [vmem:[%s6 + $0x10] sm:$0xf]
    %v125 = vld [vmem:[%s6 + $0x14] sm:$0xf]
    %v126 = vld [vmem:[%s6 + $0x18] sm:$0xf]
    %v127 = vld [vmem:[%s6 + $0x1c] sm:$0xf]
    %v128 = vld [vmem:[%s6 + $0x20] sm:$0xf]
    %v129 = vld [vmem:[%s6 + $0x24] sm:$0xf]
    %v130 = vld [vmem:[%s6 + $0x28] sm:$0xf]
    %v131 = vld [vmem:[%s6 + $0x2c] sm:$0xf]
    %v132 = vld [vmem:[%s6 + $0x30] sm:$0xf]
    %v133 = vld [vmem:[%s6 + $0x34] sm:$0xf]
    %v134 = vld [vmem:[%s6 + $0x38] sm:$0xf]
    %v135 = vld [vmem:[%s6 + $0x3c] sm:$0xf]
    %v136 = vld [vmem:[%s6 + $0x40] sm:$0xf]
    %v137 = vld [vmem:[%s6 + $0x44] sm:$0xf]
    %v138 = vld [vmem:[%s6 + $0x48] sm:$0xf]
    %v139 = vld [vmem:[%s6 + $0x4c] sm:$0xf]
    %v140 = vld [vmem:[%s6 + $0x50] sm:$0xf]
    %v141 = vld [vmem:[%s6 + $0x54] sm:$0xf]
    %v142 = vld [vmem:[%s6 + $0x58] sm:$0xf]
    %v143 = vld [vmem:[%s6 + $0x5c] sm:$0xf]
    %v144 = vld [vmem:[%s6 + $0x60] sm:$0xf]
    %v145 = vld [vmem:[%s6 + $0x64] sm:$0xf]
    %v146 = vld [vmem:[%s6 + $0x68] sm:$0xf]
    %v147 = vld [vmem:[%s6 + $0x6c] sm:$0xf]
    %v148 = vld [vmem:[%s6 + $0x70] sm:$0xf]
    %v149 = vld [vmem:[%s6 + $0x74] sm:$0xf]
    %v150 = vld [vmem:[%s6 + $0x78] sm:$0xf]
    %v151 = vld [vmem:[%s6 + $0x7c] sm:$0xf]
    %v152 = vld [vmem:[%s7] sm:$0x1]
    %v153 = vld [vmem:[%s8] sm:$0xff]
    %v154 = vld [vmem:[%s8 + $0x8] sm:$0xff]
    %v155 = vld [vmem:[%s8 + $0x10] sm:$0xff]
    %v156 = vld [vmem:[%s8 + $0x18] sm:$0xff]
    %v157 = vld [vmem:[%s8 + $0x20] sm:$0xff]
    %v158 = vld [vmem:[%s8 + $0x28] sm:$0xff]
    %v159 = vld [vmem:[%s8 + $0x30] sm:$0xff]
    %v160 = vld [vmem:[%s8 + $0x38] sm:$0xff]
    %v161 = vld [vmem:[%s8 + $0x40] sm:$0xff]
    %v162 = vld [vmem:[%s8 + $0x48] sm:$0xff]
    %v163 = vld [vmem:[%s8 + $0x50] sm:$0xff]
    %v164 = vld [vmem:[%s8 + $0x58] sm:$0xff]
    %v165 = vld [vmem:[%s8 + $0x60] sm:$0xff]
    %v166 = vld [vmem:[%s8 + $0x68] sm:$0xff]
    %v167 = vld [vmem:[%s8 + $0x70] sm:$0xff]
    %v168 = vld [vmem:[%s8 + $0x78] sm:$0xff]
    %v169 = vld [vmem:[%s8 + $0x80] sm:$0xff]
    %v170 = vld [vmem:[%s8 + $0x88] sm:$0xff]
    %v171 = vld [vmem:[%s8 + $0x90] sm:$0xff]
    %v172 = vld [vmem:[%s8 + $0x98] sm:$0xff]
    %v173 = vld [vmem:[%s8 + $0xa0] sm:$0xff]
    %v174 = vld [vmem:[%s8 + $0xa8] sm:$0xff]
    %v175 = vld [vmem:[%s8 + $0xb0] sm:$0xff]
    %v176 = vld [vmem:[%s8 + $0xb8] sm:$0xff]
    %v177 = vld [vmem:[%s8 + $0xc0] sm:$0xff]
    %v178 = vld [vmem:[%s8 + $0xc8] sm:$0xff]
    %v179 = vld [vmem:[%s8 + $0xd0] sm:$0xff]
    %v180 = vld [vmem:[%s8 + $0xd8] sm:$0xff]
    %v181 = vld [vmem:[%s8 + $0xe0] sm:$0xff]
    %v182 = vld [vmem:[%s8 + $0xe8] sm:$0xff]
    %v183 = vld [vmem:[%s8 + $0xf0] sm:$0xff]
    %v184 = vld [vmem:[%s8 + $0xf8] sm:$0xff]
    %v185 = vld [vmem:[%s8 + $0x100] sm:$0xff]
    %v186 = vld [vmem:[%s8 + $0x108] sm:$0xff]
    %v187 = vld [vmem:[%s8 + $0x110] sm:$0xff]
    %v188 = vld [vmem:[%s8 + $0x118] sm:$0xff]
    %v189 = vld [vmem:[%s8 + $0x120] sm:$0xff]
    %v190 = vld [vmem:[%s8 + $0x128] sm:$0xff]
    %v191 = vld [vmem:[%s8 + $0x130] sm:$0xff]
    %v192 = vld [vmem:[%s8 + $0x138] sm:$0xff]
    %v193 = vld [vmem:[%s8 + $0x140] sm:$0xff]
    %v194 = vld [vmem:[%s8 + $0x148] sm:$0xff]
    %v195 = vld [vmem:[%s8 + $0x150] sm:$0xff]
    %v196 = vld [vmem:[%s8 + $0x158] sm:$0xff]
    %v197 = vld [vmem:[%s8 + $0x160] sm:$0xff]
    %v198 = vld [vmem:[%s8 + $0x168] sm:$0xff]
    %v199 = vld [vmem:[%s8 + $0x170] sm:$0xff]
    %v200 = vld [vmem:[%s8 + $0x178] sm:$0xff]
    %v201 = vld [vmem:[%s8 + $0x180] sm:$0xff]
    %v202 = vld [vmem:[%s8 + $0x188] sm:$0xff]
    %v203 = vld [vmem:[%s8 + $0x190] sm:$0xff]
    %v204 = vld [vmem:[%s8 + $0x198] sm:$0xff]
    %v205 = vld [vmem:[%s8 + $0x1a0] sm:$0xff]
    %v206 = vld [vmem:[%s8 + $0x1a8] sm:$0xff]
    %v207 = vld [vmem:[%s8 + $0x1b0] sm:$0xff]
    %v208 = vld [vmem:[%s8 + $0x1b8] sm:$0xff]
    %v209 = vld [vmem:[%s8 + $0x1c0] sm:$0xff]
    %v210 = vld [vmem:[%s8 + $0x1c8] sm:$0xff]
    %v211 = vld [vmem:[%s8 + $0x1d0] sm:$0xff]
    %v212 = vld [vmem:[%s8 + $0x1d8] sm:$0xff]
    %v213 = vld [vmem:[%s8 + $0x1e0] sm:$0xff]
    %v214 = vld [vmem:[%s8 + $0x1e8] sm:$0xff]
    %v215 = vld [vmem:[%s8 + $0x1f0] sm:$0xff]
    %v216 = vld [vmem:[%s8 + $0x1f8] sm:$0xff]
    %v217 = vld [vmem:[%s9] sm:$0xff]
    %v218 = vpack.c.bf16 %v38, %v37
    %v219 = vpack.c.bf16 %v40, %v39
    %v220 = vpack.c.bf16 %v42, %v41
    %v221 = vpack.c.bf16 %v44, %v43
    %v222 = vpack.c.bf16 %v46, %v45
    %v223 = vpack.c.bf16 %v48, %v47
    %v224 = vpack.c.bf16 %v50, %v49
    %v225 = vpack.c.bf16 %v52, %v51
    %v226 = vpack.c.bf16 %v54, %v53
    %v227 = vpack.c.bf16 %v56, %v55
    %v228 = vpack.c.bf16 %v58, %v57
    %v229 = vpack.c.bf16 %v60, %v59
    %v230 = vpack.c.bf16 %v62, %v61
    %v231 = vpack.c.bf16 %v64, %v63
    %v232 = vpack.c.bf16 %v66, %v65
    %v233 = vpack.c.bf16 %v68, %v67
    %v234 = vpack.c.bf16 %v70, %v69
    %v235 = vpack.c.bf16 %v72, %v71
    %v236 = vpack.c.bf16 %v74, %v73
    %v237 = vpack.c.bf16 %v76, %v75
    %v238 = vpack.c.bf16 %v78, %v77
    %v239 = vpack.c.bf16 %v80, %v79
    %v240 = vpack.c.bf16 %v82, %v81
    %v241 = vpack.c.bf16 %v84, %v83
    %v242 = vpack.c.bf16 %v86, %v85
    %v243 = vpack.c.bf16 %v88, %v87
    %v244 = vpack.c.bf16 %v90, %v89
    %v245 = vpack.c.bf16 %v92, %v91
    %v246 = vpack.c.bf16 %v94, %v93
    %v247 = vpack.c.bf16 %v96, %v95
    %v248 = vpack.c.bf16 %v98, %v97
    %v249 = vpack.c.bf16 %v100, %v99
    %v251 = vlaneseq
    %v252 = vshrl.u32 %v251, 7
    %v253 = vsub.s32 0, %v252
    %v254 = vrot.slane %v102, %v253
    %vm256 = vcmask 31744
    %v258 = vsel %vm256, %v218, 0
    %v261 = vsel %vm256, %v219, 0
    %v264 = vsel %vm256, %v220, 0
    %v267 = vsel %vm256, %v221, 0
    %v270 = vsel %vm256, %v222, 0
    %v273 = vsel %vm256, %v223, 0
    %v276 = vsel %vm256, %v224, 0
    %v279 = vsel %vm256, %v225, 0
    %v282 = vsel %vm256, %v226, 0
    %v285 = vsel %vm256, %v227, 0
    %v288 = vsel %vm256, %v228, 0
    %v291 = vsel %vm256, %v229, 0
    %v294 = vsel %vm256, %v230, 0
    %v297 = vsel %vm256, %v231, 0
    %v300 = vsel %vm256, %v232, 0
    %v303 = vsel %vm256, %v233, 0
    %v306 = vsel %vm256, %v234, 0
    %v309 = vsel %vm256, %v235, 0
    %v312 = vsel %vm256, %v236, 0
    %v315 = vsel %vm256, %v237, 0
    %v318 = vsel %vm256, %v238, 0
    %v321 = vsel %vm256, %v239, 0
    %v324 = vsel %vm256, %v240, 0
    %v327 = vsel %vm256, %v241, 0
    %v330 = vsel %vm256, %v242, 0
    %v333 = vsel %vm256, %v243, 0
    %v336 = vsel %vm256, %v244, 0
    %v339 = vsel %vm256, %v245, 0
    %v342 = vsel %vm256, %v246, 0
    %v345 = vsel %vm256, %v247, 0
    %v348 = vsel %vm256, %v248, 0
    %v351 = vsel %vm256, %v249, 0
    %vm353 = vcmask 1041408
    %v355 = vsel %vm353, %v101, 0
    %357 = vmatprep.subr.bf16.mxu0 0
    %358 = vmatpush1.bf16.msra.mxu0 0
    %359 = vmatprep.subr.bf16.mxu0 0
    %360 = vmatpush1.bf16.msra.mxu0 0
    %361 = vmatprep.subr.bf16.mxu0 0
    %362 = vmatpush1.bf16.msra.mxu0 0
    %363 = vmatprep.subr.bf16.mxu0 0
    %364 = vmatpush1.bf16.msra.mxu0 0
    %365 = vmatprep.subr.bf16.mxu0 0
    %366 = vmatpush1.bf16.msra.mxu0 0
    %367 = vmatprep.subr.bf16.mxu0 0
    %368 = vmatpush1.bf16.msra.mxu0 0
    %369 = vmatprep.subr.bf16.mxu0 0
    %370 = vmatpush1.bf16.msra.mxu0 0
    %371 = vmatprep.subr.bf16.mxu0 0
    %372 = vmatpush1.bf16.msra.mxu0 %v355
    %373 = vmatprep.subr.bf16.mxu0 0
    %374 = vmatpush2.bf16.msra.mxu0 0
    %375 = vmatprep.subr.bf16.mxu0 0
    %376 = vmatpush2.bf16.msra.mxu0 0
    %377 = vmatprep.subr.bf16.mxu0 0
    %378 = vmatpush2.bf16.msra.mxu0 0
    %379 = vmatprep.subr.bf16.mxu0 0
    %380 = vmatpush2.bf16.msra.mxu0 0
    %381 = vmatprep.subr.bf16.mxu0 0
    %382 = vmatpush2.bf16.msra.mxu0 0
    %383 = vmatprep.subr.bf16.mxu0 0
    %384 = vmatpush2.bf16.msra.mxu0 0
    %385 = vmatprep.subr.bf16.mxu0 0
    %386 = vmatpush2.bf16.msra.mxu0 0
    %387 = vmatprep.subr.bf16.mxu0 0
    %388 = vmatpush2.bf16.msra.mxu0 0
    %389 = vmatprep.mubr.bf16.mxu0 0
    %390 = vmatmul.mubr.bf16.gmra.mxu0 %v258
    %v391 = vpop.f32.mrf.mxu0
    %v392 = vadd.f32 %v254, %v391
    %v393 = vpop.f32.mrf.mxu0
    %v394 = vpop.f32.mrf.mxu0
    %v395 = vadd.f32 %v254, %v394
    %v396 = vpop.f32.mrf.mxu0
    %397 = vmatprep.mubr.bf16.mxu0 0
    %398 = vmatmul.mubr.bf16.gmra.mxu0 %v261
    %v399 = vpop.f32.mrf.mxu0
    %v400 = vadd.f32 %v254, %v399
    %v401 = vpop.f32.mrf.mxu0
    %v402 = vpop.f32.mrf.mxu0
    %v403 = vadd.f32 %v254, %v402
    %v404 = vpop.f32.mrf.mxu0
    %405 = vmatprep.mubr.bf16.mxu0 0
    %406 = vmatmul.mubr.bf16.gmra.mxu0 %v264
    %v407 = vpop.f32.mrf.mxu0
    %v408 = vadd.f32 %v254, %v407
    %v409 = vpop.f32.mrf.mxu0
    %v410 = vpop.f32.mrf.mxu0
    %v411 = vadd.f32 %v254, %v410
    %v412 = vpop.f32.mrf.mxu0
    %413 = vmatprep.mubr.bf16.mxu0 0
    %414 = vmatmul.mubr.bf16.gmra.mxu0 %v267
    %v415 = vpop.f32.mrf.mxu0
    %v416 = vadd.f32 %v254, %v415
    %v417 = vpop.f32.mrf.mxu0
    %v418 = vpop.f32.mrf.mxu0
    %v419 = vadd.f32 %v254, %v418
    %v420 = vpop.f32.mrf.mxu0
    %421 = vmatprep.mubr.bf16.mxu0 0
    %422 = vmatmul.mubr.bf16.gmra.mxu0 %v270
    %v423 = vpop.f32.mrf.mxu0
    %v424 = vadd.f32 %v254, %v423
    %v425 = vpop.f32.mrf.mxu0
    %v426 = vpop.f32.mrf.mxu0
    %v427 = vadd.f32 %v254, %v426
    %v428 = vpop.f32.mrf.mxu0
    %429 = vmatprep.mubr.bf16.mxu0 0
    %430 = vmatmul.mubr.bf16.gmra.mxu0 %v273
    %v431 = vpop.f32.mrf.mxu0
    %v432 = vadd.f32 %v254, %v431
    %v433 = vpop.f32.mrf.mxu0
    %v434 = vpop.f32.mrf.mxu0
    %v435 = vadd.f32 %v254, %v434
    %v436 = vpop.f32.mrf.mxu0
    %437 = vmatprep.mubr.bf16.mxu0 0
    %438 = vmatmul.mubr.bf16.gmra.mxu0 %v276
    %v439 = vpop.f32.mrf.mxu0
    %v440 = vadd.f32 %v254, %v439
    %v441 = vpop.f32.mrf.mxu0
    %v442 = vpop.f32.mrf.mxu0
    %v443 = vadd.f32 %v254, %v442
    %v444 = vpop.f32.mrf.mxu0
    %445 = vmatprep.mubr.bf16.mxu0 0
    %446 = vmatmul.mubr.bf16.gmra.mxu0 %v279
    %v447 = vpop.f32.mrf.mxu0
    %v448 = vadd.f32 %v254, %v447
    %v449 = vpop.f32.mrf.mxu0
    %v450 = vpop.f32.mrf.mxu0
    %v451 = vadd.f32 %v254, %v450
    %v452 = vpop.f32.mrf.mxu0
    %453 = vmatprep.mubr.bf16.mxu0 0
    %454 = vmatmul.mubr.bf16.gmra.mxu0 %v282
    %v455 = vpop.f32.mrf.mxu0
    %v456 = vadd.f32 %v254, %v455
    %v457 = vpop.f32.mrf.mxu0
    %v458 = vpop.f32.mrf.mxu0
    %v459 = vadd.f32 %v254, %v458
    %v460 = vpop.f32.mrf.mxu0
    %461 = vmatprep.mubr.bf16.mxu0 0
    %462 = vmatmul.mubr.bf16.gmra.mxu0 %v285
    %v463 = vpop.f32.mrf.mxu0
    %v464 = vadd.f32 %v254, %v463
    %v465 = vpop.f32.mrf.mxu0
    %v466 = vpop.f32.mrf.mxu0
    %v467 = vadd.f32 %v254, %v466
    %v468 = vpop.f32.mrf.mxu0
    %469 = vmatprep.mubr.bf16.mxu0 0
    %470 = vmatmul.mubr.bf16.gmra.mxu0 %v288
    %v471 = vpop.f32.mrf.mxu0
    %v472 = vadd.f32 %v254, %v471
    %v473 = vpop.f32.mrf.mxu0
    %v474 = vpop.f32.mrf.mxu0
    %v475 = vadd.f32 %v254, %v474
    %v476 = vpop.f32.mrf.mxu0
    %477 = vmatprep.mubr.bf16.mxu0 0
    %478 = vmatmul.mubr.bf16.gmra.mxu0 %v291
    %v479 = vpop.f32.mrf.mxu0
    %v480 = vadd.f32 %v254, %v479
    %v481 = vpop.f32.mrf.mxu0
    %v482 = vpop.f32.mrf.mxu0
    %v483 = vadd.f32 %v254, %v482
    %v484 = vpop.f32.mrf.mxu0
    %485 = vmatprep.mubr.bf16.mxu0 0
    %486 = vmatmul.mubr.bf16.gmra.mxu0 %v294
    %v487 = vpop.f32.mrf.mxu0
    %v488 = vadd.f32 %v254, %v487
    %v489 = vpop.f32.mrf.mxu0
    %v490 = vpop.f32.mrf.mxu0
    %v491 = vadd.f32 %v254, %v490
    %v492 = vpop.f32.mrf.mxu0
    %493 = vmatprep.mubr.bf16.mxu0 0
    %494 = vmatmul.mubr.bf16.gmra.mxu0 %v297
    %v495 = vpop.f32.mrf.mxu0
    %v496 = vadd.f32 %v254, %v495
    %v497 = vpop.f32.mrf.mxu0
    %v498 = vpop.f32.mrf.mxu0
    %v499 = vadd.f32 %v254, %v498
    %v500 = vpop.f32.mrf.mxu0
    %501 = vmatprep.mubr.bf16.mxu0 0
    %502 = vmatmul.mubr.bf16.gmra.mxu0 %v300
    %v503 = vpop.f32.mrf.mxu0
    %v504 = vadd.f32 %v254, %v503
    %v505 = vpop.f32.mrf.mxu0
    %v506 = vpop.f32.mrf.mxu0
    %v507 = vadd.f32 %v254, %v506
    %v508 = vpop.f32.mrf.mxu0
    %509 = vmatprep.mubr.bf16.mxu0 0
    %510 = vmatmul.mubr.bf16.gmra.mxu0 %v303
    %v511 = vpop.f32.mrf.mxu0
    %v512 = vadd.f32 %v254, %v511
    %v513 = vpop.f32.mrf.mxu0
    %v514 = vpop.f32.mrf.mxu0
    %v515 = vadd.f32 %v254, %v514
    %v516 = vpop.f32.mrf.mxu0
    %517 = vmatprep.mubr.bf16.mxu0 0
    %518 = vmatmul.mubr.bf16.gmra.mxu0 %v306
    %v519 = vpop.f32.mrf.mxu0
    %v520 = vadd.f32 %v254, %v519
    %v521 = vpop.f32.mrf.mxu0
    %v522 = vpop.f32.mrf.mxu0
    %v523 = vadd.f32 %v254, %v522
    %v524 = vpop.f32.mrf.mxu0
    %525 = vmatprep.mubr.bf16.mxu0 0
    %526 = vmatmul.mubr.bf16.gmra.mxu0 %v309
    %v527 = vpop.f32.mrf.mxu0
    %v528 = vadd.f32 %v254, %v527
    %v529 = vpop.f32.mrf.mxu0
    %v530 = vpop.f32.mrf.mxu0
    %v531 = vadd.f32 %v254, %v530
    %v532 = vpop.f32.mrf.mxu0
    %533 = vmatprep.mubr.bf16.mxu0 0
    %534 = vmatmul.mubr.bf16.gmra.mxu0 %v312
    %v535 = vpop.f32.mrf.mxu0
    %v536 = vadd.f32 %v254, %v535
    %v537 = vpop.f32.mrf.mxu0
    %v538 = vpop.f32.mrf.mxu0
    %v539 = vadd.f32 %v254, %v538
    %v540 = vpop.f32.mrf.mxu0
    %541 = vmatprep.mubr.bf16.mxu0 0
    %542 = vmatmul.mubr.bf16.gmra.mxu0 %v315
    %v543 = vpop.f32.mrf.mxu0
    %v544 = vadd.f32 %v254, %v543
    %v545 = vpop.f32.mrf.mxu0
    %v546 = vpop.f32.mrf.mxu0
    %v547 = vadd.f32 %v254, %v546
    %v548 = vpop.f32.mrf.mxu0
    %549 = vmatprep.mubr.bf16.mxu0 0
    %550 = vmatmul.mubr.bf16.gmra.mxu0 %v318
    %v551 = vpop.f32.mrf.mxu0
    %v552 = vadd.f32 %v254, %v551
    %v553 = vpop.f32.mrf.mxu0
    %v554 = vpop.f32.mrf.mxu0
    %v555 = vadd.f32 %v254, %v554
    %v556 = vpop.f32.mrf.mxu0
    %557 = vmatprep.mubr.bf16.mxu0 0
    %558 = vmatmul.mubr.bf16.gmra.mxu0 %v321
    %v559 = vpop.f32.mrf.mxu0
    %v560 = vadd.f32 %v254, %v559
    %v561 = vpop.f32.mrf.mxu0
    %v562 = vpop.f32.mrf.mxu0
    %v563 = vadd.f32 %v254, %v562
    %v564 = vpop.f32.mrf.mxu0
    %565 = vmatprep.mubr.bf16.mxu0 0
    %566 = vmatmul.mubr.bf16.gmra.mxu0 %v324
    %v567 = vpop.f32.mrf.mxu0
    %v568 = vadd.f32 %v254, %v567
    %v569 = vpop.f32.mrf.mxu0
    %v570 = vpop.f32.mrf.mxu0
    %v571 = vadd.f32 %v254, %v570
    %v572 = vpop.f32.mrf.mxu0
    %573 = vmatprep.mubr.bf16.mxu0 0
    %574 = vmatmul.mubr.bf16.gmra.mxu0 %v327
    %v575 = vpop.f32.mrf.mxu0
    %v576 = vadd.f32 %v254, %v575
    %v577 = vpop.f32.mrf.mxu0
    %v578 = vpop.f32.mrf.mxu0
    %v579 = vadd.f32 %v254, %v578
    %v580 = vpop.f32.mrf.mxu0
    %581 = vmatprep.mubr.bf16.mxu0 0
    %582 = vmatmul.mubr.bf16.gmra.mxu0 %v330
    %v583 = vpop.f32.mrf.mxu0
    %v584 = vadd.f32 %v254, %v583
    %v585 = vpop.f32.mrf.mxu0
    %v586 = vpop.f32.mrf.mxu0
    %v587 = vadd.f32 %v254, %v586
    %v588 = vpop.f32.mrf.mxu0
    %589 = vmatprep.mubr.bf16.mxu0 0
    %590 = vmatmul.mubr.bf16.gmra.mxu0 %v333
    %v591 = vpop.f32.mrf.mxu0
    %v592 = vadd.f32 %v254, %v591
    %v593 = vpop.f32.mrf.mxu0
    %v594 = vpop.f32.mrf.mxu0
    %v595 = vadd.f32 %v254, %v594
    %v596 = vpop.f32.mrf.mxu0
    %597 = vmatprep.mubr.bf16.mxu0 0
    %598 = vmatmul.mubr.bf16.gmra.mxu0 %v336
    %v599 = vpop.f32.mrf.mxu0
    %v600 = vadd.f32 %v254, %v599
    %v601 = vpop.f32.mrf.mxu0
    %v602 = vpop.f32.mrf.mxu0
    %v603 = vadd.f32 %v254, %v602
    %v604 = vpop.f32.mrf.mxu0
    %605 = vmatprep.mubr.bf16.mxu0 0
    %606 = vmatmul.mubr.bf16.gmra.mxu0 %v339
    %v607 = vpop.f32.mrf.mxu0
    %v608 = vadd.f32 %v254, %v607
    %v609 = vpop.f32.mrf.mxu0
    %v610 = vpop.f32.mrf.mxu0
    %v611 = vadd.f32 %v254, %v610
    %v612 = vpop.f32.mrf.mxu0
    %613 = vmatprep.mubr.bf16.mxu0 0
    %614 = vmatmul.mubr.bf16.gmra.mxu0 %v342
    %v615 = vpop.f32.mrf.mxu0
    %v616 = vadd.f32 %v254, %v615
    %v617 = vpop.f32.mrf.mxu0
    %v618 = vpop.f32.mrf.mxu0
    %v619 = vadd.f32 %v254, %v618
    %v620 = vpop.f32.mrf.mxu0
    %621 = vmatprep.mubr.bf16.mxu0 0
    %622 = vmatmul.mubr.bf16.gmra.mxu0 %v345
    %v623 = vpop.f32.mrf.mxu0
    %v624 = vadd.f32 %v254, %v623
    %v625 = vpop.f32.mrf.mxu0
    %v626 = vpop.f32.mrf.mxu0
    %v627 = vadd.f32 %v254, %v626
    %v628 = vpop.f32.mrf.mxu0
    %629 = vmatprep.mubr.bf16.mxu0 0
    %630 = vmatmul.mubr.bf16.gmra.mxu0 %v348
    %v631 = vpop.f32.mrf.mxu0
    %v632 = vadd.f32 %v254, %v631
    %v633 = vpop.f32.mrf.mxu0
    %v634 = vpop.f32.mrf.mxu0
    %v635 = vadd.f32 %v254, %v634
    %v636 = vpop.f32.mrf.mxu0
    %637 = vmatprep.mubr.bf16.mxu0 0
    %638 = vmatmul.mubr.bf16.gmra.mxu0 %v351
    %v639 = vpop.f32.mrf.mxu0
    %v640 = vadd.f32 %v254, %v639
    %v641 = vpop.f32.mrf.mxu0
    %v642 = vpop.f32.mrf.mxu0
    %v643 = vadd.f32 %v254, %v642
    %v644 = vpop.f32.mrf.mxu0
    %645 = vdwg.mxu0
    %v646 = vmax.f32 %v392, 0.0
    %v647 = vmax.f32 %v395, 0.0
    %v648 = vmax.f32 %v400, 0.0
    %v649 = vmax.f32 %v403, 0.0
    %v650 = vmax.f32 %v408, 0.0
    %v651 = vmax.f32 %v411, 0.0
    %v652 = vmax.f32 %v416, 0.0
    %v653 = vmax.f32 %v419, 0.0
    %v654 = vmax.f32 %v424, 0.0
    %v655 = vmax.f32 %v427, 0.0
    %v656 = vmax.f32 %v432, 0.0
    %v657 = vmax.f32 %v435, 0.0
    %v658 = vmax.f32 %v440, 0.0
    %v659 = vmax.f32 %v443, 0.0
    %v660 = vmax.f32 %v448, 0.0
    %v661 = vmax.f32 %v451, 0.0
    %v662 = vmax.f32 %v456, 0.0
    %v663 = vmax.f32 %v459, 0.0
    %v664 = vmax.f32 %v464, 0.0
    %v665 = vmax.f32 %v467, 0.0
    %v666 = vmax.f32 %v472, 0.0
    %v667 = vmax.f32 %v475, 0.0
    %v668 = vmax.f32 %v480, 0.0
    %v669 = vmax.f32 %v483, 0.0
    %v670 = vmax.f32 %v488, 0.0
    %v671 = vmax.f32 %v491, 0.0
    %v672 = vmax.f32 %v496, 0.0
    %v673 = vmax.f32 %v499, 0.0
    %v674 = vmax.f32 %v504, 0.0
    %v675 = vmax.f32 %v507, 0.0
    %v676 = vmax.f32 %v512, 0.0
    %v677 = vmax.f32 %v515, 0.0
    %v678 = vmax.f32 %v520, 0.0
    %v679 = vmax.f32 %v523, 0.0
    %v680 = vmax.f32 %v528, 0.0
    %v681 = vmax.f32 %v531, 0.0
    %v682 = vmax.f32 %v536, 0.0
    %v683 = vmax.f32 %v539, 0.0
    %v684 = vmax.f32 %v544, 0.0
    %v685 = vmax.f32 %v547, 0.0
    %v686 = vmax.f32 %v552, 0.0
    %v687 = vmax.f32 %v555, 0.0
    %v688 = vmax.f32 %v560, 0.0
    %v689 = vmax.f32 %v563, 0.0
    %v690 = vmax.f32 %v568, 0.0
    %v691 = vmax.f32 %v571, 0.0
    %v692 = vmax.f32 %v576, 0.0
    %v693 = vmax.f32 %v579, 0.0
    %v694 = vmax.f32 %v584, 0.0
    %v695 = vmax.f32 %v587, 0.0
    %v696 = vmax.f32 %v592, 0.0
    %v697 = vmax.f32 %v595, 0.0
    %v698 = vmax.f32 %v600, 0.0
    %v699 = vmax.f32 %v603, 0.0
    %v700 = vmax.f32 %v608, 0.0
    %v701 = vmax.f32 %v611, 0.0
    %v702 = vmax.f32 %v616, 0.0
    %v703 = vmax.f32 %v619, 0.0
    %v704 = vmax.f32 %v624, 0.0
    %v705 = vmax.f32 %v627, 0.0
    %v706 = vmax.f32 %v632, 0.0
    %v707 = vmax.f32 %v635, 0.0
    %v708 = vmax.f32 %v640, 0.0
    %v709 = vmax.f32 %v643, 0.0
    %v710 = vpack.c.bf16 %v647, %v646
    %v711 = vpack.c.bf16 %v649, %v648
    %v712 = vpack.c.bf16 %v651, %v650
    %v713 = vpack.c.bf16 %v653, %v652
    %v714 = vpack.c.bf16 %v655, %v654
    %v715 = vpack.c.bf16 %v657, %v656
    %v716 = vpack.c.bf16 %v659, %v658
    %v717 = vpack.c.bf16 %v661, %v660
    %v718 = vpack.c.bf16 %v663, %v662
    %v719 = vpack.c.bf16 %v665, %v664
    %v720 = vpack.c.bf16 %v667, %v666
    %v721 = vpack.c.bf16 %v669, %v668
    %v722 = vpack.c.bf16 %v671, %v670
    %v723 = vpack.c.bf16 %v673, %v672
    %v724 = vpack.c.bf16 %v675, %v674
    %v725 = vpack.c.bf16 %v677, %v676
    %v726 = vpack.c.bf16 %v679, %v678
    %v727 = vpack.c.bf16 %v681, %v680
    %v728 = vpack.c.bf16 %v683, %v682
    %v729 = vpack.c.bf16 %v685, %v684
    %v730 = vpack.c.bf16 %v687, %v686
    %v731 = vpack.c.bf16 %v689, %v688
    %v732 = vpack.c.bf16 %v691, %v690
    %v733 = vpack.c.bf16 %v693, %v692
    %v734 = vpack.c.bf16 %v695, %v694
    %v735 = vpack.c.bf16 %v697, %v696
    %v736 = vpack.c.bf16 %v699, %v698
    %v737 = vpack.c.bf16 %v701, %v700
    %v738 = vpack.c.bf16 %v703, %v702
    %v739 = vpack.c.bf16 %v705, %v704
    %v740 = vpack.c.bf16 %v707, %v706
    %v741 = vpack.c.bf16 %v709, %v708
    %v743 = vlaneseq
    %v744 = vshrl.u32 %v743, 7
    %v745 = vsub.s32 0, %v744
    %v746 = vrot.slane %v119, %v745
    %v747 = vlaneseq
    %v748 = vshrl.u32 %v747, 7
    %v749 = vsub.s32 1, %v748
    %v750 = vrot.slane %v119, %v749
    %v769 = vunpack.c.l.b16 %v103
    %v770 = vunpack.c.h.b16 %v103
    %v771 = vunpack.c.l.b16 %v104
    %v772 = vunpack.c.h.b16 %v104
    %v773 = vunpack.c.l.b16 %v105
    %v774 = vunpack.c.h.b16 %v105
    %v775 = vunpack.c.l.b16 %v106
    %v776 = vunpack.c.h.b16 %v106
    %v777 = vunpack.c.l.b16 %v107
    %v778 = vunpack.c.h.b16 %v107
    %v779 = vunpack.c.l.b16 %v108
    %v780 = vunpack.c.h.b16 %v108
    %v781 = vunpack.c.l.b16 %v109
    %v782 = vunpack.c.h.b16 %v109
    %v783 = vunpack.c.l.b16 %v110
    %v784 = vunpack.c.h.b16 %v110
    %v785 = vunpack.c.l.b16 %v111
    %v786 = vunpack.c.h.b16 %v111
    %v787 = vunpack.c.l.b16 %v112
    %v788 = vunpack.c.h.b16 %v112
    %v789 = vunpack.c.l.b16 %v113
    %v790 = vunpack.c.h.b16 %v113
    %v791 = vunpack.c.l.b16 %v114
    %v792 = vunpack.c.h.b16 %v114
    %v793 = vunpack.c.l.b16 %v115
    %v794 = vunpack.c.h.b16 %v115
    %v795 = vunpack.c.l.b16 %v116
    %v796 = vunpack.c.h.b16 %v116
    %v797 = vunpack.c.l.b16 %v117
    %v798 = vunpack.c.h.b16 %v117
    %v799 = vunpack.c.l.b16 %v118
    %v800 = vunpack.c.h.b16 %v118
    %v801 = vpack.c.b16 %v771, %v769
    %v802 = vpack.c.b16 %v772, %v770
    %v803 = vpack.c.b16 %v775, %v773
    %v804 = vpack.c.b16 %v776, %v774
    %v805 = vpack.c.b16 %v779, %v777
    %v806 = vpack.c.b16 %v780, %v778
    %v807 = vpack.c.b16 %v783, %v781
    %v808 = vpack.c.b16 %v784, %v782
    %v809 = vpack.c.b16 %v787, %v785
    %v810 = vpack.c.b16 %v788, %v786
    %v811 = vpack.c.b16 %v791, %v789
    %v812 = vpack.c.b16 %v792, %v790
    %v813 = vpack.c.b16 %v795, %v793
    %v814 = vpack.c.b16 %v796, %v794
    %v815 = vpack.c.b16 %v799, %v797
    %v816 = vpack.c.b16 %v800, %v798
    %833 = vmatprep.subr.bf16.mxu0 %v816
    %834 = vmatpush1.bf16.msra.mxu0 %v815
    %835 = vmatprep.subr.bf16.mxu0 %v814
    %836 = vmatpush1.bf16.msra.mxu0 %v813
    %837 = vmatprep.subr.bf16.mxu0 %v812
    %838 = vmatpush1.bf16.msra.mxu0 %v811
    %839 = vmatprep.subr.bf16.mxu0 %v810
    %840 = vmatpush1.bf16.msra.mxu0 %v809
    %841 = vmatprep.subr.bf16.mxu0 %v808
    %842 = vmatpush1.bf16.msra.mxu0 %v807
    %843 = vmatprep.subr.bf16.mxu0 %v806
    %844 = vmatpush1.bf16.msra.mxu0 %v805
    %845 = vmatprep.subr.bf16.mxu0 %v804
    %846 = vmatpush1.bf16.msra.mxu0 %v803
    %847 = vmatprep.subr.bf16.mxu0 %v802
    %848 = vmatpush1.bf16.msra.mxu0 %v801
    %849 = vmatprep.subr.bf16.mxu0 0
    %850 = vmatpush2.bf16.msra.mxu0 0
    %851 = vmatprep.subr.bf16.mxu0 0
    %852 = vmatpush2.bf16.msra.mxu0 0
    %853 = vmatprep.subr.bf16.mxu0 0
    %854 = vmatpush2.bf16.msra.mxu0 0
    %855 = vmatprep.subr.bf16.mxu0 0
    %856 = vmatpush2.bf16.msra.mxu0 0
    %857 = vmatprep.subr.bf16.mxu0 0
    %858 = vmatpush2.bf16.msra.mxu0 0
    %859 = vmatprep.subr.bf16.mxu0 0
    %860 = vmatpush2.bf16.msra.mxu0 0
    %861 = vmatprep.subr.bf16.mxu0 0
    %862 = vmatpush2.bf16.msra.mxu0 0
    %863 = vmatprep.subr.bf16.mxu0 0
    %864 = vmatpush2.bf16.msra.mxu0 0
    %865 = vmatprep.mubr.bf16.mxu0 0
    %866 = vmatmul.mubr.bf16.gmra.mxu0 %v710
    %v867 = vpop.f32.mrf.mxu0
    %v868 = vadd.f32 %v746, %v867
    %v869 = vpop.f32.mrf.mxu0
    %v870 = vadd.f32 %v750, %v869
    %v871 = vpop.f32.mrf.mxu0
    %v872 = vadd.f32 %v746, %v871
    %v873 = vpop.f32.mrf.mxu0
    %v874 = vadd.f32 %v750, %v873
    %875 = vmatprep.mubr.bf16.mxu0 0
    %876 = vmatmul.mubr.bf16.gmra.mxu0 %v711
    %v877 = vpop.f32.mrf.mxu0
    %v878 = vadd.f32 %v746, %v877
    %v879 = vpop.f32.mrf.mxu0
    %v880 = vadd.f32 %v750, %v879
    %v881 = vpop.f32.mrf.mxu0
    %v882 = vadd.f32 %v746, %v881
    %v883 = vpop.f32.mrf.mxu0
    %v884 = vadd.f32 %v750, %v883
    %885 = vmatprep.mubr.bf16.mxu0 0
    %886 = vmatmul.mubr.bf16.gmra.mxu0 %v712
    %v887 = vpop.f32.mrf.mxu0
    %v888 = vadd.f32 %v746, %v887
    %v889 = vpop.f32.mrf.mxu0
    %v890 = vadd.f32 %v750, %v889
    %v891 = vpop.f32.mrf.mxu0
    %v892 = vadd.f32 %v746, %v891
    %v893 = vpop.f32.mrf.mxu0
    %v894 = vadd.f32 %v750, %v893
    %895 = vmatprep.mubr.bf16.mxu0 0
    %896 = vmatmul.mubr.bf16.gmra.mxu0 %v713
    %v897 = vpop.f32.mrf.mxu0
    %v898 = vadd.f32 %v746, %v897
    %v899 = vpop.f32.mrf.mxu0
    %v900 = vadd.f32 %v750, %v899
    %v901 = vpop.f32.mrf.mxu0
    %v902 = vadd.f32 %v746, %v901
    %v903 = vpop.f32.mrf.mxu0
    %v904 = vadd.f32 %v750, %v903
    %905 = vmatprep.mubr.bf16.mxu0 0
    %906 = vmatmul.mubr.bf16.gmra.mxu0 %v714
    %v907 = vpop.f32.mrf.mxu0
    %v908 = vadd.f32 %v746, %v907
    %v909 = vpop.f32.mrf.mxu0
    %v910 = vadd.f32 %v750, %v909
    %v911 = vpop.f32.mrf.mxu0
    %v912 = vadd.f32 %v746, %v911
    %v913 = vpop.f32.mrf.mxu0
    %v914 = vadd.f32 %v750, %v913
    %915 = vmatprep.mubr.bf16.mxu0 0
    %916 = vmatmul.mubr.bf16.gmra.mxu0 %v715
    %v917 = vpop.f32.mrf.mxu0
    %v918 = vadd.f32 %v746, %v917
    %v919 = vpop.f32.mrf.mxu0
    %v920 = vadd.f32 %v750, %v919
    %v921 = vpop.f32.mrf.mxu0
    %v922 = vadd.f32 %v746, %v921
    %v923 = vpop.f32.mrf.mxu0
    %v924 = vadd.f32 %v750, %v923
    %925 = vmatprep.mubr.bf16.mxu0 0
    %926 = vmatmul.mubr.bf16.gmra.mxu0 %v716
    %v927 = vpop.f32.mrf.mxu0
    %v928 = vadd.f32 %v746, %v927
    %v929 = vpop.f32.mrf.mxu0
    %v930 = vadd.f32 %v750, %v929
    %v931 = vpop.f32.mrf.mxu0
    %v932 = vadd.f32 %v746, %v931
    %v933 = vpop.f32.mrf.mxu0
    %v934 = vadd.f32 %v750, %v933
    %935 = vmatprep.mubr.bf16.mxu0 0
    %936 = vmatmul.mubr.bf16.gmra.mxu0 %v717
    %v937 = vpop.f32.mrf.mxu0
    %v938 = vadd.f32 %v746, %v937
    %v939 = vpop.f32.mrf.mxu0
    %v940 = vadd.f32 %v750, %v939
    %v941 = vpop.f32.mrf.mxu0
    %v942 = vadd.f32 %v746, %v941
    %v943 = vpop.f32.mrf.mxu0
    %v944 = vadd.f32 %v750, %v943
    %945 = vmatprep.mubr.bf16.mxu0 0
    %946 = vmatmul.mubr.bf16.gmra.mxu0 %v718
    %v947 = vpop.f32.mrf.mxu0
    %v948 = vadd.f32 %v746, %v947
    %v949 = vpop.f32.mrf.mxu0
    %v950 = vadd.f32 %v750, %v949
    %v951 = vpop.f32.mrf.mxu0
    %v952 = vadd.f32 %v746, %v951
    %v953 = vpop.f32.mrf.mxu0
    %v954 = vadd.f32 %v750, %v953
    %955 = vmatprep.mubr.bf16.mxu0 0
    %956 = vmatmul.mubr.bf16.gmra.mxu0 %v719
    %v957 = vpop.f32.mrf.mxu0
    %v958 = vadd.f32 %v746, %v957
    %v959 = vpop.f32.mrf.mxu0
    %v960 = vadd.f32 %v750, %v959
    %v961 = vpop.f32.mrf.mxu0
    %v962 = vadd.f32 %v746, %v961
    %v963 = vpop.f32.mrf.mxu0
    %v964 = vadd.f32 %v750, %v963
    %965 = vmatprep.mubr.bf16.mxu0 0
    %966 = vmatmul.mubr.bf16.gmra.mxu0 %v720
    %v967 = vpop.f32.mrf.mxu0
    %v968 = vadd.f32 %v746, %v967
    %v969 = vpop.f32.mrf.mxu0
    %v970 = vadd.f32 %v750, %v969
    %v971 = vpop.f32.mrf.mxu0
    %v972 = vadd.f32 %v746, %v971
    %v973 = vpop.f32.mrf.mxu0
    %v974 = vadd.f32 %v750, %v973
    %975 = vmatprep.mubr.bf16.mxu0 0
    %976 = vmatmul.mubr.bf16.gmra.mxu0 %v721
    %v977 = vpop.f32.mrf.mxu0
    %v978 = vadd.f32 %v746, %v977
    %v979 = vpop.f32.mrf.mxu0
    %v980 = vadd.f32 %v750, %v979
    %v981 = vpop.f32.mrf.mxu0
    %v982 = vadd.f32 %v746, %v981
    %v983 = vpop.f32.mrf.mxu0
    %v984 = vadd.f32 %v750, %v983
    %985 = vmatprep.mubr.bf16.mxu0 0
    %986 = vmatmul.mubr.bf16.gmra.mxu0 %v722
    %v987 = vpop.f32.mrf.mxu0
    %v988 = vadd.f32 %v746, %v987
    %v989 = vpop.f32.mrf.mxu0
    %v990 = vadd.f32 %v750, %v989
    %v991 = vpop.f32.mrf.mxu0
    %v992 = vadd.f32 %v746, %v991
    %v993 = vpop.f32.mrf.mxu0
    %v994 = vadd.f32 %v750, %v993
    %995 = vmatprep.mubr.bf16.mxu0 0
    %996 = vmatmul.mubr.bf16.gmra.mxu0 %v723
    %v997 = vpop.f32.mrf.mxu0
    %v998 = vadd.f32 %v746, %v997
    %v999 = vpop.f32.mrf.mxu0
    %v1000 = vadd.f32 %v750, %v999
    %v1001 = vpop.f32.mrf.mxu0
    %v1002 = vadd.f32 %v746, %v1001
    %v1003 = vpop.f32.mrf.mxu0
    %v1004 = vadd.f32 %v750, %v1003
    %1005 = vmatprep.mubr.bf16.mxu0 0
    %1006 = vmatmul.mubr.bf16.gmra.mxu0 %v724
    %v1007 = vpop.f32.mrf.mxu0
    %v1008 = vadd.f32 %v746, %v1007
    %v1009 = vpop.f32.mrf.mxu0
    %v1010 = vadd.f32 %v750, %v1009
    %v1011 = vpop.f32.mrf.mxu0
    %v1012 = vadd.f32 %v746, %v1011
    %v1013 = vpop.f32.mrf.mxu0
    %v1014 = vadd.f32 %v750, %v1013
    %1015 = vmatprep.mubr.bf16.mxu0 0
    %1016 = vmatmul.mubr.bf16.gmra.mxu0 %v725
    %v1017 = vpop.f32.mrf.mxu0
    %v1018 = vadd.f32 %v746, %v1017
    %v1019 = vpop.f32.mrf.mxu0
    %v1020 = vadd.f32 %v750, %v1019
    %v1021 = vpop.f32.mrf.mxu0
    %v1022 = vadd.f32 %v746, %v1021
    %v1023 = vpop.f32.mrf.mxu0
    %v1024 = vadd.f32 %v750, %v1023
    %1025 = vmatprep.mubr.bf16.mxu0 0
    %1026 = vmatmul.mubr.bf16.gmra.mxu0 %v726
    %v1027 = vpop.f32.mrf.mxu0
    %v1028 = vadd.f32 %v746, %v1027
    %v1029 = vpop.f32.mrf.mxu0
    %v1030 = vadd.f32 %v750, %v1029
    %v1031 = vpop.f32.mrf.mxu0
    %v1032 = vadd.f32 %v746, %v1031
    %v1033 = vpop.f32.mrf.mxu0
    %v1034 = vadd.f32 %v750, %v1033
    %1035 = vmatprep.mubr.bf16.mxu0 0
    %1036 = vmatmul.mubr.bf16.gmra.mxu0 %v727
    %v1037 = vpop.f32.mrf.mxu0
    %v1038 = vadd.f32 %v746, %v1037
    %v1039 = vpop.f32.mrf.mxu0
    %v1040 = vadd.f32 %v750, %v1039
    %v1041 = vpop.f32.mrf.mxu0
    %v1042 = vadd.f32 %v746, %v1041
    %v1043 = vpop.f32.mrf.mxu0
    %v1044 = vadd.f32 %v750, %v1043
    %1045 = vmatprep.mubr.bf16.mxu0 0
    %1046 = vmatmul.mubr.bf16.gmra.mxu0 %v728
    %v1047 = vpop.f32.mrf.mxu0
    %v1048 = vadd.f32 %v746, %v1047
    %v1049 = vpop.f32.mrf.mxu0
    %v1050 = vadd.f32 %v750, %v1049
    %v1051 = vpop.f32.mrf.mxu0
    %v1052 = vadd.f32 %v746, %v1051
    %v1053 = vpop.f32.mrf.mxu0
    %v1054 = vadd.f32 %v750, %v1053
    %1055 = vmatprep.mubr.bf16.mxu0 0
    %1056 = vmatmul.mubr.bf16.gmra.mxu0 %v729
    %v1057 = vpop.f32.mrf.mxu0
    %v1058 = vadd.f32 %v746, %v1057
    %v1059 = vpop.f32.mrf.mxu0
    %v1060 = vadd.f32 %v750, %v1059
    %v1061 = vpop.f32.mrf.mxu0
    %v1062 = vadd.f32 %v746, %v1061
    %v1063 = vpop.f32.mrf.mxu0
    %v1064 = vadd.f32 %v750, %v1063
    %1065 = vmatprep.mubr.bf16.mxu0 0
    %1066 = vmatmul.mubr.bf16.gmra.mxu0 %v730
    %v1067 = vpop.f32.mrf.mxu0
    %v1068 = vadd.f32 %v746, %v1067
    %v1069 = vpop.f32.mrf.mxu0
    %v1070 = vadd.f32 %v750, %v1069
    %v1071 = vpop.f32.mrf.mxu0
    %v1072 = vadd.f32 %v746, %v1071
    %v1073 = vpop.f32.mrf.mxu0
    %v1074 = vadd.f32 %v750, %v1073
    %1075 = vmatprep.mubr.bf16.mxu0 0
    %1076 = vmatmul.mubr.bf16.gmra.mxu0 %v731
    %v1077 = vpop.f32.mrf.mxu0
    %v1078 = vadd.f32 %v746, %v1077
    %v1079 = vpop.f32.mrf.mxu0
    %v1080 = vadd.f32 %v750, %v1079
    %v1081 = vpop.f32.mrf.mxu0
    %v1082 = vadd.f32 %v746, %v1081
    %v1083 = vpop.f32.mrf.mxu0
    %v1084 = vadd.f32 %v750, %v1083
    %1085 = vmatprep.mubr.bf16.mxu0 0
    %1086 = vmatmul.mubr.bf16.gmra.mxu0 %v732
    %v1087 = vpop.f32.mrf.mxu0
    %v1088 = vadd.f32 %v746, %v1087
    %v1089 = vpop.f32.mrf.mxu0
    %v1090 = vadd.f32 %v750, %v1089
    %v1091 = vpop.f32.mrf.mxu0
    %v1092 = vadd.f32 %v746, %v1091
    %v1093 = vpop.f32.mrf.mxu0
    %v1094 = vadd.f32 %v750, %v1093
    %1095 = vmatprep.mubr.bf16.mxu0 0
    %1096 = vmatmul.mubr.bf16.gmra.mxu0 %v733
    %v1097 = vpop.f32.mrf.mxu0
    %v1098 = vadd.f32 %v746, %v1097
    %v1099 = vpop.f32.mrf.mxu0
    %v1100 = vadd.f32 %v750, %v1099
    %v1101 = vpop.f32.mrf.mxu0
    %v1102 = vadd.f32 %v746, %v1101
    %v1103 = vpop.f32.mrf.mxu0
    %v1104 = vadd.f32 %v750, %v1103
    %1105 = vmatprep.mubr.bf16.mxu0 0
    %1106 = vmatmul.mubr.bf16.gmra.mxu0 %v734
    %v1107 = vpop.f32.mrf.mxu0
    %v1108 = vadd.f32 %v746, %v1107
    %v1109 = vpop.f32.mrf.mxu0
    %v1110 = vadd.f32 %v750, %v1109
    %v1111 = vpop.f32.mrf.mxu0
    %v1112 = vadd.f32 %v746, %v1111
    %v1113 = vpop.f32.mrf.mxu0
    %v1114 = vadd.f32 %v750, %v1113
    %1115 = vmatprep.mubr.bf16.mxu0 0
    %1116 = vmatmul.mubr.bf16.gmra.mxu0 %v735
    %v1117 = vpop.f32.mrf.mxu0
    %v1118 = vadd.f32 %v746, %v1117
    %v1119 = vpop.f32.mrf.mxu0
    %v1120 = vadd.f32 %v750, %v1119
    %v1121 = vpop.f32.mrf.mxu0
    %v1122 = vadd.f32 %v746, %v1121
    %v1123 = vpop.f32.mrf.mxu0
    %v1124 = vadd.f32 %v750, %v1123
    %1125 = vmatprep.mubr.bf16.mxu0 0
    %1126 = vmatmul.mubr.bf16.gmra.mxu0 %v736
    %v1127 = vpop.f32.mrf.mxu0
    %v1128 = vadd.f32 %v746, %v1127
    %v1129 = vpop.f32.mrf.mxu0
    %v1130 = vadd.f32 %v750, %v1129
    %v1131 = vpop.f32.mrf.mxu0
    %v1132 = vadd.f32 %v746, %v1131
    %v1133 = vpop.f32.mrf.mxu0
    %v1134 = vadd.f32 %v750, %v1133
    %1135 = vmatprep.mubr.bf16.mxu0 0
    %1136 = vmatmul.mubr.bf16.gmra.mxu0 %v737
    %v1137 = vpop.f32.mrf.mxu0
    %v1138 = vadd.f32 %v746, %v1137
    %v1139 = vpop.f32.mrf.mxu0
    %v1140 = vadd.f32 %v750, %v1139
    %v1141 = vpop.f32.mrf.mxu0
    %v1142 = vadd.f32 %v746, %v1141
    %v1143 = vpop.f32.mrf.mxu0
    %v1144 = vadd.f32 %v750, %v1143
    %1145 = vmatprep.mubr.bf16.mxu0 0
    %1146 = vmatmul.mubr.bf16.gmra.mxu0 %v738
    %v1147 = vpop.f32.mrf.mxu0
    %v1148 = vadd.f32 %v746, %v1147
    %v1149 = vpop.f32.mrf.mxu0
    %v1150 = vadd.f32 %v750, %v1149
    %v1151 = vpop.f32.mrf.mxu0
    %v1152 = vadd.f32 %v746, %v1151
    %v1153 = vpop.f32.mrf.mxu0
    %v1154 = vadd.f32 %v750, %v1153
    %1155 = vmatprep.mubr.bf16.mxu0 0
    %1156 = vmatmul.mubr.bf16.gmra.mxu0 %v739
    %v1157 = vpop.f32.mrf.mxu0
    %v1158 = vadd.f32 %v746, %v1157
    %v1159 = vpop.f32.mrf.mxu0
    %v1160 = vadd.f32 %v750, %v1159
    %v1161 = vpop.f32.mrf.mxu0
    %v1162 = vadd.f32 %v746, %v1161
    %v1163 = vpop.f32.mrf.mxu0
    %v1164 = vadd.f32 %v750, %v1163
    %1165 = vmatprep.mubr.bf16.mxu0 0
    %1166 = vmatmul.mubr.bf16.gmra.mxu0 %v740
    %v1167 = vpop.f32.mrf.mxu0
    %v1168 = vadd.f32 %v746, %v1167
    %v1169 = vpop.f32.mrf.mxu0
    %v1170 = vadd.f32 %v750, %v1169
    %v1171 = vpop.f32.mrf.mxu0
    %v1172 = vadd.f32 %v746, %v1171
    %v1173 = vpop.f32.mrf.mxu0
    %v1174 = vadd.f32 %v750, %v1173
    %1175 = vmatprep.mubr.bf16.mxu0 0
    %1176 = vmatmul.mubr.bf16.gmra.mxu0 %v741
    %v1177 = vpop.f32.mrf.mxu0
    %v1178 = vadd.f32 %v746, %v1177
    %v1179 = vpop.f32.mrf.mxu0
    %v1180 = vadd.f32 %v750, %v1179
    %v1181 = vpop.f32.mrf.mxu0
    %v1182 = vadd.f32 %v746, %v1181
    %v1183 = vpop.f32.mrf.mxu0
    %v1184 = vadd.f32 %v750, %v1183
    %1185 = vdwg.mxu0
    %v1186 = vmax.f32 %v868, 0.0
    %v1187 = vmax.f32 %v870, 0.0
    %v1188 = vmax.f32 %v872, 0.0
    %v1189 = vmax.f32 %v874, 0.0
    %v1190 = vmax.f32 %v878, 0.0
    %v1191 = vmax.f32 %v880, 0.0
    %v1192 = vmax.f32 %v882, 0.0
    %v1193 = vmax.f32 %v884, 0.0
    %v1194 = vmax.f32 %v888, 0.0
    %v1195 = vmax.f32 %v890, 0.0
    %v1196 = vmax.f32 %v892, 0.0
    %v1197 = vmax.f32 %v894, 0.0
    %v1198 = vmax.f32 %v898, 0.0
    %v1199 = vmax.f32 %v900, 0.0
    %v1200 = vmax.f32 %v902, 0.0
    %v1201 = vmax.f32 %v904, 0.0
    %v1202 = vmax.f32 %v908, 0.0
    %v1203 = vmax.f32 %v910, 0.0
    %v1204 = vmax.f32 %v912, 0.0
    %v1205 = vmax.f32 %v914, 0.0
    %v1206 = vmax.f32 %v918, 0.0
    %v1207 = vmax.f32 %v920, 0.0
    %v1208 = vmax.f32 %v922, 0.0
    %v1209 = vmax.f32 %v924, 0.0
    %v1210 = vmax.f32 %v928, 0.0
    %v1211 = vmax.f32 %v930, 0.0
    %v1212 = vmax.f32 %v932, 0.0
    %v1213 = vmax.f32 %v934, 0.0
    %v1214 = vmax.f32 %v938, 0.0
    %v1215 = vmax.f32 %v940, 0.0
    %v1216 = vmax.f32 %v942, 0.0
    %v1217 = vmax.f32 %v944, 0.0
    %v1218 = vmax.f32 %v948, 0.0
    %v1219 = vmax.f32 %v950, 0.0
    %v1220 = vmax.f32 %v952, 0.0
    %v1221 = vmax.f32 %v954, 0.0
    %v1222 = vmax.f32 %v958, 0.0
    %v1223 = vmax.f32 %v960, 0.0
    %v1224 = vmax.f32 %v962, 0.0
    %v1225 = vmax.f32 %v964, 0.0
    %v1226 = vmax.f32 %v968, 0.0
    %v1227 = vmax.f32 %v970, 0.0
    %v1228 = vmax.f32 %v972, 0.0
    %v1229 = vmax.f32 %v974, 0.0
    %v1230 = vmax.f32 %v978, 0.0
    %v1231 = vmax.f32 %v980, 0.0
    %v1232 = vmax.f32 %v982, 0.0
    %v1233 = vmax.f32 %v984, 0.0
    %v1234 = vmax.f32 %v988, 0.0
    %v1235 = vmax.f32 %v990, 0.0
    %v1236 = vmax.f32 %v992, 0.0
    %v1237 = vmax.f32 %v994, 0.0
    %v1238 = vmax.f32 %v998, 0.0
    %v1239 = vmax.f32 %v1000, 0.0
    %v1240 = vmax.f32 %v1002, 0.0
    %v1241 = vmax.f32 %v1004, 0.0
    %v1242 = vmax.f32 %v1008, 0.0
    %v1243 = vmax.f32 %v1010, 0.0
    %v1244 = vmax.f32 %v1012, 0.0
    %v1245 = vmax.f32 %v1014, 0.0
    %v1246 = vmax.f32 %v1018, 0.0
    %v1247 = vmax.f32 %v1020, 0.0
    %v1248 = vmax.f32 %v1022, 0.0
    %v1249 = vmax.f32 %v1024, 0.0
    %v1250 = vmax.f32 %v1028, 0.0
    %v1251 = vmax.f32 %v1030, 0.0
    %v1252 = vmax.f32 %v1032, 0.0
    %v1253 = vmax.f32 %v1034, 0.0
    %v1254 = vmax.f32 %v1038, 0.0
    %v1255 = vmax.f32 %v1040, 0.0
    %v1256 = vmax.f32 %v1042, 0.0
    %v1257 = vmax.f32 %v1044, 0.0
    %v1258 = vmax.f32 %v1048, 0.0
    %v1259 = vmax.f32 %v1050, 0.0
    %v1260 = vmax.f32 %v1052, 0.0
    %v1261 = vmax.f32 %v1054, 0.0
    %v1262 = vmax.f32 %v1058, 0.0
    %v1263 = vmax.f32 %v1060, 0.0
    %v1264 = vmax.f32 %v1062, 0.0
    %v1265 = vmax.f32 %v1064, 0.0
    %v1266 = vmax.f32 %v1068, 0.0
    %v1267 = vmax.f32 %v1070, 0.0
    %v1268 = vmax.f32 %v1072, 0.0
    %v1269 = vmax.f32 %v1074, 0.0
    %v1270 = vmax.f32 %v1078, 0.0
    %v1271 = vmax.f32 %v1080, 0.0
    %v1272 = vmax.f32 %v1082, 0.0
    %v1273 = vmax.f32 %v1084, 0.0
    %v1274 = vmax.f32 %v1088, 0.0
    %v1275 = vmax.f32 %v1090, 0.0
    %v1276 = vmax.f32 %v1092, 0.0
    %v1277 = vmax.f32 %v1094, 0.0
    %v1278 = vmax.f32 %v1098, 0.0
    %v1279 = vmax.f32 %v1100, 0.0
    %v1280 = vmax.f32 %v1102, 0.0
    %v1281 = vmax.f32 %v1104, 0.0
    %v1282 = vmax.f32 %v1108, 0.0
    %v1283 = vmax.f32 %v1110, 0.0
    %v1284 = vmax.f32 %v1112, 0.0
    %v1285 = vmax.f32 %v1114, 0.0
    %v1286 = vmax.f32 %v1118, 0.0
    %v1287 = vmax.f32 %v1120, 0.0
    %v1288 = vmax.f32 %v1122, 0.0
    %v1289 = vmax.f32 %v1124, 0.0
    %v1290 = vmax.f32 %v1128, 0.0
    %v1291 = vmax.f32 %v1130, 0.0
    %v1292 = vmax.f32 %v1132, 0.0
    %v1293 = vmax.f32 %v1134, 0.0
    %v1294 = vmax.f32 %v1138, 0.0
    %v1295 = vmax.f32 %v1140, 0.0
    %v1296 = vmax.f32 %v1142, 0.0
    %v1297 = vmax.f32 %v1144, 0.0
    %v1298 = vmax.f32 %v1148, 0.0
    %v1299 = vmax.f32 %v1150, 0.0
    %v1300 = vmax.f32 %v1152, 0.0
    %v1301 = vmax.f32 %v1154, 0.0
    %v1302 = vmax.f32 %v1158, 0.0
    %v1303 = vmax.f32 %v1160, 0.0
    %v1304 = vmax.f32 %v1162, 0.0
    %v1305 = vmax.f32 %v1164, 0.0
    %v1306 = vmax.f32 %v1168, 0.0
    %v1307 = vmax.f32 %v1170, 0.0
    %v1308 = vmax.f32 %v1172, 0.0
    %v1309 = vmax.f32 %v1174, 0.0
    %v1310 = vmax.f32 %v1178, 0.0
    %v1311 = vmax.f32 %v1180, 0.0
    %v1312 = vmax.f32 %v1182, 0.0
    %v1313 = vmax.f32 %v1184, 0.0
    %v1314 = vpack.c.bf16 %v1188, %v1186
    %v1315 = vpack.c.bf16 %v1189, %v1187
    %v1316 = vpack.c.bf16 %v1192, %v1190
    %v1317 = vpack.c.bf16 %v1193, %v1191
    %v1318 = vpack.c.bf16 %v1196, %v1194
    %v1319 = vpack.c.bf16 %v1197, %v1195
    %v1320 = vpack.c.bf16 %v1200, %v1198
    %v1321 = vpack.c.bf16 %v1201, %v1199
    %v1322 = vpack.c.bf16 %v1204, %v1202
    %v1323 = vpack.c.bf16 %v1205, %v1203
    %v1324 = vpack.c.bf16 %v1208, %v1206
    %v1325 = vpack.c.bf16 %v1209, %v1207
    %v1326 = vpack.c.bf16 %v1212, %v1210
    %v1327 = vpack.c.bf16 %v1213, %v1211
    %v1328 = vpack.c.bf16 %v1216, %v1214
    %v1329 = vpack.c.bf16 %v1217, %v1215
    %v1330 = vpack.c.bf16 %v1220, %v1218
    %v1331 = vpack.c.bf16 %v1221, %v1219
    %v1332 = vpack.c.bf16 %v1224, %v1222
    %v1333 = vpack.c.bf16 %v1225, %v1223
    %v1334 = vpack.c.bf16 %v1228, %v1226
    %v1335 = vpack.c.bf16 %v1229, %v1227
    %v1336 = vpack.c.bf16 %v1232, %v1230
    %v1337 = vpack.c.bf16 %v1233, %v1231
    %v1338 = vpack.c.bf16 %v1236, %v1234
    %v1339 = vpack.c.bf16 %v1237, %v1235
    %v1340 = vpack.c.bf16 %v1240, %v1238
    %v1341 = vpack.c.bf16 %v1241, %v1239
    %v1342 = vpack.c.bf16 %v1244, %v1242
    %v1343 = vpack.c.bf16 %v1245, %v1243
    %v1344 = vpack.c.bf16 %v1248, %v1246
    %v1345 = vpack.c.bf16 %v1249, %v1247
    %v1346 = vpack.c.bf16 %v1252, %v1250
    %v1347 = vpack.c.bf16 %v1253, %v1251
    %v1348 = vpack.c.bf16 %v1256, %v1254
    %v1349 = vpack.c.bf16 %v1257, %v1255
    %v1350 = vpack.c.bf16 %v1260, %v1258
    %v1351 = vpack.c.bf16 %v1261, %v1259
    %v1352 = vpack.c.bf16 %v1264, %v1262
    %v1353 = vpack.c.bf16 %v1265, %v1263
    %v1354 = vpack.c.bf16 %v1268, %v1266
    %v1355 = vpack.c.bf16 %v1269, %v1267
    %v1356 = vpack.c.bf16 %v1272, %v1270
    %v1357 = vpack.c.bf16 %v1273, %v1271
    %v1358 = vpack.c.bf16 %v1276, %v1274
    %v1359 = vpack.c.bf16 %v1277, %v1275
    %v1360 = vpack.c.bf16 %v1280, %v1278
    %v1361 = vpack.c.bf16 %v1281, %v1279
    %v1362 = vpack.c.bf16 %v1284, %v1282
    %v1363 = vpack.c.bf16 %v1285, %v1283
    %v1364 = vpack.c.bf16 %v1288, %v1286
    %v1365 = vpack.c.bf16 %v1289, %v1287
    %v1366 = vpack.c.bf16 %v1292, %v1290
    %v1367 = vpack.c.bf16 %v1293, %v1291
    %v1368 = vpack.c.bf16 %v1296, %v1294
    %v1369 = vpack.c.bf16 %v1297, %v1295
    %v1370 = vpack.c.bf16 %v1300, %v1298
    %v1371 = vpack.c.bf16 %v1301, %v1299
    %v1372 = vpack.c.bf16 %v1304, %v1302
    %v1373 = vpack.c.bf16 %v1305, %v1303
    %v1374 = vpack.c.bf16 %v1308, %v1306
    %v1375 = vpack.c.bf16 %v1309, %v1307
    %v1376 = vpack.c.bf16 %v1312, %v1310
    %v1377 = vpack.c.bf16 %v1313, %v1311
    %v1379 = vlaneseq
    %v1380 = vshrl.u32 %v1379, 7
    %v1381 = vsub.s32 0, %v1380
    %v1382 = vrot.slane %v152, %v1381
    %v1416 = vunpack.c.l.b16 %v120
    %v1417 = vunpack.c.l.b16 %v121
    %v1418 = vunpack.c.l.b16 %v122
    %v1419 = vunpack.c.l.b16 %v123
    %v1420 = vunpack.c.l.b16 %v124
    %v1421 = vunpack.c.l.b16 %v125
    %v1422 = vunpack.c.l.b16 %v126
    %v1423 = vunpack.c.l.b16 %v127
    %v1424 = vunpack.c.l.b16 %v128
    %v1425 = vunpack.c.l.b16 %v129
    %v1426 = vunpack.c.l.b16 %v130
    %v1427 = vunpack.c.l.b16 %v131
    %v1428 = vunpack.c.l.b16 %v132
    %v1429 = vunpack.c.l.b16 %v133
    %v1430 = vunpack.c.l.b16 %v134
    %v1431 = vunpack.c.l.b16 %v135
    %v1432 = vunpack.c.l.b16 %v136
    %v1433 = vunpack.c.l.b16 %v137
    %v1434 = vunpack.c.l.b16 %v138
    %v1435 = vunpack.c.l.b16 %v139
    %v1436 = vunpack.c.l.b16 %v140
    %v1437 = vunpack.c.l.b16 %v141
    %v1438 = vunpack.c.l.b16 %v142
    %v1439 = vunpack.c.l.b16 %v143
    %v1440 = vunpack.c.l.b16 %v144
    %v1441 = vunpack.c.l.b16 %v145
    %v1442 = vunpack.c.l.b16 %v146
    %v1443 = vunpack.c.l.b16 %v147
    %v1444 = vunpack.c.l.b16 %v148
    %v1445 = vunpack.c.l.b16 %v149
    %v1446 = vunpack.c.l.b16 %v150
    %v1447 = vunpack.c.l.b16 %v151
    %v1448 = vpack.c.b16 %v1417, %v1416
    %v1449 = vpack.c.b16 %v1419, %v1418
    %v1450 = vpack.c.b16 %v1421, %v1420
    %v1451 = vpack.c.b16 %v1423, %v1422
    %v1452 = vpack.c.b16 %v1425, %v1424
    %v1453 = vpack.c.b16 %v1427, %v1426
    %v1454 = vpack.c.b16 %v1429, %v1428
    %v1455 = vpack.c.b16 %v1431, %v1430
    %v1456 = vpack.c.b16 %v1433, %v1432
    %v1457 = vpack.c.b16 %v1435, %v1434
    %v1458 = vpack.c.b16 %v1437, %v1436
    %v1459 = vpack.c.b16 %v1439, %v1438
    %v1460 = vpack.c.b16 %v1441, %v1440
    %v1461 = vpack.c.b16 %v1443, %v1442
    %v1462 = vpack.c.b16 %v1445, %v1444
    %v1463 = vpack.c.b16 %v1447, %v1446
    %1480 = vmatprep.subr.bf16.mxu0 0
    %1481 = vmatpush1.bf16.msra.mxu0 %v1455
    %1482 = vmatprep.subr.bf16.mxu0 0
    %1483 = vmatpush1.bf16.msra.mxu0 %v1454
    %1484 = vmatprep.subr.bf16.mxu0 0
    %1485 = vmatpush1.bf16.msra.mxu0 %v1453
    %1486 = vmatprep.subr.bf16.mxu0 0
    %1487 = vmatpush1.bf16.msra.mxu0 %v1452
    %1488 = vmatprep.subr.bf16.mxu0 0
    %1489 = vmatpush1.bf16.msra.mxu0 %v1451
    %1490 = vmatprep.subr.bf16.mxu0 0
    %1491 = vmatpush1.bf16.msra.mxu0 %v1450
    %1492 = vmatprep.subr.bf16.mxu0 0
    %1493 = vmatpush1.bf16.msra.mxu0 %v1449
    %1494 = vmatprep.subr.bf16.mxu0 0
    %1495 = vmatpush1.bf16.msra.mxu0 %v1448
    %1496 = vmatprep.subr.bf16.mxu0 0
    %1497 = vmatpush2.bf16.msra.mxu0 %v1463
    %1498 = vmatprep.subr.bf16.mxu0 0
    %1499 = vmatpush2.bf16.msra.mxu0 %v1462
    %1500 = vmatprep.subr.bf16.mxu0 0
    %1501 = vmatpush2.bf16.msra.mxu0 %v1461
    %1502 = vmatprep.subr.bf16.mxu0 0
    %1503 = vmatpush2.bf16.msra.mxu0 %v1460
    %1504 = vmatprep.subr.bf16.mxu0 0
    %1505 = vmatpush2.bf16.msra.mxu0 %v1459
    %1506 = vmatprep.subr.bf16.mxu0 0
    %1507 = vmatpush2.bf16.msra.mxu0 %v1458
    %1508 = vmatprep.subr.bf16.mxu0 0
    %1509 = vmatpush2.bf16.msra.mxu0 %v1457
    %1510 = vmatprep.subr.bf16.mxu0 0
    %1511 = vmatpush2.bf16.msra.mxu0 %v1456
    %1512 = vmatprep.mubr.bf16.mxu0 %v1315
    %1513 = vmatmul.mubr.bf16.gmra.mxu0 %v1314
    %v1514 = vpop.f32.mrf.mxu0
    %v1515 = vadd.f32 %v1382, %v1514
    %v1516 = vpop.f32.mrf.mxu0
    %v1517 = vpop.f32.mrf.mxu0
    %v1518 = vadd.f32 %v1382, %v1517
    %v1519 = vpop.f32.mrf.mxu0
    %1520 = vmatprep.mubr.bf16.mxu0 %v1317
    %1521 = vmatmul.mubr.bf16.gmra.mxu0 %v1316
    %v1522 = vpop.f32.mrf.mxu0
    %v1523 = vadd.f32 %v1382, %v1522
    %v1524 = vpop.f32.mrf.mxu0
    %v1525 = vpop.f32.mrf.mxu0
    %v1526 = vadd.f32 %v1382, %v1525
    %v1527 = vpop.f32.mrf.mxu0
    %1528 = vmatprep.mubr.bf16.mxu0 %v1319
    %1529 = vmatmul.mubr.bf16.gmra.mxu0 %v1318
    %v1530 = vpop.f32.mrf.mxu0
    %v1531 = vadd.f32 %v1382, %v1530
    %v1532 = vpop.f32.mrf.mxu0
    %v1533 = vpop.f32.mrf.mxu0
    %v1534 = vadd.f32 %v1382, %v1533
    %v1535 = vpop.f32.mrf.mxu0
    %1536 = vmatprep.mubr.bf16.mxu0 %v1321
    %1537 = vmatmul.mubr.bf16.gmra.mxu0 %v1320
    %v1538 = vpop.f32.mrf.mxu0
    %v1539 = vadd.f32 %v1382, %v1538
    %v1540 = vpop.f32.mrf.mxu0
    %v1541 = vpop.f32.mrf.mxu0
    %v1542 = vadd.f32 %v1382, %v1541
    %v1543 = vpop.f32.mrf.mxu0
    %1544 = vmatprep.mubr.bf16.mxu0 %v1323
    %1545 = vmatmul.mubr.bf16.gmra.mxu0 %v1322
    %v1546 = vpop.f32.mrf.mxu0
    %v1547 = vadd.f32 %v1382, %v1546
    %v1548 = vpop.f32.mrf.mxu0
    %v1549 = vpop.f32.mrf.mxu0
    %v1550 = vadd.f32 %v1382, %v1549
    %v1551 = vpop.f32.mrf.mxu0
    %1552 = vmatprep.mubr.bf16.mxu0 %v1325
    %1553 = vmatmul.mubr.bf16.gmra.mxu0 %v1324
    %v1554 = vpop.f32.mrf.mxu0
    %v1555 = vadd.f32 %v1382, %v1554
    %v1556 = vpop.f32.mrf.mxu0
    %v1557 = vpop.f32.mrf.mxu0
    %v1558 = vadd.f32 %v1382, %v1557
    %v1559 = vpop.f32.mrf.mxu0
    %1560 = vmatprep.mubr.bf16.mxu0 %v1327
    %1561 = vmatmul.mubr.bf16.gmra.mxu0 %v1326
    %v1562 = vpop.f32.mrf.mxu0
    %v1563 = vadd.f32 %v1382, %v1562
    %v1564 = vpop.f32.mrf.mxu0
    %v1565 = vpop.f32.mrf.mxu0
    %v1566 = vadd.f32 %v1382, %v1565
    %v1567 = vpop.f32.mrf.mxu0
    %1568 = vmatprep.mubr.bf16.mxu0 %v1329
    %1569 = vmatmul.mubr.bf16.gmra.mxu0 %v1328
    %v1570 = vpop.f32.mrf.mxu0
    %v1571 = vadd.f32 %v1382, %v1570
    %v1572 = vpop.f32.mrf.mxu0
    %v1573 = vpop.f32.mrf.mxu0
    %v1574 = vadd.f32 %v1382, %v1573
    %v1575 = vpop.f32.mrf.mxu0
    %1576 = vmatprep.mubr.bf16.mxu0 %v1331
    %1577 = vmatmul.mubr.bf16.gmra.mxu0 %v1330
    %v1578 = vpop.f32.mrf.mxu0
    %v1579 = vadd.f32 %v1382, %v1578
    %v1580 = vpop.f32.mrf.mxu0
    %v1581 = vpop.f32.mrf.mxu0
    %v1582 = vadd.f32 %v1382, %v1581
    %v1583 = vpop.f32.mrf.mxu0
    %1584 = vmatprep.mubr.bf16.mxu0 %v1333
    %1585 = vmatmul.mubr.bf16.gmra.mxu0 %v1332
    %v1586 = vpop.f32.mrf.mxu0
    %v1587 = vadd.f32 %v1382, %v1586
    %v1588 = vpop.f32.mrf.mxu0
    %v1589 = vpop.f32.mrf.mxu0
    %v1590 = vadd.f32 %v1382, %v1589
    %v1591 = vpop.f32.mrf.mxu0
    %1592 = vmatprep.mubr.bf16.mxu0 %v1335
    %1593 = vmatmul.mubr.bf16.gmra.mxu0 %v1334
    %v1594 = vpop.f32.mrf.mxu0
    %v1595 = vadd.f32 %v1382, %v1594
    %v1596 = vpop.f32.mrf.mxu0
    %v1597 = vpop.f32.mrf.mxu0
    %v1598 = vadd.f32 %v1382, %v1597
    %v1599 = vpop.f32.mrf.mxu0
    %1600 = vmatprep.mubr.bf16.mxu0 %v1337
    %1601 = vmatmul.mubr.bf16.gmra.mxu0 %v1336
    %v1602 = vpop.f32.mrf.mxu0
    %v1603 = vadd.f32 %v1382, %v1602
    %v1604 = vpop.f32.mrf.mxu0
    %v1605 = vpop.f32.mrf.mxu0
    %v1606 = vadd.f32 %v1382, %v1605
    %v1607 = vpop.f32.mrf.mxu0
    %1608 = vmatprep.mubr.bf16.mxu0 %v1339
    %1609 = vmatmul.mubr.bf16.gmra.mxu0 %v1338
    %v1610 = vpop.f32.mrf.mxu0
    %v1611 = vadd.f32 %v1382, %v1610
    %v1612 = vpop.f32.mrf.mxu0
    %v1613 = vpop.f32.mrf.mxu0
    %v1614 = vadd.f32 %v1382, %v1613
    %v1615 = vpop.f32.mrf.mxu0
    %1616 = vmatprep.mubr.bf16.mxu0 %v1341
    %1617 = vmatmul.mubr.bf16.gmra.mxu0 %v1340
    %v1618 = vpop.f32.mrf.mxu0
    %v1619 = vadd.f32 %v1382, %v1618
    %v1620 = vpop.f32.mrf.mxu0
    %v1621 = vpop.f32.mrf.mxu0
    %v1622 = vadd.f32 %v1382, %v1621
    %v1623 = vpop.f32.mrf.mxu0
    %1624 = vmatprep.mubr.bf16.mxu0 %v1343
    %1625 = vmatmul.mubr.bf16.gmra.mxu0 %v1342
    %v1626 = vpop.f32.mrf.mxu0
    %v1627 = vadd.f32 %v1382, %v1626
    %v1628 = vpop.f32.mrf.mxu0
    %v1629 = vpop.f32.mrf.mxu0
    %v1630 = vadd.f32 %v1382, %v1629
    %v1631 = vpop.f32.mrf.mxu0
    %1632 = vmatprep.mubr.bf16.mxu0 %v1345
    %1633 = vmatmul.mubr.bf16.gmra.mxu0 %v1344
    %v1634 = vpop.f32.mrf.mxu0
    %v1635 = vadd.f32 %v1382, %v1634
    %v1636 = vpop.f32.mrf.mxu0
    %v1637 = vpop.f32.mrf.mxu0
    %v1638 = vadd.f32 %v1382, %v1637
    %v1639 = vpop.f32.mrf.mxu0
    %1640 = vmatprep.mubr.bf16.mxu0 %v1347
    %1641 = vmatmul.mubr.bf16.gmra.mxu0 %v1346
    %v1642 = vpop.f32.mrf.mxu0
    %v1643 = vadd.f32 %v1382, %v1642
    %v1644 = vpop.f32.mrf.mxu0
    %v1645 = vpop.f32.mrf.mxu0
    %v1646 = vadd.f32 %v1382, %v1645
    %v1647 = vpop.f32.mrf.mxu0
    %1648 = vmatprep.mubr.bf16.mxu0 %v1349
    %1649 = vmatmul.mubr.bf16.gmra.mxu0 %v1348
    %v1650 = vpop.f32.mrf.mxu0
    %v1651 = vadd.f32 %v1382, %v1650
    %v1652 = vpop.f32.mrf.mxu0
    %v1653 = vpop.f32.mrf.mxu0
    %v1654 = vadd.f32 %v1382, %v1653
    %v1655 = vpop.f32.mrf.mxu0
    %1656 = vmatprep.mubr.bf16.mxu0 %v1351
    %1657 = vmatmul.mubr.bf16.gmra.mxu0 %v1350
    %v1658 = vpop.f32.mrf.mxu0
    %v1659 = vadd.f32 %v1382, %v1658
    %v1660 = vpop.f32.mrf.mxu0
    %v1661 = vpop.f32.mrf.mxu0
    %v1662 = vadd.f32 %v1382, %v1661
    %v1663 = vpop.f32.mrf.mxu0
    %1664 = vmatprep.mubr.bf16.mxu0 %v1353
    %1665 = vmatmul.mubr.bf16.gmra.mxu0 %v1352
    %v1666 = vpop.f32.mrf.mxu0
    %v1667 = vadd.f32 %v1382, %v1666
    %v1668 = vpop.f32.mrf.mxu0
    %v1669 = vpop.f32.mrf.mxu0
    %v1670 = vadd.f32 %v1382, %v1669
    %v1671 = vpop.f32.mrf.mxu0
    %1672 = vmatprep.mubr.bf16.mxu0 %v1355
    %1673 = vmatmul.mubr.bf16.gmra.mxu0 %v1354
    %v1674 = vpop.f32.mrf.mxu0
    %v1675 = vadd.f32 %v1382, %v1674
    %v1676 = vpop.f32.mrf.mxu0
    %v1677 = vpop.f32.mrf.mxu0
    %v1678 = vadd.f32 %v1382, %v1677
    %v1679 = vpop.f32.mrf.mxu0
    %1680 = vmatprep.mubr.bf16.mxu0 %v1357
    %1681 = vmatmul.mubr.bf16.gmra.mxu0 %v1356
    %v1682 = vpop.f32.mrf.mxu0
    %v1683 = vadd.f32 %v1382, %v1682
    %v1684 = vpop.f32.mrf.mxu0
    %v1685 = vpop.f32.mrf.mxu0
    %v1686 = vadd.f32 %v1382, %v1685
    %v1687 = vpop.f32.mrf.mxu0
    %1688 = vmatprep.mubr.bf16.mxu0 %v1359
    %1689 = vmatmul.mubr.bf16.gmra.mxu0 %v1358
    %v1690 = vpop.f32.mrf.mxu0
    %v1691 = vadd.f32 %v1382, %v1690
    %v1692 = vpop.f32.mrf.mxu0
    %v1693 = vpop.f32.mrf.mxu0
    %v1694 = vadd.f32 %v1382, %v1693
    %v1695 = vpop.f32.mrf.mxu0
    %1696 = vmatprep.mubr.bf16.mxu0 %v1361
    %1697 = vmatmul.mubr.bf16.gmra.mxu0 %v1360
    %v1698 = vpop.f32.mrf.mxu0
    %v1699 = vadd.f32 %v1382, %v1698
    %v1700 = vpop.f32.mrf.mxu0
    %v1701 = vpop.f32.mrf.mxu0
    %v1702 = vadd.f32 %v1382, %v1701
    %v1703 = vpop.f32.mrf.mxu0
    %1704 = vmatprep.mubr.bf16.mxu0 %v1363
    %1705 = vmatmul.mubr.bf16.gmra.mxu0 %v1362
    %v1706 = vpop.f32.mrf.mxu0
    %v1707 = vadd.f32 %v1382, %v1706
    %v1708 = vpop.f32.mrf.mxu0
    %v1709 = vpop.f32.mrf.mxu0
    %v1710 = vadd.f32 %v1382, %v1709
    %v1711 = vpop.f32.mrf.mxu0
    %1712 = vmatprep.mubr.bf16.mxu0 %v1365
    %1713 = vmatmul.mubr.bf16.gmra.mxu0 %v1364
    %v1714 = vpop.f32.mrf.mxu0
    %v1715 = vadd.f32 %v1382, %v1714
    %v1716 = vpop.f32.mrf.mxu0
    %v1717 = vpop.f32.mrf.mxu0
    %v1718 = vadd.f32 %v1382, %v1717
    %v1719 = vpop.f32.mrf.mxu0
    %1720 = vmatprep.mubr.bf16.mxu0 %v1367
    %1721 = vmatmul.mubr.bf16.gmra.mxu0 %v1366
    %v1722 = vpop.f32.mrf.mxu0
    %v1723 = vadd.f32 %v1382, %v1722
    %v1724 = vpop.f32.mrf.mxu0
    %v1725 = vpop.f32.mrf.mxu0
    %v1726 = vadd.f32 %v1382, %v1725
    %v1727 = vpop.f32.mrf.mxu0
    %1728 = vmatprep.mubr.bf16.mxu0 %v1369
    %1729 = vmatmul.mubr.bf16.gmra.mxu0 %v1368
    %v1730 = vpop.f32.mrf.mxu0
    %v1731 = vadd.f32 %v1382, %v1730
    %v1732 = vpop.f32.mrf.mxu0
    %v1733 = vpop.f32.mrf.mxu0
    %v1734 = vadd.f32 %v1382, %v1733
    %v1735 = vpop.f32.mrf.mxu0
    %1736 = vmatprep.mubr.bf16.mxu0 %v1371
    %1737 = vmatmul.mubr.bf16.gmra.mxu0 %v1370
    %v1738 = vpop.f32.mrf.mxu0
    %v1739 = vadd.f32 %v1382, %v1738
    %v1740 = vpop.f32.mrf.mxu0
    %v1741 = vpop.f32.mrf.mxu0
    %v1742 = vadd.f32 %v1382, %v1741
    %v1743 = vpop.f32.mrf.mxu0
    %1744 = vmatprep.mubr.bf16.mxu0 %v1373
    %1745 = vmatmul.mubr.bf16.gmra.mxu0 %v1372
    %v1746 = vpop.f32.mrf.mxu0
    %v1747 = vadd.f32 %v1382, %v1746
    %v1748 = vpop.f32.mrf.mxu0
    %v1749 = vpop.f32.mrf.mxu0
    %v1750 = vadd.f32 %v1382, %v1749
    %v1751 = vpop.f32.mrf.mxu0
    %1752 = vmatprep.mubr.bf16.mxu0 %v1375
    %1753 = vmatmul.mubr.bf16.gmra.mxu0 %v1374
    %v1754 = vpop.f32.mrf.mxu0
    %v1755 = vadd.f32 %v1382, %v1754
    %v1756 = vpop.f32.mrf.mxu0
    %v1757 = vpop.f32.mrf.mxu0
    %v1758 = vadd.f32 %v1382, %v1757
    %v1759 = vpop.f32.mrf.mxu0
    %1760 = vmatprep.mubr.bf16.mxu0 %v1377
    %1761 = vmatmul.mubr.bf16.gmra.mxu0 %v1376
    %v1762 = vpop.f32.mrf.mxu0
    %v1763 = vadd.f32 %v1382, %v1762
    %v1764 = vpop.f32.mrf.mxu0
    %v1765 = vpop.f32.mrf.mxu0
    %v1766 = vadd.f32 %v1382, %v1765
    %v1767 = vpop.f32.mrf.mxu0
    %1768 = vdwg.mxu0
    %v1769 = vmax.f32 %v1515, 0.0
    %v1770 = vmax.f32 %v1518, 0.0
    %v1771 = vmax.f32 %v1523, 0.0
    %v1772 = vmax.f32 %v1526, 0.0
    %v1773 = vmax.f32 %v1531, 0.0
    %v1774 = vmax.f32 %v1534, 0.0
    %v1775 = vmax.f32 %v1539, 0.0
    %v1776 = vmax.f32 %v1542, 0.0
    %v1777 = vmax.f32 %v1547, 0.0
    %v1778 = vmax.f32 %v1550, 0.0
    %v1779 = vmax.f32 %v1555, 0.0
    %v1780 = vmax.f32 %v1558, 0.0
    %v1781 = vmax.f32 %v1563, 0.0
    %v1782 = vmax.f32 %v1566, 0.0
    %v1783 = vmax.f32 %v1571, 0.0
    %v1784 = vmax.f32 %v1574, 0.0
    %v1785 = vmax.f32 %v1579, 0.0
    %v1786 = vmax.f32 %v1582, 0.0
    %v1787 = vmax.f32 %v1587, 0.0
    %v1788 = vmax.f32 %v1590, 0.0
    %v1789 = vmax.f32 %v1595, 0.0
    %v1790 = vmax.f32 %v1598, 0.0
    %v1791 = vmax.f32 %v1603, 0.0
    %v1792 = vmax.f32 %v1606, 0.0
    %v1793 = vmax.f32 %v1611, 0.0
    %v1794 = vmax.f32 %v1614, 0.0
    %v1795 = vmax.f32 %v1619, 0.0
    %v1796 = vmax.f32 %v1622, 0.0
    %v1797 = vmax.f32 %v1627, 0.0
    %v1798 = vmax.f32 %v1630, 0.0
    %v1799 = vmax.f32 %v1635, 0.0
    %v1800 = vmax.f32 %v1638, 0.0
    %v1801 = vmax.f32 %v1643, 0.0
    %v1802 = vmax.f32 %v1646, 0.0
    %v1803 = vmax.f32 %v1651, 0.0
    %v1804 = vmax.f32 %v1654, 0.0
    %v1805 = vmax.f32 %v1659, 0.0
    %v1806 = vmax.f32 %v1662, 0.0
    %v1807 = vmax.f32 %v1667, 0.0
    %v1808 = vmax.f32 %v1670, 0.0
    %v1809 = vmax.f32 %v1675, 0.0
    %v1810 = vmax.f32 %v1678, 0.0
    %v1811 = vmax.f32 %v1683, 0.0
    %v1812 = vmax.f32 %v1686, 0.0
    %v1813 = vmax.f32 %v1691, 0.0
    %v1814 = vmax.f32 %v1694, 0.0
    %v1815 = vmax.f32 %v1699, 0.0
    %v1816 = vmax.f32 %v1702, 0.0
    %v1817 = vmax.f32 %v1707, 0.0
    %v1818 = vmax.f32 %v1710, 0.0
    %v1819 = vmax.f32 %v1715, 0.0
    %v1820 = vmax.f32 %v1718, 0.0
    %v1821 = vmax.f32 %v1723, 0.0
    %v1822 = vmax.f32 %v1726, 0.0
    %v1823 = vmax.f32 %v1731, 0.0
    %v1824 = vmax.f32 %v1734, 0.0
    %v1825 = vmax.f32 %v1739, 0.0
    %v1826 = vmax.f32 %v1742, 0.0
    %v1827 = vmax.f32 %v1747, 0.0
    %v1828 = vmax.f32 %v1750, 0.0
    %v1829 = vmax.f32 %v1755, 0.0
    %v1830 = vmax.f32 %v1758, 0.0
    %v1831 = vmax.f32 %v1763, 0.0
    %v1832 = vmax.f32 %v1766, 0.0
    %v1833 = vpack.c.bf16 %v1770, %v1769
    %v1834 = vpack.c.bf16 %v1772, %v1771
    %v1835 = vpack.c.bf16 %v1774, %v1773
    %v1836 = vpack.c.bf16 %v1776, %v1775
    %v1837 = vpack.c.bf16 %v1778, %v1777
    %v1838 = vpack.c.bf16 %v1780, %v1779
    %v1839 = vpack.c.bf16 %v1782, %v1781
    %v1840 = vpack.c.bf16 %v1784, %v1783
    %v1841 = vpack.c.bf16 %v1786, %v1785
    %v1842 = vpack.c.bf16 %v1788, %v1787
    %v1843 = vpack.c.bf16 %v1790, %v1789
    %v1844 = vpack.c.bf16 %v1792, %v1791
    %v1845 = vpack.c.bf16 %v1794, %v1793
    %v1846 = vpack.c.bf16 %v1796, %v1795
    %v1847 = vpack.c.bf16 %v1798, %v1797
    %v1848 = vpack.c.bf16 %v1800, %v1799
    %v1849 = vpack.c.bf16 %v1802, %v1801
    %v1850 = vpack.c.bf16 %v1804, %v1803
    %v1851 = vpack.c.bf16 %v1806, %v1805
    %v1852 = vpack.c.bf16 %v1808, %v1807
    %v1853 = vpack.c.bf16 %v1810, %v1809
    %v1854 = vpack.c.bf16 %v1812, %v1811
    %v1855 = vpack.c.bf16 %v1814, %v1813
    %v1856 = vpack.c.bf16 %v1816, %v1815
    %v1857 = vpack.c.bf16 %v1818, %v1817
    %v1858 = vpack.c.bf16 %v1820, %v1819
    %v1859 = vpack.c.bf16 %v1822, %v1821
    %v1860 = vpack.c.bf16 %v1824, %v1823
    %v1861 = vpack.c.bf16 %v1826, %v1825
    %v1862 = vpack.c.bf16 %v1828, %v1827
    %v1863 = vpack.c.bf16 %v1830, %v1829
    %v1864 = vpack.c.bf16 %v1832, %v1831
    %v1866 = vlaneseq
    %v1867 = vshrl.u32 %v1866, 7
    %v1868 = vsub.s32 0, %v1867
    %v1869 = vrot.slane %v217, %v1868
    %v1870 = vlaneseq
    %v1871 = vshrl.u32 %v1870, 7
    %v1872 = vsub.s32 1, %v1871
    %v1873 = vrot.slane %v217, %v1872
    %v1874 = vlaneseq
    %v1875 = vshrl.u32 %v1874, 7
    %v1876 = vsub.s32 2, %v1875
    %v1877 = vrot.slane %v217, %v1876
    %v1878 = vlaneseq
    %v1879 = vshrl.u32 %v1878, 7
    %v1880 = vsub.s32 3, %v1879
    %v1881 = vrot.slane %v217, %v1880
    %v1882 = vlaneseq
    %v1883 = vshrl.u32 %v1882, 7
    %v1884 = vsub.s32 4, %v1883
    %v1885 = vrot.slane %v217, %v1884
    %v1886 = vlaneseq
    %v1887 = vshrl.u32 %v1886, 7
    %v1888 = vsub.s32 5, %v1887
    %v1889 = vrot.slane %v217, %v1888
    %v1890 = vlaneseq
    %v1891 = vshrl.u32 %v1890, 7
    %v1892 = vsub.s32 6, %v1891
    %v1893 = vrot.slane %v217, %v1892
    %v1894 = vlaneseq
    %v1895 = vshrl.u32 %v1894, 7
    %v1896 = vsub.s32 7, %v1895
    %v1897 = vrot.slane %v217, %v1896
    %v1970 = vunpack.c.l.b16 %v153
    %v1971 = vunpack.c.h.b16 %v153
    %v1972 = vunpack.c.l.b16 %v154
    %v1973 = vunpack.c.h.b16 %v154
    %v1974 = vunpack.c.l.b16 %v155
    %v1975 = vunpack.c.h.b16 %v155
    %v1976 = vunpack.c.l.b16 %v156
    %v1977 = vunpack.c.h.b16 %v156
    %v1978 = vunpack.c.l.b16 %v157
    %v1979 = vunpack.c.h.b16 %v157
    %v1980 = vunpack.c.l.b16 %v158
    %v1981 = vunpack.c.h.b16 %v158
    %v1982 = vunpack.c.l.b16 %v159
    %v1983 = vunpack.c.h.b16 %v159
    %v1984 = vunpack.c.l.b16 %v160
    %v1985 = vunpack.c.h.b16 %v160
    %v1986 = vunpack.c.l.b16 %v161
    %v1987 = vunpack.c.h.b16 %v161
    %v1988 = vunpack.c.l.b16 %v162
    %v1989 = vunpack.c.h.b16 %v162
    %v1990 = vunpack.c.l.b16 %v163
    %v1991 = vunpack.c.h.b16 %v163
    %v1992 = vunpack.c.l.b16 %v164
    %v1993 = vunpack.c.h.b16 %v164
    %v1994 = vunpack.c.l.b16 %v165
    %v1995 = vunpack.c.h.b16 %v165
    %v1996 = vunpack.c.l.b16 %v166
    %v1997 = vunpack.c.h.b16 %v166
    %v1998 = vunpack.c.l.b16 %v167
    %v1999 = vunpack.c.h.b16 %v167
    %v2000 = vunpack.c.l.b16 %v168
    %v2001 = vunpack.c.h.b16 %v168
    %v2002 = vunpack.c.l.b16 %v169
    %v2003 = vunpack.c.h.b16 %v169
    %v2004 = vunpack.c.l.b16 %v170
    %v2005 = vunpack.c.h.b16 %v170
    %v2006 = vunpack.c.l.b16 %v171
    %v2007 = vunpack.c.h.b16 %v171
    %v2008 = vunpack.c.l.b16 %v172
    %v2009 = vunpack.c.h.b16 %v172
    %v2010 = vunpack.c.l.b16 %v173
    %v2011 = vunpack.c.h.b16 %v173
    %v2012 = vunpack.c.l.b16 %v174
    %v2013 = vunpack.c.h.b16 %v174
    %v2014 = vunpack.c.l.b16 %v175
    %v2015 = vunpack.c.h.b16 %v175
    %v2016 = vunpack.c.l.b16 %v176
    %v2017 = vunpack.c.h.b16 %v176
    %v2018 = vunpack.c.l.b16 %v177
    %v2019 = vunpack.c.h.b16 %v177
    %v2020 = vunpack.c.l.b16 %v178
    %v2021 = vunpack.c.h.b16 %v178
    %v2022 = vunpack.c.l.b16 %v179
    %v2023 = vunpack.c.h.b16 %v179
    %v2024 = vunpack.c.l.b16 %v180
    %v2025 = vunpack.c.h.b16 %v180
    %v2026 = vunpack.c.l.b16 %v181
    %v2027 = vunpack.c.h.b16 %v181
    %v2028 = vunpack.c.l.b16 %v182
    %v2029 = vunpack.c.h.b16 %v182
    %v2030 = vunpack.c.l.b16 %v183
    %v2031 = vunpack.c.h.b16 %v183
    %v2032 = vunpack.c.l.b16 %v184
    %v2033 = vunpack.c.h.b16 %v184
    %v2034 = vunpack.c.l.b16 %v185
    %v2035 = vunpack.c.h.b16 %v185
    %v2036 = vunpack.c.l.b16 %v186
    %v2037 = vunpack.c.h.b16 %v186
    %v2038 = vunpack.c.l.b16 %v187
    %v2039 = vunpack.c.h.b16 %v187
    %v2040 = vunpack.c.l.b16 %v188
    %v2041 = vunpack.c.h.b16 %v188
    %v2042 = vunpack.c.l.b16 %v189
    %v2043 = vunpack.c.h.b16 %v189
    %v2044 = vunpack.c.l.b16 %v190
    %v2045 = vunpack.c.h.b16 %v190
    %v2046 = vunpack.c.l.b16 %v191
    %v2047 = vunpack.c.h.b16 %v191
    %v2048 = vunpack.c.l.b16 %v192
    %v2049 = vunpack.c.h.b16 %v192
    %v2050 = vunpack.c.l.b16 %v193
    %v2051 = vunpack.c.h.b16 %v193
    %v2052 = vunpack.c.l.b16 %v194
    %v2053 = vunpack.c.h.b16 %v194
    %v2054 = vunpack.c.l.b16 %v195
    %v2055 = vunpack.c.h.b16 %v195
    %v2056 = vunpack.c.l.b16 %v196
    %v2057 = vunpack.c.h.b16 %v196
    %v2058 = vunpack.c.l.b16 %v197
    %v2059 = vunpack.c.h.b16 %v197
    %v2060 = vunpack.c.l.b16 %v198
    %v2061 = vunpack.c.h.b16 %v198
    %v2062 = vunpack.c.l.b16 %v199
    %v2063 = vunpack.c.h.b16 %v199
    %v2064 = vunpack.c.l.b16 %v200
    %v2065 = vunpack.c.h.b16 %v200
    %v2066 = vunpack.c.l.b16 %v201
    %v2067 = vunpack.c.h.b16 %v201
    %v2068 = vunpack.c.l.b16 %v202
    %v2069 = vunpack.c.h.b16 %v202
    %v2070 = vunpack.c.l.b16 %v203
    %v2071 = vunpack.c.h.b16 %v203
    %v2072 = vunpack.c.l.b16 %v204
    %v2073 = vunpack.c.h.b16 %v204
    %v2074 = vunpack.c.l.b16 %v205
    %v2075 = vunpack.c.h.b16 %v205
    %v2076 = vunpack.c.l.b16 %v206
    %v2077 = vunpack.c.h.b16 %v206
    %v2078 = vunpack.c.l.b16 %v207
    %v2079 = vunpack.c.h.b16 %v207
    %v2080 = vunpack.c.l.b16 %v208
    %v2081 = vunpack.c.h.b16 %v208
    %v2082 = vunpack.c.l.b16 %v209
    %v2083 = vunpack.c.h.b16 %v209
    %v2084 = vunpack.c.l.b16 %v210
    %v2085 = vunpack.c.h.b16 %v210
    %v2086 = vunpack.c.l.b16 %v211
    %v2087 = vunpack.c.h.b16 %v211
    %v2088 = vunpack.c.l.b16 %v212
    %v2089 = vunpack.c.h.b16 %v212
    %v2090 = vunpack.c.l.b16 %v213
    %v2091 = vunpack.c.h.b16 %v213
    %v2092 = vunpack.c.l.b16 %v214
    %v2093 = vunpack.c.h.b16 %v214
    %v2094 = vunpack.c.l.b16 %v215
    %v2095 = vunpack.c.h.b16 %v215
    %v2096 = vunpack.c.l.b16 %v216
    %v2097 = vunpack.c.h.b16 %v216
    %v2098 = vpack.c.b16 %v1978, %v1970
    %v2099 = vpack.c.b16 %v1979, %v1971
    %v2100 = vpack.c.b16 %v1980, %v1972
    %v2101 = vpack.c.b16 %v1981, %v1973
    %v2102 = vpack.c.b16 %v1982, %v1974
    %v2103 = vpack.c.b16 %v1983, %v1975
    %v2104 = vpack.c.b16 %v1984, %v1976
    %v2105 = vpack.c.b16 %v1985, %v1977
    %v2106 = vpack.c.b16 %v1994, %v1986
    %v2107 = vpack.c.b16 %v1995, %v1987
    %v2108 = vpack.c.b16 %v1996, %v1988
    %v2109 = vpack.c.b16 %v1997, %v1989
    %v2110 = vpack.c.b16 %v1998, %v1990
    %v2111 = vpack.c.b16 %v1999, %v1991
    %v2112 = vpack.c.b16 %v2000, %v1992
    %v2113 = vpack.c.b16 %v2001, %v1993
    %v2114 = vpack.c.b16 %v2010, %v2002
    %v2115 = vpack.c.b16 %v2011, %v2003
    %v2116 = vpack.c.b16 %v2012, %v2004
    %v2117 = vpack.c.b16 %v2013, %v2005
    %v2118 = vpack.c.b16 %v2014, %v2006
    %v2119 = vpack.c.b16 %v2015, %v2007
    %v2120 = vpack.c.b16 %v2016, %v2008
    %v2121 = vpack.c.b16 %v2017, %v2009
    %v2122 = vpack.c.b16 %v2026, %v2018
    %v2123 = vpack.c.b16 %v2027, %v2019
    %v2124 = vpack.c.b16 %v2028, %v2020
    %v2125 = vpack.c.b16 %v2029, %v2021
    %v2126 = vpack.c.b16 %v2030, %v2022
    %v2127 = vpack.c.b16 %v2031, %v2023
    %v2128 = vpack.c.b16 %v2032, %v2024
    %v2129 = vpack.c.b16 %v2033, %v2025
    %v2130 = vpack.c.b16 %v2042, %v2034
    %v2131 = vpack.c.b16 %v2043, %v2035
    %v2132 = vpack.c.b16 %v2044, %v2036
    %v2133 = vpack.c.b16 %v2045, %v2037
    %v2134 = vpack.c.b16 %v2046, %v2038
    %v2135 = vpack.c.b16 %v2047, %v2039
    %v2136 = vpack.c.b16 %v2048, %v2040
    %v2137 = vpack.c.b16 %v2049, %v2041
    %v2138 = vpack.c.b16 %v2058, %v2050
    %v2139 = vpack.c.b16 %v2059, %v2051
    %v2140 = vpack.c.b16 %v2060, %v2052
    %v2141 = vpack.c.b16 %v2061, %v2053
    %v2142 = vpack.c.b16 %v2062, %v2054
    %v2143 = vpack.c.b16 %v2063, %v2055
    %v2144 = vpack.c.b16 %v2064, %v2056
    %v2145 = vpack.c.b16 %v2065, %v2057
    %v2146 = vpack.c.b16 %v2074, %v2066
    %v2147 = vpack.c.b16 %v2075, %v2067
    %v2148 = vpack.c.b16 %v2076, %v2068
    %v2149 = vpack.c.b16 %v2077, %v2069
    %v2150 = vpack.c.b16 %v2078, %v2070
    %v2151 = vpack.c.b16 %v2079, %v2071
    %v2152 = vpack.c.b16 %v2080, %v2072
    %v2153 = vpack.c.b16 %v2081, %v2073
    %v2154 = vpack.c.b16 %v2090, %v2082
    %v2155 = vpack.c.b16 %v2091, %v2083
    %v2156 = vpack.c.b16 %v2092, %v2084
    %v2157 = vpack.c.b16 %v2093, %v2085
    %v2158 = vpack.c.b16 %v2094, %v2086
    %v2159 = vpack.c.b16 %v2095, %v2087
    %v2160 = vpack.c.b16 %v2096, %v2088
    %v2161 = vpack.c.b16 %v2097, %v2089
    %2226 = vmatprep.subr.bf16.mxu0 %v2155
    %2227 = vmatpush1.bf16.msra.mxu0 %v2154
    %2228 = vmatprep.subr.bf16.mxu0 %v2147
    %2229 = vmatpush1.bf16.msra.mxu0 %v2146
    %2230 = vmatprep.subr.bf16.mxu0 %v2139
    %2231 = vmatpush1.bf16.msra.mxu0 %v2138
    %2232 = vmatprep.subr.bf16.mxu0 %v2131
    %2233 = vmatpush1.bf16.msra.mxu0 %v2130
    %2234 = vmatprep.subr.bf16.mxu0 %v2123
    %2235 = vmatpush1.bf16.msra.mxu0 %v2122
    %2236 = vmatprep.subr.bf16.mxu0 %v2115
    %2237 = vmatpush1.bf16.msra.mxu0 %v2114
    %2238 = vmatprep.subr.bf16.mxu0 %v2107
    %2239 = vmatpush1.bf16.msra.mxu0 %v2106
    %2240 = vmatprep.subr.bf16.mxu0 %v2099
    %2241 = vmatpush1.bf16.msra.mxu0 %v2098
    %2242 = vmatprep.subr.bf16.mxu0 0
    %2243 = vmatpush2.bf16.msra.mxu0 0
    %2244 = vmatprep.subr.bf16.mxu0 0
    %2245 = vmatpush2.bf16.msra.mxu0 0
    %2246 = vmatprep.subr.bf16.mxu0 0
    %2247 = vmatpush2.bf16.msra.mxu0 0
    %2248 = vmatprep.subr.bf16.mxu0 0
    %2249 = vmatpush2.bf16.msra.mxu0 0
    %2250 = vmatprep.subr.bf16.mxu0 0
    %2251 = vmatpush2.bf16.msra.mxu0 0
    %2252 = vmatprep.subr.bf16.mxu0 0
    %2253 = vmatpush2.bf16.msra.mxu0 0
    %2254 = vmatprep.subr.bf16.mxu0 0
    %2255 = vmatpush2.bf16.msra.mxu0 0
    %2256 = vmatprep.subr.bf16.mxu0 0
    %2257 = vmatpush2.bf16.msra.mxu0 0
    %2258 = vmatprep.mubr.bf16.mxu0 0
    %2259 = vmatmul.mubr.bf16.gmra.mxu0 %v1833
    %v2260 = vpop.f32.mrf.mxu0
    %v2261 = vadd.f32 %v1869, %v2260
    %v2262 = vpop.f32.mrf.mxu0
    %v2263 = vadd.f32 %v1873, %v2262
    %v2264 = vpop.f32.mrf.mxu0
    %v2265 = vadd.f32 %v1869, %v2264
    %v2266 = vpop.f32.mrf.mxu0
    %v2267 = vadd.f32 %v1873, %v2266
    %2268 = vmatprep.mubr.bf16.mxu0 0
    %2269 = vmatmul.mubr.bf16.gmra.mxu0 %v1834
    %v2270 = vpop.f32.mrf.mxu0
    %v2271 = vadd.f32 %v1869, %v2270
    %v2272 = vpop.f32.mrf.mxu0
    %v2273 = vadd.f32 %v1873, %v2272
    %v2274 = vpop.f32.mrf.mxu0
    %v2275 = vadd.f32 %v1869, %v2274
    %v2276 = vpop.f32.mrf.mxu0
    %v2277 = vadd.f32 %v1873, %v2276
    %2278 = vmatprep.mubr.bf16.mxu0 0
    %2279 = vmatmul.mubr.bf16.gmra.mxu0 %v1835
    %v2280 = vpop.f32.mrf.mxu0
    %v2281 = vadd.f32 %v1869, %v2280
    %v2282 = vpop.f32.mrf.mxu0
    %v2283 = vadd.f32 %v1873, %v2282
    %v2284 = vpop.f32.mrf.mxu0
    %v2285 = vadd.f32 %v1869, %v2284
    %v2286 = vpop.f32.mrf.mxu0
    %v2287 = vadd.f32 %v1873, %v2286
    %2288 = vmatprep.mubr.bf16.mxu0 0
    %2289 = vmatmul.mubr.bf16.gmra.mxu0 %v1836
    %v2290 = vpop.f32.mrf.mxu0
    %v2291 = vadd.f32 %v1869, %v2290
    %v2292 = vpop.f32.mrf.mxu0
    %v2293 = vadd.f32 %v1873, %v2292
    %v2294 = vpop.f32.mrf.mxu0
    %v2295 = vadd.f32 %v1869, %v2294
    %v2296 = vpop.f32.mrf.mxu0
    %v2297 = vadd.f32 %v1873, %v2296
    %2298 = vmatprep.mubr.bf16.mxu0 0
    %2299 = vmatmul.mubr.bf16.gmra.mxu0 %v1837
    %v2300 = vpop.f32.mrf.mxu0
    %v2301 = vadd.f32 %v1869, %v2300
    %v2302 = vpop.f32.mrf.mxu0
    %v2303 = vadd.f32 %v1873, %v2302
    %v2304 = vpop.f32.mrf.mxu0
    %v2305 = vadd.f32 %v1869, %v2304
    %v2306 = vpop.f32.mrf.mxu0
    %v2307 = vadd.f32 %v1873, %v2306
    %2308 = vmatprep.mubr.bf16.mxu0 0
    %2309 = vmatmul.mubr.bf16.gmra.mxu0 %v1838
    %v2310 = vpop.f32.mrf.mxu0
    %v2311 = vadd.f32 %v1869, %v2310
    %v2312 = vpop.f32.mrf.mxu0
    %v2313 = vadd.f32 %v1873, %v2312
    %v2314 = vpop.f32.mrf.mxu0
    %v2315 = vadd.f32 %v1869, %v2314
    %v2316 = vpop.f32.mrf.mxu0
    %v2317 = vadd.f32 %v1873, %v2316
    %2318 = vmatprep.mubr.bf16.mxu0 0
    %2319 = vmatmul.mubr.bf16.gmra.mxu0 %v1839
    %v2320 = vpop.f32.mrf.mxu0
    %v2321 = vadd.f32 %v1869, %v2320
    %v2322 = vpop.f32.mrf.mxu0
    %v2323 = vadd.f32 %v1873, %v2322
    %v2324 = vpop.f32.mrf.mxu0
    %v2325 = vadd.f32 %v1869, %v2324
    %v2326 = vpop.f32.mrf.mxu0
    %v2327 = vadd.f32 %v1873, %v2326
    %2328 = vmatprep.mubr.bf16.mxu0 0
    %2329 = vmatmul.mubr.bf16.gmra.mxu0 %v1840
    %v2330 = vpop.f32.mrf.mxu0
    %v2331 = vadd.f32 %v1869, %v2330
    %v2332 = vpop.f32.mrf.mxu0
    %v2333 = vadd.f32 %v1873, %v2332
    %v2334 = vpop.f32.mrf.mxu0
    %v2335 = vadd.f32 %v1869, %v2334
    %v2336 = vpop.f32.mrf.mxu0
    %v2337 = vadd.f32 %v1873, %v2336
    %2338 = vmatprep.mubr.bf16.mxu0 0
    %2339 = vmatmul.mubr.bf16.gmra.mxu0 %v1841
    %v2340 = vpop.f32.mrf.mxu0
    %v2341 = vadd.f32 %v1869, %v2340
    %v2342 = vpop.f32.mrf.mxu0
    %v2343 = vadd.f32 %v1873, %v2342
    %v2344 = vpop.f32.mrf.mxu0
    %v2345 = vadd.f32 %v1869, %v2344
    %v2346 = vpop.f32.mrf.mxu0
    %v2347 = vadd.f32 %v1873, %v2346
    %2348 = vmatprep.mubr.bf16.mxu0 0
    %2349 = vmatmul.mubr.bf16.gmra.mxu0 %v1842
    %v2350 = vpop.f32.mrf.mxu0
    %v2351 = vadd.f32 %v1869, %v2350
    %v2352 = vpop.f32.mrf.mxu0
    %v2353 = vadd.f32 %v1873, %v2352
    %v2354 = vpop.f32.mrf.mxu0
    %v2355 = vadd.f32 %v1869, %v2354
    %v2356 = vpop.f32.mrf.mxu0
    %v2357 = vadd.f32 %v1873, %v2356
    %2358 = vmatprep.mubr.bf16.mxu0 0
    %2359 = vmatmul.mubr.bf16.gmra.mxu0 %v1843
    %v2360 = vpop.f32.mrf.mxu0
    %v2361 = vadd.f32 %v1869, %v2360
    %v2362 = vpop.f32.mrf.mxu0
    %v2363 = vadd.f32 %v1873, %v2362
    %v2364 = vpop.f32.mrf.mxu0
    %v2365 = vadd.f32 %v1869, %v2364
    %v2366 = vpop.f32.mrf.mxu0
    %v2367 = vadd.f32 %v1873, %v2366
    %2368 = vmatprep.mubr.bf16.mxu0 0
    %2369 = vmatmul.mubr.bf16.gmra.mxu0 %v1844
    %v2370 = vpop.f32.mrf.mxu0
    %v2371 = vadd.f32 %v1869, %v2370
    %v2372 = vpop.f32.mrf.mxu0
    %v2373 = vadd.f32 %v1873, %v2372
    %v2374 = vpop.f32.mrf.mxu0
    %v2375 = vadd.f32 %v1869, %v2374
    %v2376 = vpop.f32.mrf.mxu0
    %v2377 = vadd.f32 %v1873, %v2376
    %2378 = vmatprep.mubr.bf16.mxu0 0
    %2379 = vmatmul.mubr.bf16.gmra.mxu0 %v1845
    %v2380 = vpop.f32.mrf.mxu0
    %v2381 = vadd.f32 %v1869, %v2380
    %v2382 = vpop.f32.mrf.mxu0
    %v2383 = vadd.f32 %v1873, %v2382
    %v2384 = vpop.f32.mrf.mxu0
    %v2385 = vadd.f32 %v1869, %v2384
    %v2386 = vpop.f32.mrf.mxu0
    %v2387 = vadd.f32 %v1873, %v2386
    %2388 = vmatprep.mubr.bf16.mxu0 0
    %2389 = vmatmul.mubr.bf16.gmra.mxu0 %v1846
    %v2390 = vpop.f32.mrf.mxu0
    %v2391 = vadd.f32 %v1869, %v2390
    %v2392 = vpop.f32.mrf.mxu0
    %v2393 = vadd.f32 %v1873, %v2392
    %v2394 = vpop.f32.mrf.mxu0
    %v2395 = vadd.f32 %v1869, %v2394
    %v2396 = vpop.f32.mrf.mxu0
    %v2397 = vadd.f32 %v1873, %v2396
    %2398 = vmatprep.mubr.bf16.mxu0 0
    %2399 = vmatmul.mubr.bf16.gmra.mxu0 %v1847
    %v2400 = vpop.f32.mrf.mxu0
    %v2401 = vadd.f32 %v1869, %v2400
    %v2402 = vpop.f32.mrf.mxu0
    %v2403 = vadd.f32 %v1873, %v2402
    %v2404 = vpop.f32.mrf.mxu0
    %v2405 = vadd.f32 %v1869, %v2404
    %v2406 = vpop.f32.mrf.mxu0
    %v2407 = vadd.f32 %v1873, %v2406
    %2408 = vmatprep.mubr.bf16.mxu0 0
    %2409 = vmatmul.mubr.bf16.gmra.mxu0 %v1848
    %v2410 = vpop.f32.mrf.mxu0
    %v2411 = vadd.f32 %v1869, %v2410
    %v2412 = vpop.f32.mrf.mxu0
    %v2413 = vadd.f32 %v1873, %v2412
    %v2414 = vpop.f32.mrf.mxu0
    %v2415 = vadd.f32 %v1869, %v2414
    %v2416 = vpop.f32.mrf.mxu0
    %v2417 = vadd.f32 %v1873, %v2416
    %2418 = vmatprep.mubr.bf16.mxu0 0
    %2419 = vmatmul.mubr.bf16.gmra.mxu0 %v1849
    %v2420 = vpop.f32.mrf.mxu0
    %v2421 = vadd.f32 %v1869, %v2420
    %v2422 = vpop.f32.mrf.mxu0
    %v2423 = vadd.f32 %v1873, %v2422
    %v2424 = vpop.f32.mrf.mxu0
    %v2425 = vadd.f32 %v1869, %v2424
    %v2426 = vpop.f32.mrf.mxu0
    %v2427 = vadd.f32 %v1873, %v2426
    %2428 = vmatprep.mubr.bf16.mxu0 0
    %2429 = vmatmul.mubr.bf16.gmra.mxu0 %v1850
    %v2430 = vpop.f32.mrf.mxu0
    %v2431 = vadd.f32 %v1869, %v2430
    %v2432 = vpop.f32.mrf.mxu0
    %v2433 = vadd.f32 %v1873, %v2432
    %v2434 = vpop.f32.mrf.mxu0
    %v2435 = vadd.f32 %v1869, %v2434
    %v2436 = vpop.f32.mrf.mxu0
    %v2437 = vadd.f32 %v1873, %v2436
    %2438 = vmatprep.mubr.bf16.mxu0 0
    %2439 = vmatmul.mubr.bf16.gmra.mxu0 %v1851
    %v2440 = vpop.f32.mrf.mxu0
    %v2441 = vadd.f32 %v1869, %v2440
    %v2442 = vpop.f32.mrf.mxu0
    %v2443 = vadd.f32 %v1873, %v2442
    %v2444 = vpop.f32.mrf.mxu0
    %v2445 = vadd.f32 %v1869, %v2444
    %v2446 = vpop.f32.mrf.mxu0
    %v2447 = vadd.f32 %v1873, %v2446
    %2448 = vmatprep.mubr.bf16.mxu0 0
    %2449 = vmatmul.mubr.bf16.gmra.mxu0 %v1852
    %v2450 = vpop.f32.mrf.mxu0
    %v2451 = vadd.f32 %v1869, %v2450
    %v2452 = vpop.f32.mrf.mxu0
    %v2453 = vadd.f32 %v1873, %v2452
    %v2454 = vpop.f32.mrf.mxu0
    %v2455 = vadd.f32 %v1869, %v2454
    %v2456 = vpop.f32.mrf.mxu0
    %v2457 = vadd.f32 %v1873, %v2456
    %2458 = vmatprep.mubr.bf16.mxu0 0
    %2459 = vmatmul.mubr.bf16.gmra.mxu0 %v1853
    %v2460 = vpop.f32.mrf.mxu0
    %v2461 = vadd.f32 %v1869, %v2460
    %v2462 = vpop.f32.mrf.mxu0
    %v2463 = vadd.f32 %v1873, %v2462
    %v2464 = vpop.f32.mrf.mxu0
    %v2465 = vadd.f32 %v1869, %v2464
    %v2466 = vpop.f32.mrf.mxu0
    %v2467 = vadd.f32 %v1873, %v2466
    %2468 = vmatprep.mubr.bf16.mxu0 0
    %2469 = vmatmul.mubr.bf16.gmra.mxu0 %v1854
    %v2470 = vpop.f32.mrf.mxu0
    %v2471 = vadd.f32 %v1869, %v2470
    %v2472 = vpop.f32.mrf.mxu0
    %v2473 = vadd.f32 %v1873, %v2472
    %v2474 = vpop.f32.mrf.mxu0
    %v2475 = vadd.f32 %v1869, %v2474
    %v2476 = vpop.f32.mrf.mxu0
    %v2477 = vadd.f32 %v1873, %v2476
    %2478 = vmatprep.mubr.bf16.mxu0 0
    %2479 = vmatmul.mubr.bf16.gmra.mxu0 %v1855
    %v2480 = vpop.f32.mrf.mxu0
    %v2481 = vadd.f32 %v1869, %v2480
    %v2482 = vpop.f32.mrf.mxu0
    %v2483 = vadd.f32 %v1873, %v2482
    %v2484 = vpop.f32.mrf.mxu0
    %v2485 = vadd.f32 %v1869, %v2484
    %v2486 = vpop.f32.mrf.mxu0
    %v2487 = vadd.f32 %v1873, %v2486
    %2488 = vmatprep.mubr.bf16.mxu0 0
    %2489 = vmatmul.mubr.bf16.gmra.mxu0 %v1856
    %v2490 = vpop.f32.mrf.mxu0
    %v2491 = vadd.f32 %v1869, %v2490
    %v2492 = vpop.f32.mrf.mxu0
    %v2493 = vadd.f32 %v1873, %v2492
    %v2494 = vpop.f32.mrf.mxu0
    %v2495 = vadd.f32 %v1869, %v2494
    %v2496 = vpop.f32.mrf.mxu0
    %v2497 = vadd.f32 %v1873, %v2496
    %2498 = vmatprep.mubr.bf16.mxu0 0
    %2499 = vmatmul.mubr.bf16.gmra.mxu0 %v1857
    %v2500 = vpop.f32.mrf.mxu0
    %v2501 = vadd.f32 %v1869, %v2500
    %v2502 = vpop.f32.mrf.mxu0
    %v2503 = vadd.f32 %v1873, %v2502
    %v2504 = vpop.f32.mrf.mxu0
    %v2505 = vadd.f32 %v1869, %v2504
    %v2506 = vpop.f32.mrf.mxu0
    %v2507 = vadd.f32 %v1873, %v2506
    %2508 = vmatprep.mubr.bf16.mxu0 0
    %2509 = vmatmul.mubr.bf16.gmra.mxu0 %v1858
    %v2510 = vpop.f32.mrf.mxu0
    %v2511 = vadd.f32 %v1869, %v2510
    %v2512 = vpop.f32.mrf.mxu0
    %v2513 = vadd.f32 %v1873, %v2512
    %v2514 = vpop.f32.mrf.mxu0
    %v2515 = vadd.f32 %v1869, %v2514
    %v2516 = vpop.f32.mrf.mxu0
    %v2517 = vadd.f32 %v1873, %v2516
    %2518 = vmatprep.mubr.bf16.mxu0 0
    %2519 = vmatmul.mubr.bf16.gmra.mxu0 %v1859
    %v2520 = vpop.f32.mrf.mxu0
    %v2521 = vadd.f32 %v1869, %v2520
    %v2522 = vpop.f32.mrf.mxu0
    %v2523 = vadd.f32 %v1873, %v2522
    %v2524 = vpop.f32.mrf.mxu0
    %v2525 = vadd.f32 %v1869, %v2524
    %v2526 = vpop.f32.mrf.mxu0
    %v2527 = vadd.f32 %v1873, %v2526
    %2528 = vmatprep.mubr.bf16.mxu0 0
    %2529 = vmatmul.mubr.bf16.gmra.mxu0 %v1860
    %v2530 = vpop.f32.mrf.mxu0
    %v2531 = vadd.f32 %v1869, %v2530
    %v2532 = vpop.f32.mrf.mxu0
    %v2533 = vadd.f32 %v1873, %v2532
    %v2534 = vpop.f32.mrf.mxu0
    %v2535 = vadd.f32 %v1869, %v2534
    %v2536 = vpop.f32.mrf.mxu0
    %v2537 = vadd.f32 %v1873, %v2536
    %2538 = vmatprep.mubr.bf16.mxu0 0
    %2539 = vmatmul.mubr.bf16.gmra.mxu0 %v1861
    %v2540 = vpop.f32.mrf.mxu0
    %v2541 = vadd.f32 %v1869, %v2540
    %v2542 = vpop.f32.mrf.mxu0
    %v2543 = vadd.f32 %v1873, %v2542
    %v2544 = vpop.f32.mrf.mxu0
    %v2545 = vadd.f32 %v1869, %v2544
    %v2546 = vpop.f32.mrf.mxu0
    %v2547 = vadd.f32 %v1873, %v2546
    %2548 = vmatprep.mubr.bf16.mxu0 0
    %2549 = vmatmul.mubr.bf16.gmra.mxu0 %v1862
    %v2550 = vpop.f32.mrf.mxu0
    %v2551 = vadd.f32 %v1869, %v2550
    %v2552 = vpop.f32.mrf.mxu0
    %v2553 = vadd.f32 %v1873, %v2552
    %v2554 = vpop.f32.mrf.mxu0
    %v2555 = vadd.f32 %v1869, %v2554
    %v2556 = vpop.f32.mrf.mxu0
    %v2557 = vadd.f32 %v1873, %v2556
    %2558 = vmatprep.mubr.bf16.mxu0 0
    %2559 = vmatmul.mubr.bf16.gmra.mxu0 %v1863
    %v2560 = vpop.f32.mrf.mxu0
    %v2561 = vadd.f32 %v1869, %v2560
    %v2562 = vpop.f32.mrf.mxu0
    %v2563 = vadd.f32 %v1873, %v2562
    %v2564 = vpop.f32.mrf.mxu0
    %v2565 = vadd.f32 %v1869, %v2564
    %v2566 = vpop.f32.mrf.mxu0
    %v2567 = vadd.f32 %v1873, %v2566
    %2568 = vmatprep.mubr.bf16.mxu0 0
    %2569 = vmatmul.mubr.bf16.gmra.mxu0 %v1864
    %v2570 = vpop.f32.mrf.mxu0
    %v2571 = vadd.f32 %v1869, %v2570
    %v2572 = vpop.f32.mrf.mxu0
    %v2573 = vadd.f32 %v1873, %v2572
    %v2574 = vpop.f32.mrf.mxu0
    %v2575 = vadd.f32 %v1869, %v2574
    %v2576 = vpop.f32.mrf.mxu0
    %v2577 = vadd.f32 %v1873, %v2576
    %2578 = vdwg.mxu0
    %2579 = vmatprep.subr.bf16.mxu0 %v2157
    %2580 = vmatpush1.bf16.msra.mxu0 %v2156
    %2581 = vmatprep.subr.bf16.mxu0 %v2149
    %2582 = vmatpush1.bf16.msra.mxu0 %v2148
    %2583 = vmatprep.subr.bf16.mxu0 %v2141
    %2584 = vmatpush1.bf16.msra.mxu0 %v2140
    %2585 = vmatprep.subr.bf16.mxu0 %v2133
    %2586 = vmatpush1.bf16.msra.mxu0 %v2132
    %2587 = vmatprep.subr.bf16.mxu0 %v2125
    %2588 = vmatpush1.bf16.msra.mxu0 %v2124
    %2589 = vmatprep.subr.bf16.mxu0 %v2117
    %2590 = vmatpush1.bf16.msra.mxu0 %v2116
    %2591 = vmatprep.subr.bf16.mxu0 %v2109
    %2592 = vmatpush1.bf16.msra.mxu0 %v2108
    %2593 = vmatprep.subr.bf16.mxu0 %v2101
    %2594 = vmatpush1.bf16.msra.mxu0 %v2100
    %2595 = vmatprep.subr.bf16.mxu0 0
    %2596 = vmatpush2.bf16.msra.mxu0 0
    %2597 = vmatprep.subr.bf16.mxu0 0
    %2598 = vmatpush2.bf16.msra.mxu0 0
    %2599 = vmatprep.subr.bf16.mxu0 0
    %2600 = vmatpush2.bf16.msra.mxu0 0
    %2601 = vmatprep.subr.bf16.mxu0 0
    %2602 = vmatpush2.bf16.msra.mxu0 0
    %2603 = vmatprep.subr.bf16.mxu0 0
    %2604 = vmatpush2.bf16.msra.mxu0 0
    %2605 = vmatprep.subr.bf16.mxu0 0
    %2606 = vmatpush2.bf16.msra.mxu0 0
    %2607 = vmatprep.subr.bf16.mxu0 0
    %2608 = vmatpush2.bf16.msra.mxu0 0
    %2609 = vmatprep.subr.bf16.mxu0 0
    %2610 = vmatpush2.bf16.msra.mxu0 0
    %2611 = vmatprep.mubr.bf16.mxu0 0
    %2612 = vmatmul.mubr.bf16.gmra.mxu0 %v1833
    %v2613 = vpop.f32.mrf.mxu0
    %v2614 = vadd.f32 %v1877, %v2613
    %v2615 = vpop.f32.mrf.mxu0
    %v2616 = vadd.f32 %v1881, %v2615
    %v2617 = vpop.f32.mrf.mxu0
    %v2618 = vadd.f32 %v1877, %v2617
    %v2619 = vpop.f32.mrf.mxu0
    %v2620 = vadd.f32 %v1881, %v2619
    %2621 = vmatprep.mubr.bf16.mxu0 0
    %2622 = vmatmul.mubr.bf16.gmra.mxu0 %v1834
    %v2623 = vpop.f32.mrf.mxu0
    %v2624 = vadd.f32 %v1877, %v2623
    %v2625 = vpop.f32.mrf.mxu0
    %v2626 = vadd.f32 %v1881, %v2625
    %v2627 = vpop.f32.mrf.mxu0
    %v2628 = vadd.f32 %v1877, %v2627
    %v2629 = vpop.f32.mrf.mxu0
    %v2630 = vadd.f32 %v1881, %v2629
    %2631 = vmatprep.mubr.bf16.mxu0 0
    %2632 = vmatmul.mubr.bf16.gmra.mxu0 %v1835
    %v2633 = vpop.f32.mrf.mxu0
    %v2634 = vadd.f32 %v1877, %v2633
    %v2635 = vpop.f32.mrf.mxu0
    %v2636 = vadd.f32 %v1881, %v2635
    %v2637 = vpop.f32.mrf.mxu0
    %v2638 = vadd.f32 %v1877, %v2637
    %v2639 = vpop.f32.mrf.mxu0
    %v2640 = vadd.f32 %v1881, %v2639
    %2641 = vmatprep.mubr.bf16.mxu0 0
    %2642 = vmatmul.mubr.bf16.gmra.mxu0 %v1836
    %v2643 = vpop.f32.mrf.mxu0
    %v2644 = vadd.f32 %v1877, %v2643
    %v2645 = vpop.f32.mrf.mxu0
    %v2646 = vadd.f32 %v1881, %v2645
    %v2647 = vpop.f32.mrf.mxu0
    %v2648 = vadd.f32 %v1877, %v2647
    %v2649 = vpop.f32.mrf.mxu0
    %v2650 = vadd.f32 %v1881, %v2649
    %2651 = vmatprep.mubr.bf16.mxu0 0
    %2652 = vmatmul.mubr.bf16.gmra.mxu0 %v1837
    %v2653 = vpop.f32.mrf.mxu0
    %v2654 = vadd.f32 %v1877, %v2653
    %v2655 = vpop.f32.mrf.mxu0
    %v2656 = vadd.f32 %v1881, %v2655
    %v2657 = vpop.f32.mrf.mxu0
    %v2658 = vadd.f32 %v1877, %v2657
    %v2659 = vpop.f32.mrf.mxu0
    %v2660 = vadd.f32 %v1881, %v2659
    %2661 = vmatprep.mubr.bf16.mxu0 0
    %2662 = vmatmul.mubr.bf16.gmra.mxu0 %v1838
    %v2663 = vpop.f32.mrf.mxu0
    %v2664 = vadd.f32 %v1877, %v2663
    %v2665 = vpop.f32.mrf.mxu0
    %v2666 = vadd.f32 %v1881, %v2665
    %v2667 = vpop.f32.mrf.mxu0
    %v2668 = vadd.f32 %v1877, %v2667
    %v2669 = vpop.f32.mrf.mxu0
    %v2670 = vadd.f32 %v1881, %v2669
    %2671 = vmatprep.mubr.bf16.mxu0 0
    %2672 = vmatmul.mubr.bf16.gmra.mxu0 %v1839
    %v2673 = vpop.f32.mrf.mxu0
    %v2674 = vadd.f32 %v1877, %v2673
    %v2675 = vpop.f32.mrf.mxu0
    %v2676 = vadd.f32 %v1881, %v2675
    %v2677 = vpop.f32.mrf.mxu0
    %v2678 = vadd.f32 %v1877, %v2677
    %v2679 = vpop.f32.mrf.mxu0
    %v2680 = vadd.f32 %v1881, %v2679
    %2681 = vmatprep.mubr.bf16.mxu0 0
    %2682 = vmatmul.mubr.bf16.gmra.mxu0 %v1840
    %v2683 = vpop.f32.mrf.mxu0
    %v2684 = vadd.f32 %v1877, %v2683
    %v2685 = vpop.f32.mrf.mxu0
    %v2686 = vadd.f32 %v1881, %v2685
    %v2687 = vpop.f32.mrf.mxu0
    %v2688 = vadd.f32 %v1877, %v2687
    %v2689 = vpop.f32.mrf.mxu0
    %v2690 = vadd.f32 %v1881, %v2689
    %2691 = vmatprep.mubr.bf16.mxu0 0
    %2692 = vmatmul.mubr.bf16.gmra.mxu0 %v1841
    %v2693 = vpop.f32.mrf.mxu0
    %v2694 = vadd.f32 %v1877, %v2693
    %v2695 = vpop.f32.mrf.mxu0
    %v2696 = vadd.f32 %v1881, %v2695
    %v2697 = vpop.f32.mrf.mxu0
    %v2698 = vadd.f32 %v1877, %v2697
    %v2699 = vpop.f32.mrf.mxu0
    %v2700 = vadd.f32 %v1881, %v2699
    %2701 = vmatprep.mubr.bf16.mxu0 0
    %2702 = vmatmul.mubr.bf16.gmra.mxu0 %v1842
    %v2703 = vpop.f32.mrf.mxu0
    %v2704 = vadd.f32 %v1877, %v2703
    %v2705 = vpop.f32.mrf.mxu0
    %v2706 = vadd.f32 %v1881, %v2705
    %v2707 = vpop.f32.mrf.mxu0
    %v2708 = vadd.f32 %v1877, %v2707
    %v2709 = vpop.f32.mrf.mxu0
    %v2710 = vadd.f32 %v1881, %v2709
    %2711 = vmatprep.mubr.bf16.mxu0 0
    %2712 = vmatmul.mubr.bf16.gmra.mxu0 %v1843
    %v2713 = vpop.f32.mrf.mxu0
    %v2714 = vadd.f32 %v1877, %v2713
    %v2715 = vpop.f32.mrf.mxu0
    %v2716 = vadd.f32 %v1881, %v2715
    %v2717 = vpop.f32.mrf.mxu0
    %v2718 = vadd.f32 %v1877, %v2717
    %v2719 = vpop.f32.mrf.mxu0
    %v2720 = vadd.f32 %v1881, %v2719
    %2721 = vmatprep.mubr.bf16.mxu0 0
    %2722 = vmatmul.mubr.bf16.gmra.mxu0 %v1844
    %v2723 = vpop.f32.mrf.mxu0
    %v2724 = vadd.f32 %v1877, %v2723
    %v2725 = vpop.f32.mrf.mxu0
    %v2726 = vadd.f32 %v1881, %v2725
    %v2727 = vpop.f32.mrf.mxu0
    %v2728 = vadd.f32 %v1877, %v2727
    %v2729 = vpop.f32.mrf.mxu0
    %v2730 = vadd.f32 %v1881, %v2729
    %2731 = vmatprep.mubr.bf16.mxu0 0
    %2732 = vmatmul.mubr.bf16.gmra.mxu0 %v1845
    %v2733 = vpop.f32.mrf.mxu0
    %v2734 = vadd.f32 %v1877, %v2733
    %v2735 = vpop.f32.mrf.mxu0
    %v2736 = vadd.f32 %v1881, %v2735
    %v2737 = vpop.f32.mrf.mxu0
    %v2738 = vadd.f32 %v1877, %v2737
    %v2739 = vpop.f32.mrf.mxu0
    %v2740 = vadd.f32 %v1881, %v2739
    %2741 = vmatprep.mubr.bf16.mxu0 0
    %2742 = vmatmul.mubr.bf16.gmra.mxu0 %v1846
    %v2743 = vpop.f32.mrf.mxu0
    %v2744 = vadd.f32 %v1877, %v2743
    %v2745 = vpop.f32.mrf.mxu0
    %v2746 = vadd.f32 %v1881, %v2745
    %v2747 = vpop.f32.mrf.mxu0
    %v2748 = vadd.f32 %v1877, %v2747
    %v2749 = vpop.f32.mrf.mxu0
    %v2750 = vadd.f32 %v1881, %v2749
    %2751 = vmatprep.mubr.bf16.mxu0 0
    %2752 = vmatmul.mubr.bf16.gmra.mxu0 %v1847
    %v2753 = vpop.f32.mrf.mxu0
    %v2754 = vadd.f32 %v1877, %v2753
    %v2755 = vpop.f32.mrf.mxu0
    %v2756 = vadd.f32 %v1881, %v2755
    %v2757 = vpop.f32.mrf.mxu0
    %v2758 = vadd.f32 %v1877, %v2757
    %v2759 = vpop.f32.mrf.mxu0
    %v2760 = vadd.f32 %v1881, %v2759
    %2761 = vmatprep.mubr.bf16.mxu0 0
    %2762 = vmatmul.mubr.bf16.gmra.mxu0 %v1848
    %v2763 = vpop.f32.mrf.mxu0
    %v2764 = vadd.f32 %v1877, %v2763
    %v2765 = vpop.f32.mrf.mxu0
    %v2766 = vadd.f32 %v1881, %v2765
    %v2767 = vpop.f32.mrf.mxu0
    %v2768 = vadd.f32 %v1877, %v2767
    %v2769 = vpop.f32.mrf.mxu0
    %v2770 = vadd.f32 %v1881, %v2769
    %2771 = vmatprep.mubr.bf16.mxu0 0
    %2772 = vmatmul.mubr.bf16.gmra.mxu0 %v1849
    %v2773 = vpop.f32.mrf.mxu0
    %v2774 = vadd.f32 %v1877, %v2773
    %v2775 = vpop.f32.mrf.mxu0
    %v2776 = vadd.f32 %v1881, %v2775
    %v2777 = vpop.f32.mrf.mxu0
    %v2778 = vadd.f32 %v1877, %v2777
    %v2779 = vpop.f32.mrf.mxu0
    %v2780 = vadd.f32 %v1881, %v2779
    %2781 = vmatprep.mubr.bf16.mxu0 0
    %2782 = vmatmul.mubr.bf16.gmra.mxu0 %v1850
    %v2783 = vpop.f32.mrf.mxu0
    %v2784 = vadd.f32 %v1877, %v2783
    %v2785 = vpop.f32.mrf.mxu0
    %v2786 = vadd.f32 %v1881, %v2785
    %v2787 = vpop.f32.mrf.mxu0
    %v2788 = vadd.f32 %v1877, %v2787
    %v2789 = vpop.f32.mrf.mxu0
    %v2790 = vadd.f32 %v1881, %v2789
    %2791 = vmatprep.mubr.bf16.mxu0 0
    %2792 = vmatmul.mubr.bf16.gmra.mxu0 %v1851
    %v2793 = vpop.f32.mrf.mxu0
    %v2794 = vadd.f32 %v1877, %v2793
    %v2795 = vpop.f32.mrf.mxu0
    %v2796 = vadd.f32 %v1881, %v2795
    %v2797 = vpop.f32.mrf.mxu0
    %v2798 = vadd.f32 %v1877, %v2797
    %v2799 = vpop.f32.mrf.mxu0
    %v2800 = vadd.f32 %v1881, %v2799
    %2801 = vmatprep.mubr.bf16.mxu0 0
    %2802 = vmatmul.mubr.bf16.gmra.mxu0 %v1852
    %v2803 = vpop.f32.mrf.mxu0
    %v2804 = vadd.f32 %v1877, %v2803
    %v2805 = vpop.f32.mrf.mxu0
    %v2806 = vadd.f32 %v1881, %v2805
    %v2807 = vpop.f32.mrf.mxu0
    %v2808 = vadd.f32 %v1877, %v2807
    %v2809 = vpop.f32.mrf.mxu0
    %v2810 = vadd.f32 %v1881, %v2809
    %2811 = vmatprep.mubr.bf16.mxu0 0
    %2812 = vmatmul.mubr.bf16.gmra.mxu0 %v1853
    %v2813 = vpop.f32.mrf.mxu0
    %v2814 = vadd.f32 %v1877, %v2813
    %v2815 = vpop.f32.mrf.mxu0
    %v2816 = vadd.f32 %v1881, %v2815
    %v2817 = vpop.f32.mrf.mxu0
    %v2818 = vadd.f32 %v1877, %v2817
    %v2819 = vpop.f32.mrf.mxu0
    %v2820 = vadd.f32 %v1881, %v2819
    %2821 = vmatprep.mubr.bf16.mxu0 0
    %2822 = vmatmul.mubr.bf16.gmra.mxu0 %v1854
    %v2823 = vpop.f32.mrf.mxu0
    %v2824 = vadd.f32 %v1877, %v2823
    %v2825 = vpop.f32.mrf.mxu0
    %v2826 = vadd.f32 %v1881, %v2825
    %v2827 = vpop.f32.mrf.mxu0
    %v2828 = vadd.f32 %v1877, %v2827
    %v2829 = vpop.f32.mrf.mxu0
    %v2830 = vadd.f32 %v1881, %v2829
    %2831 = vmatprep.mubr.bf16.mxu0 0
    %2832 = vmatmul.mubr.bf16.gmra.mxu0 %v1855
    %v2833 = vpop.f32.mrf.mxu0
    %v2834 = vadd.f32 %v1877, %v2833
    %v2835 = vpop.f32.mrf.mxu0
    %v2836 = vadd.f32 %v1881, %v2835
    %v2837 = vpop.f32.mrf.mxu0
    %v2838 = vadd.f32 %v1877, %v2837
    %v2839 = vpop.f32.mrf.mxu0
    %v2840 = vadd.f32 %v1881, %v2839
    %2841 = vmatprep.mubr.bf16.mxu0 0
    %2842 = vmatmul.mubr.bf16.gmra.mxu0 %v1856
    %v2843 = vpop.f32.mrf.mxu0
    %v2844 = vadd.f32 %v1877, %v2843
    %v2845 = vpop.f32.mrf.mxu0
    %v2846 = vadd.f32 %v1881, %v2845
    %v2847 = vpop.f32.mrf.mxu0
    %v2848 = vadd.f32 %v1877, %v2847
    %v2849 = vpop.f32.mrf.mxu0
    %v2850 = vadd.f32 %v1881, %v2849
    %2851 = vmatprep.mubr.bf16.mxu0 0
    %2852 = vmatmul.mubr.bf16.gmra.mxu0 %v1857
    %v2853 = vpop.f32.mrf.mxu0
    %v2854 = vadd.f32 %v1877, %v2853
    %v2855 = vpop.f32.mrf.mxu0
    %v2856 = vadd.f32 %v1881, %v2855
    %v2857 = vpop.f32.mrf.mxu0
    %v2858 = vadd.f32 %v1877, %v2857
    %v2859 = vpop.f32.mrf.mxu0
    %v2860 = vadd.f32 %v1881, %v2859
    %2861 = vmatprep.mubr.bf16.mxu0 0
    %2862 = vmatmul.mubr.bf16.gmra.mxu0 %v1858
    %v2863 = vpop.f32.mrf.mxu0
    %v2864 = vadd.f32 %v1877, %v2863
    %v2865 = vpop.f32.mrf.mxu0
    %v2866 = vadd.f32 %v1881, %v2865
    %v2867 = vpop.f32.mrf.mxu0
    %v2868 = vadd.f32 %v1877, %v2867
    %v2869 = vpop.f32.mrf.mxu0
    %v2870 = vadd.f32 %v1881, %v2869
    %2871 = vmatprep.mubr.bf16.mxu0 0
    %2872 = vmatmul.mubr.bf16.gmra.mxu0 %v1859
    %v2873 = vpop.f32.mrf.mxu0
    %v2874 = vadd.f32 %v1877, %v2873
    %v2875 = vpop.f32.mrf.mxu0
    %v2876 = vadd.f32 %v1881, %v2875
    %v2877 = vpop.f32.mrf.mxu0
    %v2878 = vadd.f32 %v1877, %v2877
    %v2879 = vpop.f32.mrf.mxu0
    %v2880 = vadd.f32 %v1881, %v2879
    %2881 = vmatprep.mubr.bf16.mxu0 0
    %2882 = vmatmul.mubr.bf16.gmra.mxu0 %v1860
    %v2883 = vpop.f32.mrf.mxu0
    %v2884 = vadd.f32 %v1877, %v2883
    %v2885 = vpop.f32.mrf.mxu0
    %v2886 = vadd.f32 %v1881, %v2885
    %v2887 = vpop.f32.mrf.mxu0
    %v2888 = vadd.f32 %v1877, %v2887
    %v2889 = vpop.f32.mrf.mxu0
    %v2890 = vadd.f32 %v1881, %v2889
    %2891 = vmatprep.mubr.bf16.mxu0 0
    %2892 = vmatmul.mubr.bf16.gmra.mxu0 %v1861
    %v2893 = vpop.f32.mrf.mxu0
    %v2894 = vadd.f32 %v1877, %v2893
    %v2895 = vpop.f32.mrf.mxu0
    %v2896 = vadd.f32 %v1881, %v2895
    %v2897 = vpop.f32.mrf.mxu0
    %v2898 = vadd.f32 %v1877, %v2897
    %v2899 = vpop.f32.mrf.mxu0
    %v2900 = vadd.f32 %v1881, %v2899
    %2901 = vmatprep.mubr.bf16.mxu0 0
    %2902 = vmatmul.mubr.bf16.gmra.mxu0 %v1862
    %v2903 = vpop.f32.mrf.mxu0
    %v2904 = vadd.f32 %v1877, %v2903
    %v2905 = vpop.f32.mrf.mxu0
    %v2906 = vadd.f32 %v1881, %v2905
    %v2907 = vpop.f32.mrf.mxu0
    %v2908 = vadd.f32 %v1877, %v2907
    %v2909 = vpop.f32.mrf.mxu0
    %v2910 = vadd.f32 %v1881, %v2909
    %2911 = vmatprep.mubr.bf16.mxu0 0
    %2912 = vmatmul.mubr.bf16.gmra.mxu0 %v1863
    %v2913 = vpop.f32.mrf.mxu0
    %v2914 = vadd.f32 %v1877, %v2913
    %v2915 = vpop.f32.mrf.mxu0
    %v2916 = vadd.f32 %v1881, %v2915
    %v2917 = vpop.f32.mrf.mxu0
    %v2918 = vadd.f32 %v1877, %v2917
    %v2919 = vpop.f32.mrf.mxu0
    %v2920 = vadd.f32 %v1881, %v2919
    %2921 = vmatprep.mubr.bf16.mxu0 0
    %2922 = vmatmul.mubr.bf16.gmra.mxu0 %v1864
    %v2923 = vpop.f32.mrf.mxu0
    %v2924 = vadd.f32 %v1877, %v2923
    %v2925 = vpop.f32.mrf.mxu0
    %v2926 = vadd.f32 %v1881, %v2925
    %v2927 = vpop.f32.mrf.mxu0
    %v2928 = vadd.f32 %v1877, %v2927
    %v2929 = vpop.f32.mrf.mxu0
    %v2930 = vadd.f32 %v1881, %v2929
    %2931 = vdwg.mxu0
    %2932 = vmatprep.subr.bf16.mxu0 %v2159
    %2933 = vmatpush1.bf16.msra.mxu0 %v2158
    %2934 = vmatprep.subr.bf16.mxu0 %v2151
    %2935 = vmatpush1.bf16.msra.mxu0 %v2150
    %2936 = vmatprep.subr.bf16.mxu0 %v2143
    %2937 = vmatpush1.bf16.msra.mxu0 %v2142
    %2938 = vmatprep.subr.bf16.mxu0 %v2135
    %2939 = vmatpush1.bf16.msra.mxu0 %v2134
    %2940 = vmatprep.subr.bf16.mxu0 %v2127
    %2941 = vmatpush1.bf16.msra.mxu0 %v2126
    %2942 = vmatprep.subr.bf16.mxu0 %v2119
    %2943 = vmatpush1.bf16.msra.mxu0 %v2118
    %2944 = vmatprep.subr.bf16.mxu0 %v2111
    %2945 = vmatpush1.bf16.msra.mxu0 %v2110
    %2946 = vmatprep.subr.bf16.mxu0 %v2103
    %2947 = vmatpush1.bf16.msra.mxu0 %v2102
    %2948 = vmatprep.subr.bf16.mxu0 0
    %2949 = vmatpush2.bf16.msra.mxu0 0
    %2950 = vmatprep.subr.bf16.mxu0 0
    %2951 = vmatpush2.bf16.msra.mxu0 0
    %2952 = vmatprep.subr.bf16.mxu0 0
    %2953 = vmatpush2.bf16.msra.mxu0 0
    %2954 = vmatprep.subr.bf16.mxu0 0
    %2955 = vmatpush2.bf16.msra.mxu0 0
    %2956 = vmatprep.subr.bf16.mxu0 0
    %2957 = vmatpush2.bf16.msra.mxu0 0
    %2958 = vmatprep.subr.bf16.mxu0 0
    %2959 = vmatpush2.bf16.msra.mxu0 0
    %2960 = vmatprep.subr.bf16.mxu0 0
    %2961 = vmatpush2.bf16.msra.mxu0 0
    %2962 = vmatprep.subr.bf16.mxu0 0
    %2963 = vmatpush2.bf16.msra.mxu0 0
    %2964 = vmatprep.mubr.bf16.mxu0 0
    %2965 = vmatmul.mubr.bf16.gmra.mxu0 %v1833
    %v2966 = vpop.f32.mrf.mxu0
    %v2967 = vadd.f32 %v1885, %v2966
    %v2968 = vpop.f32.mrf.mxu0
    %v2969 = vadd.f32 %v1889, %v2968
    %v2970 = vpop.f32.mrf.mxu0
    %v2971 = vadd.f32 %v1885, %v2970
    %v2972 = vpop.f32.mrf.mxu0
    %v2973 = vadd.f32 %v1889, %v2972
    %2974 = vmatprep.mubr.bf16.mxu0 0
    %2975 = vmatmul.mubr.bf16.gmra.mxu0 %v1834
    %v2976 = vpop.f32.mrf.mxu0
    %v2977 = vadd.f32 %v1885, %v2976
    %v2978 = vpop.f32.mrf.mxu0
    %v2979 = vadd.f32 %v1889, %v2978
    %v2980 = vpop.f32.mrf.mxu0
    %v2981 = vadd.f32 %v1885, %v2980
    %v2982 = vpop.f32.mrf.mxu0
    %v2983 = vadd.f32 %v1889, %v2982
    %2984 = vmatprep.mubr.bf16.mxu0 0
    %2985 = vmatmul.mubr.bf16.gmra.mxu0 %v1835
    %v2986 = vpop.f32.mrf.mxu0
    %v2987 = vadd.f32 %v1885, %v2986
    %v2988 = vpop.f32.mrf.mxu0
    %v2989 = vadd.f32 %v1889, %v2988
    %v2990 = vpop.f32.mrf.mxu0
    %v2991 = vadd.f32 %v1885, %v2990
    %v2992 = vpop.f32.mrf.mxu0
    %v2993 = vadd.f32 %v1889, %v2992
    %2994 = vmatprep.mubr.bf16.mxu0 0
    %2995 = vmatmul.mubr.bf16.gmra.mxu0 %v1836
    %v2996 = vpop.f32.mrf.mxu0
    %v2997 = vadd.f32 %v1885, %v2996
    %v2998 = vpop.f32.mrf.mxu0
    %v2999 = vadd.f32 %v1889, %v2998
    %v3000 = vpop.f32.mrf.mxu0
    %v3001 = vadd.f32 %v1885, %v3000
    %v3002 = vpop.f32.mrf.mxu0
    %v3003 = vadd.f32 %v1889, %v3002
    %3004 = vmatprep.mubr.bf16.mxu0 0
    %3005 = vmatmul.mubr.bf16.gmra.mxu0 %v1837
    %v3006 = vpop.f32.mrf.mxu0
    %v3007 = vadd.f32 %v1885, %v3006
    %v3008 = vpop.f32.mrf.mxu0
    %v3009 = vadd.f32 %v1889, %v3008
    %v3010 = vpop.f32.mrf.mxu0
    %v3011 = vadd.f32 %v1885, %v3010
    %v3012 = vpop.f32.mrf.mxu0
    %v3013 = vadd.f32 %v1889, %v3012
    %3014 = vmatprep.mubr.bf16.mxu0 0
    %3015 = vmatmul.mubr.bf16.gmra.mxu0 %v1838
    %v3016 = vpop.f32.mrf.mxu0
    %v3017 = vadd.f32 %v1885, %v3016
    %v3018 = vpop.f32.mrf.mxu0
    %v3019 = vadd.f32 %v1889, %v3018
    %v3020 = vpop.f32.mrf.mxu0
    %v3021 = vadd.f32 %v1885, %v3020
    %v3022 = vpop.f32.mrf.mxu0
    %v3023 = vadd.f32 %v1889, %v3022
    %3024 = vmatprep.mubr.bf16.mxu0 0
    %3025 = vmatmul.mubr.bf16.gmra.mxu0 %v1839
    %v3026 = vpop.f32.mrf.mxu0
    %v3027 = vadd.f32 %v1885, %v3026
    %v3028 = vpop.f32.mrf.mxu0
    %v3029 = vadd.f32 %v1889, %v3028
    %v3030 = vpop.f32.mrf.mxu0
    %v3031 = vadd.f32 %v1885, %v3030
    %v3032 = vpop.f32.mrf.mxu0
    %v3033 = vadd.f32 %v1889, %v3032
    %3034 = vmatprep.mubr.bf16.mxu0 0
    %3035 = vmatmul.mubr.bf16.gmra.mxu0 %v1840
    %v3036 = vpop.f32.mrf.mxu0
    %v3037 = vadd.f32 %v1885, %v3036
    %v3038 = vpop.f32.mrf.mxu0
    %v3039 = vadd.f32 %v1889, %v3038
    %v3040 = vpop.f32.mrf.mxu0
    %v3041 = vadd.f32 %v1885, %v3040
    %v3042 = vpop.f32.mrf.mxu0
    %v3043 = vadd.f32 %v1889, %v3042
    %3044 = vmatprep.mubr.bf16.mxu0 0
    %3045 = vmatmul.mubr.bf16.gmra.mxu0 %v1841
    %v3046 = vpop.f32.mrf.mxu0
    %v3047 = vadd.f32 %v1885, %v3046
    %v3048 = vpop.f32.mrf.mxu0
    %v3049 = vadd.f32 %v1889, %v3048
    %v3050 = vpop.f32.mrf.mxu0
    %v3051 = vadd.f32 %v1885, %v3050
    %v3052 = vpop.f32.mrf.mxu0
    %v3053 = vadd.f32 %v1889, %v3052
    %3054 = vmatprep.mubr.bf16.mxu0 0
    %3055 = vmatmul.mubr.bf16.gmra.mxu0 %v1842
    %v3056 = vpop.f32.mrf.mxu0
    %v3057 = vadd.f32 %v1885, %v3056
    %v3058 = vpop.f32.mrf.mxu0
    %v3059 = vadd.f32 %v1889, %v3058
    %v3060 = vpop.f32.mrf.mxu0
    %v3061 = vadd.f32 %v1885, %v3060
    %v3062 = vpop.f32.mrf.mxu0
    %v3063 = vadd.f32 %v1889, %v3062
    %3064 = vmatprep.mubr.bf16.mxu0 0
    %3065 = vmatmul.mubr.bf16.gmra.mxu0 %v1843
    %v3066 = vpop.f32.mrf.mxu0
    %v3067 = vadd.f32 %v1885, %v3066
    %v3068 = vpop.f32.mrf.mxu0
    %v3069 = vadd.f32 %v1889, %v3068
    %v3070 = vpop.f32.mrf.mxu0
    %v3071 = vadd.f32 %v1885, %v3070
    %v3072 = vpop.f32.mrf.mxu0
    %v3073 = vadd.f32 %v1889, %v3072
    %3074 = vmatprep.mubr.bf16.mxu0 0
    %3075 = vmatmul.mubr.bf16.gmra.mxu0 %v1844
    %v3076 = vpop.f32.mrf.mxu0
    %v3077 = vadd.f32 %v1885, %v3076
    %v3078 = vpop.f32.mrf.mxu0
    %v3079 = vadd.f32 %v1889, %v3078
    %v3080 = vpop.f32.mrf.mxu0
    %v3081 = vadd.f32 %v1885, %v3080
    %v3082 = vpop.f32.mrf.mxu0
    %v3083 = vadd.f32 %v1889, %v3082
    %3084 = vmatprep.mubr.bf16.mxu0 0
    %3085 = vmatmul.mubr.bf16.gmra.mxu0 %v1845
    %v3086 = vpop.f32.mrf.mxu0
    %v3087 = vadd.f32 %v1885, %v3086
    %v3088 = vpop.f32.mrf.mxu0
    %v3089 = vadd.f32 %v1889, %v3088
    %v3090 = vpop.f32.mrf.mxu0
    %v3091 = vadd.f32 %v1885, %v3090
    %v3092 = vpop.f32.mrf.mxu0
    %v3093 = vadd.f32 %v1889, %v3092
    %3094 = vmatprep.mubr.bf16.mxu0 0
    %3095 = vmatmul.mubr.bf16.gmra.mxu0 %v1846
    %v3096 = vpop.f32.mrf.mxu0
    %v3097 = vadd.f32 %v1885, %v3096
    %v3098 = vpop.f32.mrf.mxu0
    %v3099 = vadd.f32 %v1889, %v3098
    %v3100 = vpop.f32.mrf.mxu0
    %v3101 = vadd.f32 %v1885, %v3100
    %v3102 = vpop.f32.mrf.mxu0
    %v3103 = vadd.f32 %v1889, %v3102
    %3104 = vmatprep.mubr.bf16.mxu0 0
    %3105 = vmatmul.mubr.bf16.gmra.mxu0 %v1847
    %v3106 = vpop.f32.mrf.mxu0
    %v3107 = vadd.f32 %v1885, %v3106
    %v3108 = vpop.f32.mrf.mxu0
    %v3109 = vadd.f32 %v1889, %v3108
    %v3110 = vpop.f32.mrf.mxu0
    %v3111 = vadd.f32 %v1885, %v3110
    %v3112 = vpop.f32.mrf.mxu0
    %v3113 = vadd.f32 %v1889, %v3112
    %3114 = vmatprep.mubr.bf16.mxu0 0
    %3115 = vmatmul.mubr.bf16.gmra.mxu0 %v1848
    %v3116 = vpop.f32.mrf.mxu0
    %v3117 = vadd.f32 %v1885, %v3116
    %v3118 = vpop.f32.mrf.mxu0
    %v3119 = vadd.f32 %v1889, %v3118
    %v3120 = vpop.f32.mrf.mxu0
    %v3121 = vadd.f32 %v1885, %v3120
    %v3122 = vpop.f32.mrf.mxu0
    %v3123 = vadd.f32 %v1889, %v3122
    %3124 = vmatprep.mubr.bf16.mxu0 0
    %3125 = vmatmul.mubr.bf16.gmra.mxu0 %v1849
    %v3126 = vpop.f32.mrf.mxu0
    %v3127 = vadd.f32 %v1885, %v3126
    %v3128 = vpop.f32.mrf.mxu0
    %v3129 = vadd.f32 %v1889, %v3128
    %v3130 = vpop.f32.mrf.mxu0
    %v3131 = vadd.f32 %v1885, %v3130
    %v3132 = vpop.f32.mrf.mxu0
    %v3133 = vadd.f32 %v1889, %v3132
    %3134 = vmatprep.mubr.bf16.mxu0 0
    %3135 = vmatmul.mubr.bf16.gmra.mxu0 %v1850
    %v3136 = vpop.f32.mrf.mxu0
    %v3137 = vadd.f32 %v1885, %v3136
    %v3138 = vpop.f32.mrf.mxu0
    %v3139 = vadd.f32 %v1889, %v3138
    %v3140 = vpop.f32.mrf.mxu0
    %v3141 = vadd.f32 %v1885, %v3140
    %v3142 = vpop.f32.mrf.mxu0
    %v3143 = vadd.f32 %v1889, %v3142
    %3144 = vmatprep.mubr.bf16.mxu0 0
    %3145 = vmatmul.mubr.bf16.gmra.mxu0 %v1851
    %v3146 = vpop.f32.mrf.mxu0
    %v3147 = vadd.f32 %v1885, %v3146
    %v3148 = vpop.f32.mrf.mxu0
    %v3149 = vadd.f32 %v1889, %v3148
    %v3150 = vpop.f32.mrf.mxu0
    %v3151 = vadd.f32 %v1885, %v3150
    %v3152 = vpop.f32.mrf.mxu0
    %v3153 = vadd.f32 %v1889, %v3152
    %3154 = vmatprep.mubr.bf16.mxu0 0
    %3155 = vmatmul.mubr.bf16.gmra.mxu0 %v1852
    %v3156 = vpop.f32.mrf.mxu0
    %v3157 = vadd.f32 %v1885, %v3156
    %v3158 = vpop.f32.mrf.mxu0
    %v3159 = vadd.f32 %v1889, %v3158
    %v3160 = vpop.f32.mrf.mxu0
    %v3161 = vadd.f32 %v1885, %v3160
    %v3162 = vpop.f32.mrf.mxu0
    %v3163 = vadd.f32 %v1889, %v3162
    %3164 = vmatprep.mubr.bf16.mxu0 0
    %3165 = vmatmul.mubr.bf16.gmra.mxu0 %v1853
    %v3166 = vpop.f32.mrf.mxu0
    %v3167 = vadd.f32 %v1885, %v3166
    %v3168 = vpop.f32.mrf.mxu0
    %v3169 = vadd.f32 %v1889, %v3168
    %v3170 = vpop.f32.mrf.mxu0
    %v3171 = vadd.f32 %v1885, %v3170
    %v3172 = vpop.f32.mrf.mxu0
    %v3173 = vadd.f32 %v1889, %v3172
    %3174 = vmatprep.mubr.bf16.mxu0 0
    %3175 = vmatmul.mubr.bf16.gmra.mxu0 %v1854
    %v3176 = vpop.f32.mrf.mxu0
    %v3177 = vadd.f32 %v1885, %v3176
    %v3178 = vpop.f32.mrf.mxu0
    %v3179 = vadd.f32 %v1889, %v3178
    %v3180 = vpop.f32.mrf.mxu0
    %v3181 = vadd.f32 %v1885, %v3180
    %v3182 = vpop.f32.mrf.mxu0
    %v3183 = vadd.f32 %v1889, %v3182
    %3184 = vmatprep.mubr.bf16.mxu0 0
    %3185 = vmatmul.mubr.bf16.gmra.mxu0 %v1855
    %v3186 = vpop.f32.mrf.mxu0
    %v3187 = vadd.f32 %v1885, %v3186
    %v3188 = vpop.f32.mrf.mxu0
    %v3189 = vadd.f32 %v1889, %v3188
    %v3190 = vpop.f32.mrf.mxu0
    %v3191 = vadd.f32 %v1885, %v3190
    %v3192 = vpop.f32.mrf.mxu0
    %v3193 = vadd.f32 %v1889, %v3192
    %3194 = vmatprep.mubr.bf16.mxu0 0
    %3195 = vmatmul.mubr.bf16.gmra.mxu0 %v1856
    %v3196 = vpop.f32.mrf.mxu0
    %v3197 = vadd.f32 %v1885, %v3196
    %v3198 = vpop.f32.mrf.mxu0
    %v3199 = vadd.f32 %v1889, %v3198
    %v3200 = vpop.f32.mrf.mxu0
    %v3201 = vadd.f32 %v1885, %v3200
    %v3202 = vpop.f32.mrf.mxu0
    %v3203 = vadd.f32 %v1889, %v3202
    %3204 = vmatprep.mubr.bf16.mxu0 0
    %3205 = vmatmul.mubr.bf16.gmra.mxu0 %v1857
    %v3206 = vpop.f32.mrf.mxu0
    %v3207 = vadd.f32 %v1885, %v3206
    %v3208 = vpop.f32.mrf.mxu0
    %v3209 = vadd.f32 %v1889, %v3208
    %v3210 = vpop.f32.mrf.mxu0
    %v3211 = vadd.f32 %v1885, %v3210
    %v3212 = vpop.f32.mrf.mxu0
    %v3213 = vadd.f32 %v1889, %v3212
    %3214 = vmatprep.mubr.bf16.mxu0 0
    %3215 = vmatmul.mubr.bf16.gmra.mxu0 %v1858
    %v3216 = vpop.f32.mrf.mxu0
    %v3217 = vadd.f32 %v1885, %v3216
    %v3218 = vpop.f32.mrf.mxu0
    %v3219 = vadd.f32 %v1889, %v3218
    %v3220 = vpop.f32.mrf.mxu0
    %v3221 = vadd.f32 %v1885, %v3220
    %v3222 = vpop.f32.mrf.mxu0
    %v3223 = vadd.f32 %v1889, %v3222
    %3224 = vmatprep.mubr.bf16.mxu0 0
    %3225 = vmatmul.mubr.bf16.gmra.mxu0 %v1859
    %v3226 = vpop.f32.mrf.mxu0
    %v3227 = vadd.f32 %v1885, %v3226
    %v3228 = vpop.f32.mrf.mxu0
    %v3229 = vadd.f32 %v1889, %v3228
    %v3230 = vpop.f32.mrf.mxu0
    %v3231 = vadd.f32 %v1885, %v3230
    %v3232 = vpop.f32.mrf.mxu0
    %v3233 = vadd.f32 %v1889, %v3232
    %3234 = vmatprep.mubr.bf16.mxu0 0
    %3235 = vmatmul.mubr.bf16.gmra.mxu0 %v1860
    %v3236 = vpop.f32.mrf.mxu0
    %v3237 = vadd.f32 %v1885, %v3236
    %v3238 = vpop.f32.mrf.mxu0
    %v3239 = vadd.f32 %v1889, %v3238
    %v3240 = vpop.f32.mrf.mxu0
    %v3241 = vadd.f32 %v1885, %v3240
    %v3242 = vpop.f32.mrf.mxu0
    %v3243 = vadd.f32 %v1889, %v3242
    %3244 = vmatprep.mubr.bf16.mxu0 0
    %3245 = vmatmul.mubr.bf16.gmra.mxu0 %v1861
    %v3246 = vpop.f32.mrf.mxu0
    %v3247 = vadd.f32 %v1885, %v3246
    %v3248 = vpop.f32.mrf.mxu0
    %v3249 = vadd.f32 %v1889, %v3248
    %v3250 = vpop.f32.mrf.mxu0
    %v3251 = vadd.f32 %v1885, %v3250
    %v3252 = vpop.f32.mrf.mxu0
    %v3253 = vadd.f32 %v1889, %v3252
    %3254 = vmatprep.mubr.bf16.mxu0 0
    %3255 = vmatmul.mubr.bf16.gmra.mxu0 %v1862
    %v3256 = vpop.f32.mrf.mxu0
    %v3257 = vadd.f32 %v1885, %v3256
    %v3258 = vpop.f32.mrf.mxu0
    %v3259 = vadd.f32 %v1889, %v3258
    %v3260 = vpop.f32.mrf.mxu0
    %v3261 = vadd.f32 %v1885, %v3260
    %v3262 = vpop.f32.mrf.mxu0
    %v3263 = vadd.f32 %v1889, %v3262
    %3264 = vmatprep.mubr.bf16.mxu0 0
    %3265 = vmatmul.mubr.bf16.gmra.mxu0 %v1863
    %v3266 = vpop.f32.mrf.mxu0
    %v3267 = vadd.f32 %v1885, %v3266
    %v3268 = vpop.f32.mrf.mxu0
    %v3269 = vadd.f32 %v1889, %v3268
    %v3270 = vpop.f32.mrf.mxu0
    %v3271 = vadd.f32 %v1885, %v3270
    %v3272 = vpop.f32.mrf.mxu0
    %v3273 = vadd.f32 %v1889, %v3272
    %3274 = vmatprep.mubr.bf16.mxu0 0
    %3275 = vmatmul.mubr.bf16.gmra.mxu0 %v1864
    %v3276 = vpop.f32.mrf.mxu0
    %v3277 = vadd.f32 %v1885, %v3276
    %v3278 = vpop.f32.mrf.mxu0
    %v3279 = vadd.f32 %v1889, %v3278
    %v3280 = vpop.f32.mrf.mxu0
    %v3281 = vadd.f32 %v1885, %v3280
    %v3282 = vpop.f32.mrf.mxu0
    %v3283 = vadd.f32 %v1889, %v3282
    %3284 = vdwg.mxu0
    %3285 = vmatprep.subr.bf16.mxu0 %v2161
    %3286 = vmatpush1.bf16.msra.mxu0 %v2160
    %3287 = vmatprep.subr.bf16.mxu0 %v2153
    %3288 = vmatpush1.bf16.msra.mxu0 %v2152
    %3289 = vmatprep.subr.bf16.mxu0 %v2145
    %3290 = vmatpush1.bf16.msra.mxu0 %v2144
    %3291 = vmatprep.subr.bf16.mxu0 %v2137
    %3292 = vmatpush1.bf16.msra.mxu0 %v2136
    %3293 = vmatprep.subr.bf16.mxu0 %v2129
    %3294 = vmatpush1.bf16.msra.mxu0 %v2128
    %3295 = vmatprep.subr.bf16.mxu0 %v2121
    %3296 = vmatpush1.bf16.msra.mxu0 %v2120
    %3297 = vmatprep.subr.bf16.mxu0 %v2113
    %3298 = vmatpush1.bf16.msra.mxu0 %v2112
    %3299 = vmatprep.subr.bf16.mxu0 %v2105
    %3300 = vmatpush1.bf16.msra.mxu0 %v2104
    %3301 = vmatprep.subr.bf16.mxu0 0
    %3302 = vmatpush2.bf16.msra.mxu0 0
    %3303 = vmatprep.subr.bf16.mxu0 0
    %3304 = vmatpush2.bf16.msra.mxu0 0
    %3305 = vmatprep.subr.bf16.mxu0 0
    %3306 = vmatpush2.bf16.msra.mxu0 0
    %3307 = vmatprep.subr.bf16.mxu0 0
    %3308 = vmatpush2.bf16.msra.mxu0 0
    %3309 = vmatprep.subr.bf16.mxu0 0
    %3310 = vmatpush2.bf16.msra.mxu0 0
    %3311 = vmatprep.subr.bf16.mxu0 0
    %3312 = vmatpush2.bf16.msra.mxu0 0
    %3313 = vmatprep.subr.bf16.mxu0 0
    %3314 = vmatpush2.bf16.msra.mxu0 0
    %3315 = vmatprep.subr.bf16.mxu0 0
    %3316 = vmatpush2.bf16.msra.mxu0 0
    %3317 = vmatprep.mubr.bf16.mxu0 0
    %3318 = vmatmul.mubr.bf16.gmra.mxu0 %v1833
    %v3319 = vpop.f32.mrf.mxu0
    %v3320 = vadd.f32 %v1893, %v3319
    %v3321 = vpop.f32.mrf.mxu0
    %v3322 = vadd.f32 %v1897, %v3321
    %v3323 = vpop.f32.mrf.mxu0
    %v3324 = vadd.f32 %v1893, %v3323
    %v3325 = vpop.f32.mrf.mxu0
    %v3326 = vadd.f32 %v1897, %v3325
    %3327 = vmatprep.mubr.bf16.mxu0 0
    %3328 = vmatmul.mubr.bf16.gmra.mxu0 %v1834
    %v3329 = vpop.f32.mrf.mxu0
    %v3330 = vadd.f32 %v1893, %v3329
    %v3331 = vpop.f32.mrf.mxu0
    %v3332 = vadd.f32 %v1897, %v3331
    %v3333 = vpop.f32.mrf.mxu0
    %v3334 = vadd.f32 %v1893, %v3333
    %v3335 = vpop.f32.mrf.mxu0
    %v3336 = vadd.f32 %v1897, %v3335
    %3337 = vmatprep.mubr.bf16.mxu0 0
    %3338 = vmatmul.mubr.bf16.gmra.mxu0 %v1835
    %v3339 = vpop.f32.mrf.mxu0
    %v3340 = vadd.f32 %v1893, %v3339
    %v3341 = vpop.f32.mrf.mxu0
    %v3342 = vadd.f32 %v1897, %v3341
    %v3343 = vpop.f32.mrf.mxu0
    %v3344 = vadd.f32 %v1893, %v3343
    %v3345 = vpop.f32.mrf.mxu0
    %v3346 = vadd.f32 %v1897, %v3345
    %3347 = vmatprep.mubr.bf16.mxu0 0
    %3348 = vmatmul.mubr.bf16.gmra.mxu0 %v1836
    %v3349 = vpop.f32.mrf.mxu0
    %v3350 = vadd.f32 %v1893, %v3349
    %v3351 = vpop.f32.mrf.mxu0
    %v3352 = vadd.f32 %v1897, %v3351
    %v3353 = vpop.f32.mrf.mxu0
    %v3354 = vadd.f32 %v1893, %v3353
    %v3355 = vpop.f32.mrf.mxu0
    %v3356 = vadd.f32 %v1897, %v3355
    %3357 = vmatprep.mubr.bf16.mxu0 0
    %3358 = vmatmul.mubr.bf16.gmra.mxu0 %v1837
    %v3359 = vpop.f32.mrf.mxu0
    %v3360 = vadd.f32 %v1893, %v3359
    %v3361 = vpop.f32.mrf.mxu0
    %v3362 = vadd.f32 %v1897, %v3361
    %v3363 = vpop.f32.mrf.mxu0
    %v3364 = vadd.f32 %v1893, %v3363
    %v3365 = vpop.f32.mrf.mxu0
    %v3366 = vadd.f32 %v1897, %v3365
    %3367 = vmatprep.mubr.bf16.mxu0 0
    %3368 = vmatmul.mubr.bf16.gmra.mxu0 %v1838
    %v3369 = vpop.f32.mrf.mxu0
    %v3370 = vadd.f32 %v1893, %v3369
    %v3371 = vpop.f32.mrf.mxu0
    %v3372 = vadd.f32 %v1897, %v3371
    %v3373 = vpop.f32.mrf.mxu0
    %v3374 = vadd.f32 %v1893, %v3373
    %v3375 = vpop.f32.mrf.mxu0
    %v3376 = vadd.f32 %v1897, %v3375
    %3377 = vmatprep.mubr.bf16.mxu0 0
    %3378 = vmatmul.mubr.bf16.gmra.mxu0 %v1839
    %v3379 = vpop.f32.mrf.mxu0
    %v3380 = vadd.f32 %v1893, %v3379
    %v3381 = vpop.f32.mrf.mxu0
    %v3382 = vadd.f32 %v1897, %v3381
    %v3383 = vpop.f32.mrf.mxu0
    %v3384 = vadd.f32 %v1893, %v3383
    %v3385 = vpop.f32.mrf.mxu0
    %v3386 = vadd.f32 %v1897, %v3385
    %3387 = vmatprep.mubr.bf16.mxu0 0
    %3388 = vmatmul.mubr.bf16.gmra.mxu0 %v1840
    %v3389 = vpop.f32.mrf.mxu0
    %v3390 = vadd.f32 %v1893, %v3389
    %v3391 = vpop.f32.mrf.mxu0
    %v3392 = vadd.f32 %v1897, %v3391
    %v3393 = vpop.f32.mrf.mxu0
    %v3394 = vadd.f32 %v1893, %v3393
    %v3395 = vpop.f32.mrf.mxu0
    %v3396 = vadd.f32 %v1897, %v3395
    %3397 = vmatprep.mubr.bf16.mxu0 0
    %3398 = vmatmul.mubr.bf16.gmra.mxu0 %v1841
    %v3399 = vpop.f32.mrf.mxu0
    %v3400 = vadd.f32 %v1893, %v3399
    %v3401 = vpop.f32.mrf.mxu0
    %v3402 = vadd.f32 %v1897, %v3401
    %v3403 = vpop.f32.mrf.mxu0
    %v3404 = vadd.f32 %v1893, %v3403
    %v3405 = vpop.f32.mrf.mxu0
    %v3406 = vadd.f32 %v1897, %v3405
    %3407 = vmatprep.mubr.bf16.mxu0 0
    %3408 = vmatmul.mubr.bf16.gmra.mxu0 %v1842
    %v3409 = vpop.f32.mrf.mxu0
    %v3410 = vadd.f32 %v1893, %v3409
    %v3411 = vpop.f32.mrf.mxu0
    %v3412 = vadd.f32 %v1897, %v3411
    %v3413 = vpop.f32.mrf.mxu0
    %v3414 = vadd.f32 %v1893, %v3413
    %v3415 = vpop.f32.mrf.mxu0
    %v3416 = vadd.f32 %v1897, %v3415
    %3417 = vmatprep.mubr.bf16.mxu0 0
    %3418 = vmatmul.mubr.bf16.gmra.mxu0 %v1843
    %v3419 = vpop.f32.mrf.mxu0
    %v3420 = vadd.f32 %v1893, %v3419
    %v3421 = vpop.f32.mrf.mxu0
    %v3422 = vadd.f32 %v1897, %v3421
    %v3423 = vpop.f32.mrf.mxu0
    %v3424 = vadd.f32 %v1893, %v3423
    %v3425 = vpop.f32.mrf.mxu0
    %v3426 = vadd.f32 %v1897, %v3425
    %3427 = vmatprep.mubr.bf16.mxu0 0
    %3428 = vmatmul.mubr.bf16.gmra.mxu0 %v1844
    %v3429 = vpop.f32.mrf.mxu0
    %v3430 = vadd.f32 %v1893, %v3429
    %v3431 = vpop.f32.mrf.mxu0
    %v3432 = vadd.f32 %v1897, %v3431
    %v3433 = vpop.f32.mrf.mxu0
    %v3434 = vadd.f32 %v1893, %v3433
    %v3435 = vpop.f32.mrf.mxu0
    %v3436 = vadd.f32 %v1897, %v3435
    %3437 = vmatprep.mubr.bf16.mxu0 0
    %3438 = vmatmul.mubr.bf16.gmra.mxu0 %v1845
    %v3439 = vpop.f32.mrf.mxu0
    %v3440 = vadd.f32 %v1893, %v3439
    %v3441 = vpop.f32.mrf.mxu0
    %v3442 = vadd.f32 %v1897, %v3441
    %v3443 = vpop.f32.mrf.mxu0
    %v3444 = vadd.f32 %v1893, %v3443
    %v3445 = vpop.f32.mrf.mxu0
    %v3446 = vadd.f32 %v1897, %v3445
    %3447 = vmatprep.mubr.bf16.mxu0 0
    %3448 = vmatmul.mubr.bf16.gmra.mxu0 %v1846
    %v3449 = vpop.f32.mrf.mxu0
    %v3450 = vadd.f32 %v1893, %v3449
    %v3451 = vpop.f32.mrf.mxu0
    %v3452 = vadd.f32 %v1897, %v3451
    %v3453 = vpop.f32.mrf.mxu0
    %v3454 = vadd.f32 %v1893, %v3453
    %v3455 = vpop.f32.mrf.mxu0
    %v3456 = vadd.f32 %v1897, %v3455
    %3457 = vmatprep.mubr.bf16.mxu0 0
    %3458 = vmatmul.mubr.bf16.gmra.mxu0 %v1847
    %v3459 = vpop.f32.mrf.mxu0
    %v3460 = vadd.f32 %v1893, %v3459
    %v3461 = vpop.f32.mrf.mxu0
    %v3462 = vadd.f32 %v1897, %v3461
    %v3463 = vpop.f32.mrf.mxu0
    %v3464 = vadd.f32 %v1893, %v3463
    %v3465 = vpop.f32.mrf.mxu0
    %v3466 = vadd.f32 %v1897, %v3465
    %3467 = vmatprep.mubr.bf16.mxu0 0
    %3468 = vmatmul.mubr.bf16.gmra.mxu0 %v1848
    %v3469 = vpop.f32.mrf.mxu0
    %v3470 = vadd.f32 %v1893, %v3469
    %v3471 = vpop.f32.mrf.mxu0
    %v3472 = vadd.f32 %v1897, %v3471
    %v3473 = vpop.f32.mrf.mxu0
    %v3474 = vadd.f32 %v1893, %v3473
    %v3475 = vpop.f32.mrf.mxu0
    %v3476 = vadd.f32 %v1897, %v3475
    %3477 = vmatprep.mubr.bf16.mxu0 0
    %3478 = vmatmul.mubr.bf16.gmra.mxu0 %v1849
    %v3479 = vpop.f32.mrf.mxu0
    %v3480 = vadd.f32 %v1893, %v3479
    %v3481 = vpop.f32.mrf.mxu0
    %v3482 = vadd.f32 %v1897, %v3481
    %v3483 = vpop.f32.mrf.mxu0
    %v3484 = vadd.f32 %v1893, %v3483
    %v3485 = vpop.f32.mrf.mxu0
    %v3486 = vadd.f32 %v1897, %v3485
    %3487 = vmatprep.mubr.bf16.mxu0 0
    %3488 = vmatmul.mubr.bf16.gmra.mxu0 %v1850
    %v3489 = vpop.f32.mrf.mxu0
    %v3490 = vadd.f32 %v1893, %v3489
    %v3491 = vpop.f32.mrf.mxu0
    %v3492 = vadd.f32 %v1897, %v3491
    %v3493 = vpop.f32.mrf.mxu0
    %v3494 = vadd.f32 %v1893, %v3493
    %v3495 = vpop.f32.mrf.mxu0
    %v3496 = vadd.f32 %v1897, %v3495
    %3497 = vmatprep.mubr.bf16.mxu0 0
    %3498 = vmatmul.mubr.bf16.gmra.mxu0 %v1851
    %v3499 = vpop.f32.mrf.mxu0
    %v3500 = vadd.f32 %v1893, %v3499
    %v3501 = vpop.f32.mrf.mxu0
    %v3502 = vadd.f32 %v1897, %v3501
    %v3503 = vpop.f32.mrf.mxu0
    %v3504 = vadd.f32 %v1893, %v3503
    %v3505 = vpop.f32.mrf.mxu0
    %v3506 = vadd.f32 %v1897, %v3505
    %3507 = vmatprep.mubr.bf16.mxu0 0
    %3508 = vmatmul.mubr.bf16.gmra.mxu0 %v1852
    %v3509 = vpop.f32.mrf.mxu0
    %v3510 = vadd.f32 %v1893, %v3509
    %v3511 = vpop.f32.mrf.mxu0
    %v3512 = vadd.f32 %v1897, %v3511
    %v3513 = vpop.f32.mrf.mxu0
    %v3514 = vadd.f32 %v1893, %v3513
    %v3515 = vpop.f32.mrf.mxu0
    %v3516 = vadd.f32 %v1897, %v3515
    %3517 = vmatprep.mubr.bf16.mxu0 0
    %3518 = vmatmul.mubr.bf16.gmra.mxu0 %v1853
    %v3519 = vpop.f32.mrf.mxu0
    %v3520 = vadd.f32 %v1893, %v3519
    %v3521 = vpop.f32.mrf.mxu0
    %v3522 = vadd.f32 %v1897, %v3521
    %v3523 = vpop.f32.mrf.mxu0
    %v3524 = vadd.f32 %v1893, %v3523
    %v3525 = vpop.f32.mrf.mxu0
    %v3526 = vadd.f32 %v1897, %v3525
    %3527 = vmatprep.mubr.bf16.mxu0 0
    %3528 = vmatmul.mubr.bf16.gmra.mxu0 %v1854
    %v3529 = vpop.f32.mrf.mxu0
    %v3530 = vadd.f32 %v1893, %v3529
    %v3531 = vpop.f32.mrf.mxu0
    %v3532 = vadd.f32 %v1897, %v3531
    %v3533 = vpop.f32.mrf.mxu0
    %v3534 = vadd.f32 %v1893, %v3533
    %v3535 = vpop.f32.mrf.mxu0
    %v3536 = vadd.f32 %v1897, %v3535
    %3537 = vmatprep.mubr.bf16.mxu0 0
    %3538 = vmatmul.mubr.bf16.gmra.mxu0 %v1855
    %v3539 = vpop.f32.mrf.mxu0
    %v3540 = vadd.f32 %v1893, %v3539
    %v3541 = vpop.f32.mrf.mxu0
    %v3542 = vadd.f32 %v1897, %v3541
    %v3543 = vpop.f32.mrf.mxu0
    %v3544 = vadd.f32 %v1893, %v3543
    %v3545 = vpop.f32.mrf.mxu0
    %v3546 = vadd.f32 %v1897, %v3545
    %3547 = vmatprep.mubr.bf16.mxu0 0
    %3548 = vmatmul.mubr.bf16.gmra.mxu0 %v1856
    %v3549 = vpop.f32.mrf.mxu0
    %v3550 = vadd.f32 %v1893, %v3549
    %v3551 = vpop.f32.mrf.mxu0
    %v3552 = vadd.f32 %v1897, %v3551
    %v3553 = vpop.f32.mrf.mxu0
    %v3554 = vadd.f32 %v1893, %v3553
    %v3555 = vpop.f32.mrf.mxu0
    %v3556 = vadd.f32 %v1897, %v3555
    %3557 = vmatprep.mubr.bf16.mxu0 0
    %3558 = vmatmul.mubr.bf16.gmra.mxu0 %v1857
    %v3559 = vpop.f32.mrf.mxu0
    %v3560 = vadd.f32 %v1893, %v3559
    %v3561 = vpop.f32.mrf.mxu0
    %v3562 = vadd.f32 %v1897, %v3561
    %v3563 = vpop.f32.mrf.mxu0
    %v3564 = vadd.f32 %v1893, %v3563
    %v3565 = vpop.f32.mrf.mxu0
    %v3566 = vadd.f32 %v1897, %v3565
    %3567 = vmatprep.mubr.bf16.mxu0 0
    %3568 = vmatmul.mubr.bf16.gmra.mxu0 %v1858
    %v3569 = vpop.f32.mrf.mxu0
    %v3570 = vadd.f32 %v1893, %v3569
    %v3571 = vpop.f32.mrf.mxu0
    %v3572 = vadd.f32 %v1897, %v3571
    %v3573 = vpop.f32.mrf.mxu0
    %v3574 = vadd.f32 %v1893, %v3573
    %v3575 = vpop.f32.mrf.mxu0
    %v3576 = vadd.f32 %v1897, %v3575
    %3577 = vmatprep.mubr.bf16.mxu0 0
    %3578 = vmatmul.mubr.bf16.gmra.mxu0 %v1859
    %v3579 = vpop.f32.mrf.mxu0
    %v3580 = vadd.f32 %v1893, %v3579
    %v3581 = vpop.f32.mrf.mxu0
    %v3582 = vadd.f32 %v1897, %v3581
    %v3583 = vpop.f32.mrf.mxu0
    %v3584 = vadd.f32 %v1893, %v3583
    %v3585 = vpop.f32.mrf.mxu0
    %v3586 = vadd.f32 %v1897, %v3585
    %3587 = vmatprep.mubr.bf16.mxu0 0
    %3588 = vmatmul.mubr.bf16.gmra.mxu0 %v1860
    %v3589 = vpop.f32.mrf.mxu0
    %v3590 = vadd.f32 %v1893, %v3589
    %v3591 = vpop.f32.mrf.mxu0
    %v3592 = vadd.f32 %v1897, %v3591
    %v3593 = vpop.f32.mrf.mxu0
    %v3594 = vadd.f32 %v1893, %v3593
    %v3595 = vpop.f32.mrf.mxu0
    %v3596 = vadd.f32 %v1897, %v3595
    %3597 = vmatprep.mubr.bf16.mxu0 0
    %3598 = vmatmul.mubr.bf16.gmra.mxu0 %v1861
    %v3599 = vpop.f32.mrf.mxu0
    %v3600 = vadd.f32 %v1893, %v3599
    %v3601 = vpop.f32.mrf.mxu0
    %v3602 = vadd.f32 %v1897, %v3601
    %v3603 = vpop.f32.mrf.mxu0
    %v3604 = vadd.f32 %v1893, %v3603
    %v3605 = vpop.f32.mrf.mxu0
    %v3606 = vadd.f32 %v1897, %v3605
    %3607 = vmatprep.mubr.bf16.mxu0 0
    %3608 = vmatmul.mubr.bf16.gmra.mxu0 %v1862
    %v3609 = vpop.f32.mrf.mxu0
    %v3610 = vadd.f32 %v1893, %v3609
    %v3611 = vpop.f32.mrf.mxu0
    %v3612 = vadd.f32 %v1897, %v3611
    %v3613 = vpop.f32.mrf.mxu0
    %v3614 = vadd.f32 %v1893, %v3613
    %v3615 = vpop.f32.mrf.mxu0
    %v3616 = vadd.f32 %v1897, %v3615
    %3617 = vmatprep.mubr.bf16.mxu0 0
    %3618 = vmatmul.mubr.bf16.gmra.mxu0 %v1863
    %v3619 = vpop.f32.mrf.mxu0
    %v3620 = vadd.f32 %v1893, %v3619
    %v3621 = vpop.f32.mrf.mxu0
    %v3622 = vadd.f32 %v1897, %v3621
    %v3623 = vpop.f32.mrf.mxu0
    %v3624 = vadd.f32 %v1893, %v3623
    %v3625 = vpop.f32.mrf.mxu0
    %v3626 = vadd.f32 %v1897, %v3625
    %3627 = vmatprep.mubr.bf16.mxu0 0
    %3628 = vmatmul.mubr.bf16.gmra.mxu0 %v1864
    %v3629 = vpop.f32.mrf.mxu0
    %v3630 = vadd.f32 %v1893, %v3629
    %v3631 = vpop.f32.mrf.mxu0
    %v3632 = vadd.f32 %v1897, %v3631
    %v3633 = vpop.f32.mrf.mxu0
    %v3634 = vadd.f32 %v1893, %v3633
    %v3635 = vpop.f32.mrf.mxu0
    %v3636 = vadd.f32 %v1897, %v3635
    %3637 = vdwg.mxu0
    %v3638 = vld [vmem:[%s1] sm:$0xff]
    %v3639 = vld [vmem:[%s1 + $0x8] sm:$0xff]
    %v3640 = vld [vmem:[%s1 + $0x10] sm:$0xff]
    %v3641 = vld [vmem:[%s1 + $0x18] sm:$0xff]
    %v3642 = vld [vmem:[%s1 + $0x20] sm:$0xff]
    %v3643 = vld [vmem:[%s1 + $0x28] sm:$0xff]
    %v3644 = vld [vmem:[%s1 + $0x30] sm:$0xff]
    %v3645 = vld [vmem:[%s1 + $0x38] sm:$0xff]
    %v3646 = vld [vmem:[%s1 + $0x40] sm:$0xff]
    %v3647 = vld [vmem:[%s1 + $0x48] sm:$0xff]
    %v3648 = vld [vmem:[%s1 + $0x50] sm:$0xff]
    %v3649 = vld [vmem:[%s1 + $0x58] sm:$0xff]
    %v3650 = vld [vmem:[%s1 + $0x60] sm:$0xff]
    %v3651 = vld [vmem:[%s1 + $0x68] sm:$0xff]
    %v3652 = vld [vmem:[%s1 + $0x70] sm:$0xff]
    %v3653 = vld [vmem:[%s1 + $0x78] sm:$0xff]
    %v3654 = vld [vmem:[%s1 + $0x80] sm:$0xff]
    %v3655 = vld [vmem:[%s1 + $0x88] sm:$0xff]
    %v3656 = vld [vmem:[%s1 + $0x90] sm:$0xff]
    %v3657 = vld [vmem:[%s1 + $0x98] sm:$0xff]
    %v3658 = vld [vmem:[%s1 + $0xa0] sm:$0xff]
    %v3659 = vld [vmem:[%s1 + $0xa8] sm:$0xff]
    %v3660 = vld [vmem:[%s1 + $0xb0] sm:$0xff]
    %v3661 = vld [vmem:[%s1 + $0xb8] sm:$0xff]
    %v3662 = vld [vmem:[%s1 + $0xc0] sm:$0xff]
    %v3663 = vld [vmem:[%s1 + $0xc8] sm:$0xff]
    %v3664 = vld [vmem:[%s1 + $0xd0] sm:$0xff]
    %v3665 = vld [vmem:[%s1 + $0xd8] sm:$0xff]
    %v3666 = vld [vmem:[%s1 + $0xe0] sm:$0xff]
    %v3667 = vld [vmem:[%s1 + $0xe8] sm:$0xff]
    %v3668 = vld [vmem:[%s1 + $0xf0] sm:$0xff]
    %v3669 = vld [vmem:[%s1 + $0xf8] sm:$0xff]
    %v3670 = vld [vmem:[%s1 + $0x100] sm:$0xff]
    %v3671 = vld [vmem:[%s1 + $0x108] sm:$0xff]
    %v3672 = vld [vmem:[%s1 + $0x110] sm:$0xff]
    %v3673 = vld [vmem:[%s1 + $0x118] sm:$0xff]
    %v3674 = vld [vmem:[%s1 + $0x120] sm:$0xff]
    %v3675 = vld [vmem:[%s1 + $0x128] sm:$0xff]
    %v3676 = vld [vmem:[%s1 + $0x130] sm:$0xff]
    %v3677 = vld [vmem:[%s1 + $0x138] sm:$0xff]
    %v3678 = vld [vmem:[%s1 + $0x140] sm:$0xff]
    %v3679 = vld [vmem:[%s1 + $0x148] sm:$0xff]
    %v3680 = vld [vmem:[%s1 + $0x150] sm:$0xff]
    %v3681 = vld [vmem:[%s1 + $0x158] sm:$0xff]
    %v3682 = vld [vmem:[%s1 + $0x160] sm:$0xff]
    %v3683 = vld [vmem:[%s1 + $0x168] sm:$0xff]
    %v3684 = vld [vmem:[%s1 + $0x170] sm:$0xff]
    %v3685 = vld [vmem:[%s1 + $0x178] sm:$0xff]
    %v3686 = vld [vmem:[%s1 + $0x180] sm:$0xff]
    %v3687 = vld [vmem:[%s1 + $0x188] sm:$0xff]
    %v3688 = vld [vmem:[%s1 + $0x190] sm:$0xff]
    %v3689 = vld [vmem:[%s1 + $0x198] sm:$0xff]
    %v3690 = vld [vmem:[%s1 + $0x1a0] sm:$0xff]
    %v3691 = vld [vmem:[%s1 + $0x1a8] sm:$0xff]
    %v3692 = vld [vmem:[%s1 + $0x1b0] sm:$0xff]
    %v3693 = vld [vmem:[%s1 + $0x1b8] sm:$0xff]
    %v3694 = vld [vmem:[%s1 + $0x1c0] sm:$0xff]
    %v3695 = vld [vmem:[%s1 + $0x1c8] sm:$0xff]
    %v3696 = vld [vmem:[%s1 + $0x1d0] sm:$0xff]
    %v3697 = vld [vmem:[%s1 + $0x1d8] sm:$0xff]
    %v3698 = vld [vmem:[%s1 + $0x1e0] sm:$0xff]
    %v3699 = vld [vmem:[%s1 + $0x1e8] sm:$0xff]
    %v3700 = vld [vmem:[%s1 + $0x1f0] sm:$0xff]
    %v3701 = vld [vmem:[%s1 + $0x1f8] sm:$0xff]
    %3703 = vset.pattern.permute.xlu0 0
    %3704 = vperm.xlu0 %3703, %v3638
    %v3705 = vpop.permute.xlu0 %3704
    %3708 = vset.pattern.permute.xlu0 0
    %3709 = vperm.xlu0 %3708, %v3639
    %v3710 = vpop.permute.xlu0 %3709
    %3713 = vset.pattern.permute.xlu0 0
    %3714 = vperm.xlu0 %3713, %v3640
    %v3715 = vpop.permute.xlu0 %3714
    %3718 = vset.pattern.permute.xlu0 0
    %3719 = vperm.xlu0 %3718, %v3641
    %v3720 = vpop.permute.xlu0 %3719
    %3723 = vset.pattern.permute.xlu0 0
    %3724 = vperm.xlu0 %3723, %v3642
    %v3725 = vpop.permute.xlu0 %3724
    %3728 = vset.pattern.permute.xlu0 0
    %3729 = vperm.xlu0 %3728, %v3643
    %v3730 = vpop.permute.xlu0 %3729
    %3733 = vset.pattern.permute.xlu0 0
    %3734 = vperm.xlu0 %3733, %v3644
    %v3735 = vpop.permute.xlu0 %3734
    %3738 = vset.pattern.permute.xlu0 0
    %3739 = vperm.xlu0 %3738, %v3645
    %v3740 = vpop.permute.xlu0 %3739
    %3743 = vset.pattern.permute.xlu0 0
    %3744 = vperm.xlu0 %3743, %v3646
    %v3745 = vpop.permute.xlu0 %3744
    %3748 = vset.pattern.permute.xlu0 0
    %3749 = vperm.xlu0 %3748, %v3647
    %v3750 = vpop.permute.xlu0 %3749
    %3753 = vset.pattern.permute.xlu0 0
    %3754 = vperm.xlu0 %3753, %v3648
    %v3755 = vpop.permute.xlu0 %3754
    %3758 = vset.pattern.permute.xlu0 0
    %3759 = vperm.xlu0 %3758, %v3649
    %v3760 = vpop.permute.xlu0 %3759
    %3763 = vset.pattern.permute.xlu0 0
    %3764 = vperm.xlu0 %3763, %v3650
    %v3765 = vpop.permute.xlu0 %3764
    %3768 = vset.pattern.permute.xlu0 0
    %3769 = vperm.xlu0 %3768, %v3651
    %v3770 = vpop.permute.xlu0 %3769
    %3773 = vset.pattern.permute.xlu0 0
    %3774 = vperm.xlu0 %3773, %v3652
    %v3775 = vpop.permute.xlu0 %3774
    %3778 = vset.pattern.permute.xlu0 0
    %3779 = vperm.xlu0 %3778, %v3653
    %v3780 = vpop.permute.xlu0 %3779
    %3783 = vset.pattern.permute.xlu0 0
    %3784 = vperm.xlu0 %3783, %v3654
    %v3785 = vpop.permute.xlu0 %3784
    %3788 = vset.pattern.permute.xlu0 0
    %3789 = vperm.xlu0 %3788, %v3655
    %v3790 = vpop.permute.xlu0 %3789
    %3793 = vset.pattern.permute.xlu0 0
    %3794 = vperm.xlu0 %3793, %v3656
    %v3795 = vpop.permute.xlu0 %3794
    %3798 = vset.pattern.permute.xlu0 0
    %3799 = vperm.xlu0 %3798, %v3657
    %v3800 = vpop.permute.xlu0 %3799
    %3803 = vset.pattern.permute.xlu0 0
    %3804 = vperm.xlu0 %3803, %v3658
    %v3805 = vpop.permute.xlu0 %3804
    %3808 = vset.pattern.permute.xlu0 0
    %3809 = vperm.xlu0 %3808, %v3659
    %v3810 = vpop.permute.xlu0 %3809
    %3813 = vset.pattern.permute.xlu0 0
    %3814 = vperm.xlu0 %3813, %v3660
    %v3815 = vpop.permute.xlu0 %3814
    %3818 = vset.pattern.permute.xlu0 0
    %3819 = vperm.xlu0 %3818, %v3661
    %v3820 = vpop.permute.xlu0 %3819
    %3823 = vset.pattern.permute.xlu0 0
    %3824 = vperm.xlu0 %3823, %v3662
    %v3825 = vpop.permute.xlu0 %3824
    %3828 = vset.pattern.permute.xlu0 0
    %3829 = vperm.xlu0 %3828, %v3663
    %v3830 = vpop.permute.xlu0 %3829
    %3833 = vset.pattern.permute.xlu0 0
    %3834 = vperm.xlu0 %3833, %v3664
    %v3835 = vpop.permute.xlu0 %3834
    %3838 = vset.pattern.permute.xlu0 0
    %3839 = vperm.xlu0 %3838, %v3665
    %v3840 = vpop.permute.xlu0 %3839
    %3843 = vset.pattern.permute.xlu0 0
    %3844 = vperm.xlu0 %3843, %v3666
    %v3845 = vpop.permute.xlu0 %3844
    %3848 = vset.pattern.permute.xlu0 0
    %3849 = vperm.xlu0 %3848, %v3667
    %v3850 = vpop.permute.xlu0 %3849
    %3853 = vset.pattern.permute.xlu0 0
    %3854 = vperm.xlu0 %3853, %v3668
    %v3855 = vpop.permute.xlu0 %3854
    %3858 = vset.pattern.permute.xlu0 0
    %3859 = vperm.xlu0 %3858, %v3669
    %v3860 = vpop.permute.xlu0 %3859
    %3863 = vset.pattern.permute.xlu0 0
    %3864 = vperm.xlu0 %3863, %v3670
    %v3865 = vpop.permute.xlu0 %3864
    %3868 = vset.pattern.permute.xlu0 0
    %3869 = vperm.xlu0 %3868, %v3671
    %v3870 = vpop.permute.xlu0 %3869
    %3873 = vset.pattern.permute.xlu0 0
    %3874 = vperm.xlu0 %3873, %v3672
    %v3875 = vpop.permute.xlu0 %3874
    %3878 = vset.pattern.permute.xlu0 0
    %3879 = vperm.xlu0 %3878, %v3673
    %v3880 = vpop.permute.xlu0 %3879
    %3883 = vset.pattern.permute.xlu0 0
    %3884 = vperm.xlu0 %3883, %v3674
    %v3885 = vpop.permute.xlu0 %3884
    %3888 = vset.pattern.permute.xlu0 0
    %3889 = vperm.xlu0 %3888, %v3675
    %v3890 = vpop.permute.xlu0 %3889
    %3893 = vset.pattern.permute.xlu0 0
    %3894 = vperm.xlu0 %3893, %v3676
    %v3895 = vpop.permute.xlu0 %3894
    %3898 = vset.pattern.permute.xlu0 0
    %3899 = vperm.xlu0 %3898, %v3677
    %v3900 = vpop.permute.xlu0 %3899
    %3903 = vset.pattern.permute.xlu0 0
    %3904 = vperm.xlu0 %3903, %v3678
    %v3905 = vpop.permute.xlu0 %3904
    %3908 = vset.pattern.permute.xlu0 0
    %3909 = vperm.xlu0 %3908, %v3679
    %v3910 = vpop.permute.xlu0 %3909
    %3913 = vset.pattern.permute.xlu0 0
    %3914 = vperm.xlu0 %3913, %v3680
    %v3915 = vpop.permute.xlu0 %3914
    %3918 = vset.pattern.permute.xlu0 0
    %3919 = vperm.xlu0 %3918, %v3681
    %v3920 = vpop.permute.xlu0 %3919
    %3923 = vset.pattern.permute.xlu0 0
    %3924 = vperm.xlu0 %3923, %v3682
    %v3925 = vpop.permute.xlu0 %3924
    %3928 = vset.pattern.permute.xlu0 0
    %3929 = vperm.xlu0 %3928, %v3683
    %v3930 = vpop.permute.xlu0 %3929
    %3933 = vset.pattern.permute.xlu0 0
    %3934 = vperm.xlu0 %3933, %v3684
    %v3935 = vpop.permute.xlu0 %3934
    %3938 = vset.pattern.permute.xlu0 0
    %3939 = vperm.xlu0 %3938, %v3685
    %v3940 = vpop.permute.xlu0 %3939
    %3943 = vset.pattern.permute.xlu0 0
    %3944 = vperm.xlu0 %3943, %v3686
    %v3945 = vpop.permute.xlu0 %3944
    %3948 = vset.pattern.permute.xlu0 0
    %3949 = vperm.xlu0 %3948, %v3687
    %v3950 = vpop.permute.xlu0 %3949
    %3953 = vset.pattern.permute.xlu0 0
    %3954 = vperm.xlu0 %3953, %v3688
    %v3955 = vpop.permute.xlu0 %3954
    %3958 = vset.pattern.permute.xlu0 0
    %3959 = vperm.xlu0 %3958, %v3689
    %v3960 = vpop.permute.xlu0 %3959
    %3963 = vset.pattern.permute.xlu0 0
    %3964 = vperm.xlu0 %3963, %v3690
    %v3965 = vpop.permute.xlu0 %3964
    %3968 = vset.pattern.permute.xlu0 0
    %3969 = vperm.xlu0 %3968, %v3691
    %v3970 = vpop.permute.xlu0 %3969
    %3973 = vset.pattern.permute.xlu0 0
    %3974 = vperm.xlu0 %3973, %v3692
    %v3975 = vpop.permute.xlu0 %3974
    %3978 = vset.pattern.permute.xlu0 0
    %3979 = vperm.xlu0 %3978, %v3693
    %v3980 = vpop.permute.xlu0 %3979
    %3983 = vset.pattern.permute.xlu0 0
    %3984 = vperm.xlu0 %3983, %v3694
    %v3985 = vpop.permute.xlu0 %3984
    %3988 = vset.pattern.permute.xlu0 0
    %3989 = vperm.xlu0 %3988, %v3695
    %v3990 = vpop.permute.xlu0 %3989
    %3993 = vset.pattern.permute.xlu0 0
    %3994 = vperm.xlu0 %3993, %v3696
    %v3995 = vpop.permute.xlu0 %3994
    %3998 = vset.pattern.permute.xlu0 0
    %3999 = vperm.xlu0 %3998, %v3697
    %v4000 = vpop.permute.xlu0 %3999
    %4003 = vset.pattern.permute.xlu0 0
    %4004 = vperm.xlu0 %4003, %v3698
    %v4005 = vpop.permute.xlu0 %4004
    %4008 = vset.pattern.permute.xlu0 0
    %4009 = vperm.xlu0 %4008, %v3699
    %v4010 = vpop.permute.xlu0 %4009
    %4013 = vset.pattern.permute.xlu0 0
    %4014 = vperm.xlu0 %4013, %v3700
    %v4015 = vpop.permute.xlu0 %4014
    %4018 = vset.pattern.permute.xlu0 0
    %4019 = vperm.xlu0 %4018, %v3701
    %v4020 = vpop.permute.xlu0 %4019
    %v4022 = vmul.f32 %v3705, %v2261
    %v4023 = vmul.f32 %v3705, %v2263
    %v4024 = vmul.f32 %v3705, %v2614
    %v4025 = vmul.f32 %v3705, %v2616
    %v4026 = vmul.f32 %v3705, %v2967
    %v4027 = vmul.f32 %v3705, %v2969
    %v4028 = vmul.f32 %v3705, %v3320
    %v4029 = vmul.f32 %v3705, %v3322
    %v4030 = vmul.f32 %v3710, %v2265
    %v4031 = vmul.f32 %v3710, %v2267
    %v4032 = vmul.f32 %v3710, %v2618
    %v4033 = vmul.f32 %v3710, %v2620
    %v4034 = vmul.f32 %v3710, %v2971
    %v4035 = vmul.f32 %v3710, %v2973
    %v4036 = vmul.f32 %v3710, %v3324
    %v4037 = vmul.f32 %v3710, %v3326
    %v4038 = vmul.f32 %v3715, %v2271
    %v4039 = vmul.f32 %v3715, %v2273
    %v4040 = vmul.f32 %v3715, %v2624
    %v4041 = vmul.f32 %v3715, %v2626
    %v4042 = vmul.f32 %v3715, %v2977
    %v4043 = vmul.f32 %v3715, %v2979
    %v4044 = vmul.f32 %v3715, %v3330
    %v4045 = vmul.f32 %v3715, %v3332
    %v4046 = vmul.f32 %v3720, %v2275
    %v4047 = vmul.f32 %v3720, %v2277
    %v4048 = vmul.f32 %v3720, %v2628
    %v4049 = vmul.f32 %v3720, %v2630
    %v4050 = vmul.f32 %v3720, %v2981
    %v4051 = vmul.f32 %v3720, %v2983
    %v4052 = vmul.f32 %v3720, %v3334
    %v4053 = vmul.f32 %v3720, %v3336
    %v4054 = vmul.f32 %v3725, %v2281
    %v4055 = vmul.f32 %v3725, %v2283
    %v4056 = vmul.f32 %v3725, %v2634
    %v4057 = vmul.f32 %v3725, %v2636
    %v4058 = vmul.f32 %v3725, %v2987
    %v4059 = vmul.f32 %v3725, %v2989
    %v4060 = vmul.f32 %v3725, %v3340
    %v4061 = vmul.f32 %v3725, %v3342
    %v4062 = vmul.f32 %v3730, %v2285
    %v4063 = vmul.f32 %v3730, %v2287
    %v4064 = vmul.f32 %v3730, %v2638
    %v4065 = vmul.f32 %v3730, %v2640
    %v4066 = vmul.f32 %v3730, %v2991
    %v4067 = vmul.f32 %v3730, %v2993
    %v4068 = vmul.f32 %v3730, %v3344
    %v4069 = vmul.f32 %v3730, %v3346
    %v4070 = vmul.f32 %v3735, %v2291
    %v4071 = vmul.f32 %v3735, %v2293
    %v4072 = vmul.f32 %v3735, %v2644
    %v4073 = vmul.f32 %v3735, %v2646
    %v4074 = vmul.f32 %v3735, %v2997
    %v4075 = vmul.f32 %v3735, %v2999
    %v4076 = vmul.f32 %v3735, %v3350
    %v4077 = vmul.f32 %v3735, %v3352
    %v4078 = vmul.f32 %v3740, %v2295
    %v4079 = vmul.f32 %v3740, %v2297
    %v4080 = vmul.f32 %v3740, %v2648
    %v4081 = vmul.f32 %v3740, %v2650
    %v4082 = vmul.f32 %v3740, %v3001
    %v4083 = vmul.f32 %v3740, %v3003
    %v4084 = vmul.f32 %v3740, %v3354
    %v4085 = vmul.f32 %v3740, %v3356
    %v4086 = vmul.f32 %v3745, %v2301
    %v4087 = vmul.f32 %v3745, %v2303
    %v4088 = vmul.f32 %v3745, %v2654
    %v4089 = vmul.f32 %v3745, %v2656
    %v4090 = vmul.f32 %v3745, %v3007
    %v4091 = vmul.f32 %v3745, %v3009
    %v4092 = vmul.f32 %v3745, %v3360
    %v4093 = vmul.f32 %v3745, %v3362
    %v4094 = vmul.f32 %v3750, %v2305
    %v4095 = vmul.f32 %v3750, %v2307
    %v4096 = vmul.f32 %v3750, %v2658
    %v4097 = vmul.f32 %v3750, %v2660
    %v4098 = vmul.f32 %v3750, %v3011
    %v4099 = vmul.f32 %v3750, %v3013
    %v4100 = vmul.f32 %v3750, %v3364
    %v4101 = vmul.f32 %v3750, %v3366
    %v4102 = vmul.f32 %v3755, %v2311
    %v4103 = vmul.f32 %v3755, %v2313
    %v4104 = vmul.f32 %v3755, %v2664
    %v4105 = vmul.f32 %v3755, %v2666
    %v4106 = vmul.f32 %v3755, %v3017
    %v4107 = vmul.f32 %v3755, %v3019
    %v4108 = vmul.f32 %v3755, %v3370
    %v4109 = vmul.f32 %v3755, %v3372
    %v4110 = vmul.f32 %v3760, %v2315
    %v4111 = vmul.f32 %v3760, %v2317
    %v4112 = vmul.f32 %v3760, %v2668
    %v4113 = vmul.f32 %v3760, %v2670
    %v4114 = vmul.f32 %v3760, %v3021
    %v4115 = vmul.f32 %v3760, %v3023
    %v4116 = vmul.f32 %v3760, %v3374
    %v4117 = vmul.f32 %v3760, %v3376
    %v4118 = vmul.f32 %v3765, %v2321
    %v4119 = vmul.f32 %v3765, %v2323
    %v4120 = vmul.f32 %v3765, %v2674
    %v4121 = vmul.f32 %v3765, %v2676
    %v4122 = vmul.f32 %v3765, %v3027
    %v4123 = vmul.f32 %v3765, %v3029
    %v4124 = vmul.f32 %v3765, %v3380
    %v4125 = vmul.f32 %v3765, %v3382
    %v4126 = vmul.f32 %v3770, %v2325
    %v4127 = vmul.f32 %v3770, %v2327
    %v4128 = vmul.f32 %v3770, %v2678
    %v4129 = vmul.f32 %v3770, %v2680
    %v4130 = vmul.f32 %v3770, %v3031
    %v4131 = vmul.f32 %v3770, %v3033
    %v4132 = vmul.f32 %v3770, %v3384
    %v4133 = vmul.f32 %v3770, %v3386
    %v4134 = vmul.f32 %v3775, %v2331
    %v4135 = vmul.f32 %v3775, %v2333
    %v4136 = vmul.f32 %v3775, %v2684
    %v4137 = vmul.f32 %v3775, %v2686
    %v4138 = vmul.f32 %v3775, %v3037
    %v4139 = vmul.f32 %v3775, %v3039
    %v4140 = vmul.f32 %v3775, %v3390
    %v4141 = vmul.f32 %v3775, %v3392
    %v4142 = vmul.f32 %v3780, %v2335
    %v4143 = vmul.f32 %v3780, %v2337
    %v4144 = vmul.f32 %v3780, %v2688
    %v4145 = vmul.f32 %v3780, %v2690
    %v4146 = vmul.f32 %v3780, %v3041
    %v4147 = vmul.f32 %v3780, %v3043
    %v4148 = vmul.f32 %v3780, %v3394
    %v4149 = vmul.f32 %v3780, %v3396
    %v4150 = vmul.f32 %v3785, %v2341
    %v4151 = vmul.f32 %v3785, %v2343
    %v4152 = vmul.f32 %v3785, %v2694
    %v4153 = vmul.f32 %v3785, %v2696
    %v4154 = vmul.f32 %v3785, %v3047
    %v4155 = vmul.f32 %v3785, %v3049
    %v4156 = vmul.f32 %v3785, %v3400
    %v4157 = vmul.f32 %v3785, %v3402
    %v4158 = vmul.f32 %v3790, %v2345
    %v4159 = vmul.f32 %v3790, %v2347
    %v4160 = vmul.f32 %v3790, %v2698
    %v4161 = vmul.f32 %v3790, %v2700
    %v4162 = vmul.f32 %v3790, %v3051
    %v4163 = vmul.f32 %v3790, %v3053
    %v4164 = vmul.f32 %v3790, %v3404
    %v4165 = vmul.f32 %v3790, %v3406
    %v4166 = vmul.f32 %v3795, %v2351
    %v4167 = vmul.f32 %v3795, %v2353
    %v4168 = vmul.f32 %v3795, %v2704
    %v4169 = vmul.f32 %v3795, %v2706
    %v4170 = vmul.f32 %v3795, %v3057
    %v4171 = vmul.f32 %v3795, %v3059
    %v4172 = vmul.f32 %v3795, %v3410
    %v4173 = vmul.f32 %v3795, %v3412
    %v4174 = vmul.f32 %v3800, %v2355
    %v4175 = vmul.f32 %v3800, %v2357
    %v4176 = vmul.f32 %v3800, %v2708
    %v4177 = vmul.f32 %v3800, %v2710
    %v4178 = vmul.f32 %v3800, %v3061
    %v4179 = vmul.f32 %v3800, %v3063
    %v4180 = vmul.f32 %v3800, %v3414
    %v4181 = vmul.f32 %v3800, %v3416
    %v4182 = vmul.f32 %v3805, %v2361
    %v4183 = vmul.f32 %v3805, %v2363
    %v4184 = vmul.f32 %v3805, %v2714
    %v4185 = vmul.f32 %v3805, %v2716
    %v4186 = vmul.f32 %v3805, %v3067
    %v4187 = vmul.f32 %v3805, %v3069
    %v4188 = vmul.f32 %v3805, %v3420
    %v4189 = vmul.f32 %v3805, %v3422
    %v4190 = vmul.f32 %v3810, %v2365
    %v4191 = vmul.f32 %v3810, %v2367
    %v4192 = vmul.f32 %v3810, %v2718
    %v4193 = vmul.f32 %v3810, %v2720
    %v4194 = vmul.f32 %v3810, %v3071
    %v4195 = vmul.f32 %v3810, %v3073
    %v4196 = vmul.f32 %v3810, %v3424
    %v4197 = vmul.f32 %v3810, %v3426
    %v4198 = vmul.f32 %v3815, %v2371
    %v4199 = vmul.f32 %v3815, %v2373
    %v4200 = vmul.f32 %v3815, %v2724
    %v4201 = vmul.f32 %v3815, %v2726
    %v4202 = vmul.f32 %v3815, %v3077
    %v4203 = vmul.f32 %v3815, %v3079
    %v4204 = vmul.f32 %v3815, %v3430
    %v4205 = vmul.f32 %v3815, %v3432
    %v4206 = vmul.f32 %v3820, %v2375
    %v4207 = vmul.f32 %v3820, %v2377
    %v4208 = vmul.f32 %v3820, %v2728
    %v4209 = vmul.f32 %v3820, %v2730
    %v4210 = vmul.f32 %v3820, %v3081
    %v4211 = vmul.f32 %v3820, %v3083
    %v4212 = vmul.f32 %v3820, %v3434
    %v4213 = vmul.f32 %v3820, %v3436
    %v4214 = vmul.f32 %v3825, %v2381
    %v4215 = vmul.f32 %v3825, %v2383
    %v4216 = vmul.f32 %v3825, %v2734
    %v4217 = vmul.f32 %v3825, %v2736
    %v4218 = vmul.f32 %v3825, %v3087
    %v4219 = vmul.f32 %v3825, %v3089
    %v4220 = vmul.f32 %v3825, %v3440
    %v4221 = vmul.f32 %v3825, %v3442
    %v4222 = vmul.f32 %v3830, %v2385
    %v4223 = vmul.f32 %v3830, %v2387
    %v4224 = vmul.f32 %v3830, %v2738
    %v4225 = vmul.f32 %v3830, %v2740
    %v4226 = vmul.f32 %v3830, %v3091
    %v4227 = vmul.f32 %v3830, %v3093
    %v4228 = vmul.f32 %v3830, %v3444
    %v4229 = vmul.f32 %v3830, %v3446
    %v4230 = vmul.f32 %v3835, %v2391
    %v4231 = vmul.f32 %v3835, %v2393
    %v4232 = vmul.f32 %v3835, %v2744
    %v4233 = vmul.f32 %v3835, %v2746
    %v4234 = vmul.f32 %v3835, %v3097
    %v4235 = vmul.f32 %v3835, %v3099
    %v4236 = vmul.f32 %v3835, %v3450
    %v4237 = vmul.f32 %v3835, %v3452
    %v4238 = vmul.f32 %v3840, %v2395
    %v4239 = vmul.f32 %v3840, %v2397
    %v4240 = vmul.f32 %v3840, %v2748
    %v4241 = vmul.f32 %v3840, %v2750
    %v4242 = vmul.f32 %v3840, %v3101
    %v4243 = vmul.f32 %v3840, %v3103
    %v4244 = vmul.f32 %v3840, %v3454
    %v4245 = vmul.f32 %v3840, %v3456
    %v4246 = vmul.f32 %v3845, %v2401
    %v4247 = vmul.f32 %v3845, %v2403
    %v4248 = vmul.f32 %v3845, %v2754
    %v4249 = vmul.f32 %v3845, %v2756
    %v4250 = vmul.f32 %v3845, %v3107
    %v4251 = vmul.f32 %v3845, %v3109
    %v4252 = vmul.f32 %v3845, %v3460
    %v4253 = vmul.f32 %v3845, %v3462
    %v4254 = vmul.f32 %v3850, %v2405
    %v4255 = vmul.f32 %v3850, %v2407
    %v4256 = vmul.f32 %v3850, %v2758
    %v4257 = vmul.f32 %v3850, %v2760
    %v4258 = vmul.f32 %v3850, %v3111
    %v4259 = vmul.f32 %v3850, %v3113
    %v4260 = vmul.f32 %v3850, %v3464
    %v4261 = vmul.f32 %v3850, %v3466
    %v4262 = vmul.f32 %v3855, %v2411
    %v4263 = vmul.f32 %v3855, %v2413
    %v4264 = vmul.f32 %v3855, %v2764
    %v4265 = vmul.f32 %v3855, %v2766
    %v4266 = vmul.f32 %v3855, %v3117
    %v4267 = vmul.f32 %v3855, %v3119
    %v4268 = vmul.f32 %v3855, %v3470
    %v4269 = vmul.f32 %v3855, %v3472
    %v4270 = vmul.f32 %v3860, %v2415
    %v4271 = vmul.f32 %v3860, %v2417
    %v4272 = vmul.f32 %v3860, %v2768
    %v4273 = vmul.f32 %v3860, %v2770
    %v4274 = vmul.f32 %v3860, %v3121
    %v4275 = vmul.f32 %v3860, %v3123
    %v4276 = vmul.f32 %v3860, %v3474
    %v4277 = vmul.f32 %v3860, %v3476
    %v4278 = vmul.f32 %v3865, %v2421
    %v4279 = vmul.f32 %v3865, %v2423
    %v4280 = vmul.f32 %v3865, %v2774
    %v4281 = vmul.f32 %v3865, %v2776
    %v4282 = vmul.f32 %v3865, %v3127
    %v4283 = vmul.f32 %v3865, %v3129
    %v4284 = vmul.f32 %v3865, %v3480
    %v4285 = vmul.f32 %v3865, %v3482
    %v4286 = vmul.f32 %v3870, %v2425
    %v4287 = vmul.f32 %v3870, %v2427
    %v4288 = vmul.f32 %v3870, %v2778
    %v4289 = vmul.f32 %v3870, %v2780
    %v4290 = vmul.f32 %v3870, %v3131
    %v4291 = vmul.f32 %v3870, %v3133
    %v4292 = vmul.f32 %v3870, %v3484
    %v4293 = vmul.f32 %v3870, %v3486
    %v4294 = vmul.f32 %v3875, %v2431
    %v4295 = vmul.f32 %v3875, %v2433
    %v4296 = vmul.f32 %v3875, %v2784
    %v4297 = vmul.f32 %v3875, %v2786
    %v4298 = vmul.f32 %v3875, %v3137
    %v4299 = vmul.f32 %v3875, %v3139
    %v4300 = vmul.f32 %v3875, %v3490
    %v4301 = vmul.f32 %v3875, %v3492
    %v4302 = vmul.f32 %v3880, %v2435
    %v4303 = vmul.f32 %v3880, %v2437
    %v4304 = vmul.f32 %v3880, %v2788
    %v4305 = vmul.f32 %v3880, %v2790
    %v4306 = vmul.f32 %v3880, %v3141
    %v4307 = vmul.f32 %v3880, %v3143
    %v4308 = vmul.f32 %v3880, %v3494
    %v4309 = vmul.f32 %v3880, %v3496
    %v4310 = vmul.f32 %v3885, %v2441
    %v4311 = vmul.f32 %v3885, %v2443
    %v4312 = vmul.f32 %v3885, %v2794
    %v4313 = vmul.f32 %v3885, %v2796
    %v4314 = vmul.f32 %v3885, %v3147
    %v4315 = vmul.f32 %v3885, %v3149
    %v4316 = vmul.f32 %v3885, %v3500
    %v4317 = vmul.f32 %v3885, %v3502
    %v4318 = vmul.f32 %v3890, %v2445
    %v4319 = vmul.f32 %v3890, %v2447
    %v4320 = vmul.f32 %v3890, %v2798
    %v4321 = vmul.f32 %v3890, %v2800
    %v4322 = vmul.f32 %v3890, %v3151
    %v4323 = vmul.f32 %v3890, %v3153
    %v4324 = vmul.f32 %v3890, %v3504
    %v4325 = vmul.f32 %v3890, %v3506
    %v4326 = vmul.f32 %v3895, %v2451
    %v4327 = vmul.f32 %v3895, %v2453
    %v4328 = vmul.f32 %v3895, %v2804
    %v4329 = vmul.f32 %v3895, %v2806
    %v4330 = vmul.f32 %v3895, %v3157
    %v4331 = vmul.f32 %v3895, %v3159
    %v4332 = vmul.f32 %v3895, %v3510
    %v4333 = vmul.f32 %v3895, %v3512
    %v4334 = vmul.f32 %v3900, %v2455
    %v4335 = vmul.f32 %v3900, %v2457
    %v4336 = vmul.f32 %v3900, %v2808
    %v4337 = vmul.f32 %v3900, %v2810
    %v4338 = vmul.f32 %v3900, %v3161
    %v4339 = vmul.f32 %v3900, %v3163
    %v4340 = vmul.f32 %v3900, %v3514
    %v4341 = vmul.f32 %v3900, %v3516
    %v4342 = vmul.f32 %v3905, %v2461
    %v4343 = vmul.f32 %v3905, %v2463
    %v4344 = vmul.f32 %v3905, %v2814
    %v4345 = vmul.f32 %v3905, %v2816
    %v4346 = vmul.f32 %v3905, %v3167
    %v4347 = vmul.f32 %v3905, %v3169
    %v4348 = vmul.f32 %v3905, %v3520
    %v4349 = vmul.f32 %v3905, %v3522
    %v4350 = vmul.f32 %v3910, %v2465
    %v4351 = vmul.f32 %v3910, %v2467
    %v4352 = vmul.f32 %v3910, %v2818
    %v4353 = vmul.f32 %v3910, %v2820
    %v4354 = vmul.f32 %v3910, %v3171
    %v4355 = vmul.f32 %v3910, %v3173
    %v4356 = vmul.f32 %v3910, %v3524
    %v4357 = vmul.f32 %v3910, %v3526
    %v4358 = vmul.f32 %v3915, %v2471
    %v4359 = vmul.f32 %v3915, %v2473
    %v4360 = vmul.f32 %v3915, %v2824
    %v4361 = vmul.f32 %v3915, %v2826
    %v4362 = vmul.f32 %v3915, %v3177
    %v4363 = vmul.f32 %v3915, %v3179
    %v4364 = vmul.f32 %v3915, %v3530
    %v4365 = vmul.f32 %v3915, %v3532
    %v4366 = vmul.f32 %v3920, %v2475
    %v4367 = vmul.f32 %v3920, %v2477
    %v4368 = vmul.f32 %v3920, %v2828
    %v4369 = vmul.f32 %v3920, %v2830
    %v4370 = vmul.f32 %v3920, %v3181
    %v4371 = vmul.f32 %v3920, %v3183
    %v4372 = vmul.f32 %v3920, %v3534
    %v4373 = vmul.f32 %v3920, %v3536
    %v4374 = vmul.f32 %v3925, %v2481
    %v4375 = vmul.f32 %v3925, %v2483
    %v4376 = vmul.f32 %v3925, %v2834
    %v4377 = vmul.f32 %v3925, %v2836
    %v4378 = vmul.f32 %v3925, %v3187
    %v4379 = vmul.f32 %v3925, %v3189
    %v4380 = vmul.f32 %v3925, %v3540
    %v4381 = vmul.f32 %v3925, %v3542
    %v4382 = vmul.f32 %v3930, %v2485
    %v4383 = vmul.f32 %v3930, %v2487
    %v4384 = vmul.f32 %v3930, %v2838
    %v4385 = vmul.f32 %v3930, %v2840
    %v4386 = vmul.f32 %v3930, %v3191
    %v4387 = vmul.f32 %v3930, %v3193
    %v4388 = vmul.f32 %v3930, %v3544
    %v4389 = vmul.f32 %v3930, %v3546
    %v4390 = vmul.f32 %v3935, %v2491
    %v4391 = vmul.f32 %v3935, %v2493
    %v4392 = vmul.f32 %v3935, %v2844
    %v4393 = vmul.f32 %v3935, %v2846
    %v4394 = vmul.f32 %v3935, %v3197
    %v4395 = vmul.f32 %v3935, %v3199
    %v4396 = vmul.f32 %v3935, %v3550
    %v4397 = vmul.f32 %v3935, %v3552
    %v4398 = vmul.f32 %v3940, %v2495
    %v4399 = vmul.f32 %v3940, %v2497
    %v4400 = vmul.f32 %v3940, %v2848
    %v4401 = vmul.f32 %v3940, %v2850
    %v4402 = vmul.f32 %v3940, %v3201
    %v4403 = vmul.f32 %v3940, %v3203
    %v4404 = vmul.f32 %v3940, %v3554
    %v4405 = vmul.f32 %v3940, %v3556
    %v4406 = vmul.f32 %v3945, %v2501
    %v4407 = vmul.f32 %v3945, %v2503
    %v4408 = vmul.f32 %v3945, %v2854
    %v4409 = vmul.f32 %v3945, %v2856
    %v4410 = vmul.f32 %v3945, %v3207
    %v4411 = vmul.f32 %v3945, %v3209
    %v4412 = vmul.f32 %v3945, %v3560
    %v4413 = vmul.f32 %v3945, %v3562
    %v4414 = vmul.f32 %v3950, %v2505
    %v4415 = vmul.f32 %v3950, %v2507
    %v4416 = vmul.f32 %v3950, %v2858
    %v4417 = vmul.f32 %v3950, %v2860
    %v4418 = vmul.f32 %v3950, %v3211
    %v4419 = vmul.f32 %v3950, %v3213
    %v4420 = vmul.f32 %v3950, %v3564
    %v4421 = vmul.f32 %v3950, %v3566
    %v4422 = vmul.f32 %v3955, %v2511
    %v4423 = vmul.f32 %v3955, %v2513
    %v4424 = vmul.f32 %v3955, %v2864
    %v4425 = vmul.f32 %v3955, %v2866
    %v4426 = vmul.f32 %v3955, %v3217
    %v4427 = vmul.f32 %v3955, %v3219
    %v4428 = vmul.f32 %v3955, %v3570
    %v4429 = vmul.f32 %v3955, %v3572
    %v4430 = vmul.f32 %v3960, %v2515
    %v4431 = vmul.f32 %v3960, %v2517
    %v4432 = vmul.f32 %v3960, %v2868
    %v4433 = vmul.f32 %v3960, %v2870
    %v4434 = vmul.f32 %v3960, %v3221
    %v4435 = vmul.f32 %v3960, %v3223
    %v4436 = vmul.f32 %v3960, %v3574
    %v4437 = vmul.f32 %v3960, %v3576
    %v4438 = vmul.f32 %v3965, %v2521
    %v4439 = vmul.f32 %v3965, %v2523
    %v4440 = vmul.f32 %v3965, %v2874
    %v4441 = vmul.f32 %v3965, %v2876
    %v4442 = vmul.f32 %v3965, %v3227
    %v4443 = vmul.f32 %v3965, %v3229
    %v4444 = vmul.f32 %v3965, %v3580
    %v4445 = vmul.f32 %v3965, %v3582
    %v4446 = vmul.f32 %v3970, %v2525
    %v4447 = vmul.f32 %v3970, %v2527
    %v4448 = vmul.f32 %v3970, %v2878
    %v4449 = vmul.f32 %v3970, %v2880
    %v4450 = vmul.f32 %v3970, %v3231
    %v4451 = vmul.f32 %v3970, %v3233
    %v4452 = vmul.f32 %v3970, %v3584
    %v4453 = vmul.f32 %v3970, %v3586
    %v4454 = vmul.f32 %v3975, %v2531
    %v4455 = vmul.f32 %v3975, %v2533
    %v4456 = vmul.f32 %v3975, %v2884
    %v4457 = vmul.f32 %v3975, %v2886
    %v4458 = vmul.f32 %v3975, %v3237
    %v4459 = vmul.f32 %v3975, %v3239
    %v4460 = vmul.f32 %v3975, %v3590
    %v4461 = vmul.f32 %v3975, %v3592
    %v4462 = vmul.f32 %v3980, %v2535
    %v4463 = vmul.f32 %v3980, %v2537
    %v4464 = vmul.f32 %v3980, %v2888
    %v4465 = vmul.f32 %v3980, %v2890
    %v4466 = vmul.f32 %v3980, %v3241
    %v4467 = vmul.f32 %v3980, %v3243
    %v4468 = vmul.f32 %v3980, %v3594
    %v4469 = vmul.f32 %v3980, %v3596
    %v4470 = vmul.f32 %v3985, %v2541
    %v4471 = vmul.f32 %v3985, %v2543
    %v4472 = vmul.f32 %v3985, %v2894
    %v4473 = vmul.f32 %v3985, %v2896
    %v4474 = vmul.f32 %v3985, %v3247
    %v4475 = vmul.f32 %v3985, %v3249
    %v4476 = vmul.f32 %v3985, %v3600
    %v4477 = vmul.f32 %v3985, %v3602
    %v4478 = vmul.f32 %v3990, %v2545
    %v4479 = vmul.f32 %v3990, %v2547
    %v4480 = vmul.f32 %v3990, %v2898
    %v4481 = vmul.f32 %v3990, %v2900
    %v4482 = vmul.f32 %v3990, %v3251
    %v4483 = vmul.f32 %v3990, %v3253
    %v4484 = vmul.f32 %v3990, %v3604
    %v4485 = vmul.f32 %v3990, %v3606
    %v4486 = vmul.f32 %v3995, %v2551
    %v4487 = vmul.f32 %v3995, %v2553
    %v4488 = vmul.f32 %v3995, %v2904
    %v4489 = vmul.f32 %v3995, %v2906
    %v4490 = vmul.f32 %v3995, %v3257
    %v4491 = vmul.f32 %v3995, %v3259
    %v4492 = vmul.f32 %v3995, %v3610
    %v4493 = vmul.f32 %v3995, %v3612
    %v4494 = vmul.f32 %v4000, %v2555
    %v4495 = vmul.f32 %v4000, %v2557
    %v4496 = vmul.f32 %v4000, %v2908
    %v4497 = vmul.f32 %v4000, %v2910
    %v4498 = vmul.f32 %v4000, %v3261
    %v4499 = vmul.f32 %v4000, %v3263
    %v4500 = vmul.f32 %v4000, %v3614
    %v4501 = vmul.f32 %v4000, %v3616
    %v4502 = vmul.f32 %v4005, %v2561
    %v4503 = vmul.f32 %v4005, %v2563
    %v4504 = vmul.f32 %v4005, %v2914
    %v4505 = vmul.f32 %v4005, %v2916
    %v4506 = vmul.f32 %v4005, %v3267
    %v4507 = vmul.f32 %v4005, %v3269
    %v4508 = vmul.f32 %v4005, %v3620
    %v4509 = vmul.f32 %v4005, %v3622
    %v4510 = vmul.f32 %v4010, %v2565
    %v4511 = vmul.f32 %v4010, %v2567
    %v4512 = vmul.f32 %v4010, %v2918
    %v4513 = vmul.f32 %v4010, %v2920
    %v4514 = vmul.f32 %v4010, %v3271
    %v4515 = vmul.f32 %v4010, %v3273
    %v4516 = vmul.f32 %v4010, %v3624
    %v4517 = vmul.f32 %v4010, %v3626
    %v4518 = vmul.f32 %v4015, %v2571
    %v4519 = vmul.f32 %v4015, %v2573
    %v4520 = vmul.f32 %v4015, %v2924
    %v4521 = vmul.f32 %v4015, %v2926
    %v4522 = vmul.f32 %v4015, %v3277
    %v4523 = vmul.f32 %v4015, %v3279
    %v4524 = vmul.f32 %v4015, %v3630
    %v4525 = vmul.f32 %v4015, %v3632
    %v4526 = vmul.f32 %v4020, %v2575
    %v4527 = vmul.f32 %v4020, %v2577
    %v4528 = vmul.f32 %v4020, %v2928
    %v4529 = vmul.f32 %v4020, %v2930
    %v4530 = vmul.f32 %v4020, %v3281
    %v4531 = vmul.f32 %v4020, %v3283
    %v4532 = vmul.f32 %v4020, %v3634
    %v4533 = vmul.f32 %v4020, %v3636
    %v4534 = vpack.c.bf16 %v4030, %v4022
    %v4535 = vpack.c.bf16 %v4031, %v4023
    %v4536 = vpack.c.bf16 %v4032, %v4024
    %v4537 = vpack.c.bf16 %v4033, %v4025
    %v4538 = vpack.c.bf16 %v4034, %v4026
    %v4539 = vpack.c.bf16 %v4035, %v4027
    %v4540 = vpack.c.bf16 %v4036, %v4028
    %v4541 = vpack.c.bf16 %v4037, %v4029
    %v4542 = vpack.c.bf16 %v4046, %v4038
    %v4543 = vpack.c.bf16 %v4047, %v4039
    %v4544 = vpack.c.bf16 %v4048, %v4040
    %v4545 = vpack.c.bf16 %v4049, %v4041
    %v4546 = vpack.c.bf16 %v4050, %v4042
    %v4547 = vpack.c.bf16 %v4051, %v4043
    %v4548 = vpack.c.bf16 %v4052, %v4044
    %v4549 = vpack.c.bf16 %v4053, %v4045
    %v4550 = vpack.c.bf16 %v4062, %v4054
    %v4551 = vpack.c.bf16 %v4063, %v4055
    %v4552 = vpack.c.bf16 %v4064, %v4056
    %v4553 = vpack.c.bf16 %v4065, %v4057
    %v4554 = vpack.c.bf16 %v4066, %v4058
    %v4555 = vpack.c.bf16 %v4067, %v4059
    %v4556 = vpack.c.bf16 %v4068, %v4060
    %v4557 = vpack.c.bf16 %v4069, %v4061
    %v4558 = vpack.c.bf16 %v4078, %v4070
    %v4559 = vpack.c.bf16 %v4079, %v4071
    %v4560 = vpack.c.bf16 %v4080, %v4072
    %v4561 = vpack.c.bf16 %v4081, %v4073
    %v4562 = vpack.c.bf16 %v4082, %v4074
    %v4563 = vpack.c.bf16 %v4083, %v4075
    %v4564 = vpack.c.bf16 %v4084, %v4076
    %v4565 = vpack.c.bf16 %v4085, %v4077
    %v4566 = vpack.c.bf16 %v4094, %v4086
    %v4567 = vpack.c.bf16 %v4095, %v4087
    %v4568 = vpack.c.bf16 %v4096, %v4088
    %v4569 = vpack.c.bf16 %v4097, %v4089
    %v4570 = vpack.c.bf16 %v4098, %v4090
    %v4571 = vpack.c.bf16 %v4099, %v4091
    %v4572 = vpack.c.bf16 %v4100, %v4092
    %v4573 = vpack.c.bf16 %v4101, %v4093
    %v4574 = vpack.c.bf16 %v4110, %v4102
    %v4575 = vpack.c.bf16 %v4111, %v4103
    %v4576 = vpack.c.bf16 %v4112, %v4104
    %v4577 = vpack.c.bf16 %v4113, %v4105
    %v4578 = vpack.c.bf16 %v4114, %v4106
    %v4579 = vpack.c.bf16 %v4115, %v4107
    %v4580 = vpack.c.bf16 %v4116, %v4108
    %v4581 = vpack.c.bf16 %v4117, %v4109
    %v4582 = vpack.c.bf16 %v4126, %v4118
    %v4583 = vpack.c.bf16 %v4127, %v4119
    %v4584 = vpack.c.bf16 %v4128, %v4120
    %v4585 = vpack.c.bf16 %v4129, %v4121
    %v4586 = vpack.c.bf16 %v4130, %v4122
    %v4587 = vpack.c.bf16 %v4131, %v4123
    %v4588 = vpack.c.bf16 %v4132, %v4124
    %v4589 = vpack.c.bf16 %v4133, %v4125
    %v4590 = vpack.c.bf16 %v4142, %v4134
    %v4591 = vpack.c.bf16 %v4143, %v4135
    %v4592 = vpack.c.bf16 %v4144, %v4136
    %v4593 = vpack.c.bf16 %v4145, %v4137
    %v4594 = vpack.c.bf16 %v4146, %v4138
    %v4595 = vpack.c.bf16 %v4147, %v4139
    %v4596 = vpack.c.bf16 %v4148, %v4140
    %v4597 = vpack.c.bf16 %v4149, %v4141
    %v4598 = vpack.c.bf16 %v4158, %v4150
    %v4599 = vpack.c.bf16 %v4159, %v4151
    %v4600 = vpack.c.bf16 %v4160, %v4152
    %v4601 = vpack.c.bf16 %v4161, %v4153
    %v4602 = vpack.c.bf16 %v4162, %v4154
    %v4603 = vpack.c.bf16 %v4163, %v4155
    %v4604 = vpack.c.bf16 %v4164, %v4156
    %v4605 = vpack.c.bf16 %v4165, %v4157
    %v4606 = vpack.c.bf16 %v4174, %v4166
    %v4607 = vpack.c.bf16 %v4175, %v4167
    %v4608 = vpack.c.bf16 %v4176, %v4168
    %v4609 = vpack.c.bf16 %v4177, %v4169
    %v4610 = vpack.c.bf16 %v4178, %v4170
    %v4611 = vpack.c.bf16 %v4179, %v4171
    %v4612 = vpack.c.bf16 %v4180, %v4172
    %v4613 = vpack.c.bf16 %v4181, %v4173
    %v4614 = vpack.c.bf16 %v4190, %v4182
    %v4615 = vpack.c.bf16 %v4191, %v4183
    %v4616 = vpack.c.bf16 %v4192, %v4184
    %v4617 = vpack.c.bf16 %v4193, %v4185
    %v4618 = vpack.c.bf16 %v4194, %v4186
    %v4619 = vpack.c.bf16 %v4195, %v4187
    %v4620 = vpack.c.bf16 %v4196, %v4188
    %v4621 = vpack.c.bf16 %v4197, %v4189
    %v4622 = vpack.c.bf16 %v4206, %v4198
    %v4623 = vpack.c.bf16 %v4207, %v4199
    %v4624 = vpack.c.bf16 %v4208, %v4200
    %v4625 = vpack.c.bf16 %v4209, %v4201
    %v4626 = vpack.c.bf16 %v4210, %v4202
    %v4627 = vpack.c.bf16 %v4211, %v4203
    %v4628 = vpack.c.bf16 %v4212, %v4204
    %v4629 = vpack.c.bf16 %v4213, %v4205
    %v4630 = vpack.c.bf16 %v4222, %v4214
    %v4631 = vpack.c.bf16 %v4223, %v4215
    %v4632 = vpack.c.bf16 %v4224, %v4216
    %v4633 = vpack.c.bf16 %v4225, %v4217
    %v4634 = vpack.c.bf16 %v4226, %v4218
    %v4635 = vpack.c.bf16 %v4227, %v4219
    %v4636 = vpack.c.bf16 %v4228, %v4220
    %v4637 = vpack.c.bf16 %v4229, %v4221
    %v4638 = vpack.c.bf16 %v4238, %v4230
    %v4639 = vpack.c.bf16 %v4239, %v4231
    %v4640 = vpack.c.bf16 %v4240, %v4232
    %v4641 = vpack.c.bf16 %v4241, %v4233
    %v4642 = vpack.c.bf16 %v4242, %v4234
    %v4643 = vpack.c.bf16 %v4243, %v4235
    %v4644 = vpack.c.bf16 %v4244, %v4236
    %v4645 = vpack.c.bf16 %v4245, %v4237
    %v4646 = vpack.c.bf16 %v4254, %v4246
    %v4647 = vpack.c.bf16 %v4255, %v4247
    %v4648 = vpack.c.bf16 %v4256, %v4248
    %v4649 = vpack.c.bf16 %v4257, %v4249
    %v4650 = vpack.c.bf16 %v4258, %v4250
    %v4651 = vpack.c.bf16 %v4259, %v4251
    %v4652 = vpack.c.bf16 %v4260, %v4252
    %v4653 = vpack.c.bf16 %v4261, %v4253
    %v4654 = vpack.c.bf16 %v4270, %v4262
    %v4655 = vpack.c.bf16 %v4271, %v4263
    %v4656 = vpack.c.bf16 %v4272, %v4264
    %v4657 = vpack.c.bf16 %v4273, %v4265
    %v4658 = vpack.c.bf16 %v4274, %v4266
    %v4659 = vpack.c.bf16 %v4275, %v4267
    %v4660 = vpack.c.bf16 %v4276, %v4268
    %v4661 = vpack.c.bf16 %v4277, %v4269
    %v4662 = vpack.c.bf16 %v4286, %v4278
    %v4663 = vpack.c.bf16 %v4287, %v4279
    %v4664 = vpack.c.bf16 %v4288, %v4280
    %v4665 = vpack.c.bf16 %v4289, %v4281
    %v4666 = vpack.c.bf16 %v4290, %v4282
    %v4667 = vpack.c.bf16 %v4291, %v4283
    %v4668 = vpack.c.bf16 %v4292, %v4284
    %v4669 = vpack.c.bf16 %v4293, %v4285
    %v4670 = vpack.c.bf16 %v4302, %v4294
    %v4671 = vpack.c.bf16 %v4303, %v4295
    %v4672 = vpack.c.bf16 %v4304, %v4296
    %v4673 = vpack.c.bf16 %v4305, %v4297
    %v4674 = vpack.c.bf16 %v4306, %v4298
    %v4675 = vpack.c.bf16 %v4307, %v4299
    %v4676 = vpack.c.bf16 %v4308, %v4300
    %v4677 = vpack.c.bf16 %v4309, %v4301
    %v4678 = vpack.c.bf16 %v4318, %v4310
    %v4679 = vpack.c.bf16 %v4319, %v4311
    %v4680 = vpack.c.bf16 %v4320, %v4312
    %v4681 = vpack.c.bf16 %v4321, %v4313
    %v4682 = vpack.c.bf16 %v4322, %v4314
    %v4683 = vpack.c.bf16 %v4323, %v4315
    %v4684 = vpack.c.bf16 %v4324, %v4316
    %v4685 = vpack.c.bf16 %v4325, %v4317
    %v4686 = vpack.c.bf16 %v4334, %v4326
    %v4687 = vpack.c.bf16 %v4335, %v4327
    %v4688 = vpack.c.bf16 %v4336, %v4328
    %v4689 = vpack.c.bf16 %v4337, %v4329
    %v4690 = vpack.c.bf16 %v4338, %v4330
    %v4691 = vpack.c.bf16 %v4339, %v4331
    %v4692 = vpack.c.bf16 %v4340, %v4332
    %v4693 = vpack.c.bf16 %v4341, %v4333
    %v4694 = vpack.c.bf16 %v4350, %v4342
    %v4695 = vpack.c.bf16 %v4351, %v4343
    %v4696 = vpack.c.bf16 %v4352, %v4344
    %v4697 = vpack.c.bf16 %v4353, %v4345
    %v4698 = vpack.c.bf16 %v4354, %v4346
    %v4699 = vpack.c.bf16 %v4355, %v4347
    %v4700 = vpack.c.bf16 %v4356, %v4348
    %v4701 = vpack.c.bf16 %v4357, %v4349
    %v4702 = vpack.c.bf16 %v4366, %v4358
    %v4703 = vpack.c.bf16 %v4367, %v4359
    %v4704 = vpack.c.bf16 %v4368, %v4360
    %v4705 = vpack.c.bf16 %v4369, %v4361
    %v4706 = vpack.c.bf16 %v4370, %v4362
    %v4707 = vpack.c.bf16 %v4371, %v4363
    %v4708 = vpack.c.bf16 %v4372, %v4364
    %v4709 = vpack.c.bf16 %v4373, %v4365
    %v4710 = vpack.c.bf16 %v4382, %v4374
    %v4711 = vpack.c.bf16 %v4383, %v4375
    %v4712 = vpack.c.bf16 %v4384, %v4376
    %v4713 = vpack.c.bf16 %v4385, %v4377
    %v4714 = vpack.c.bf16 %v4386, %v4378
    %v4715 = vpack.c.bf16 %v4387, %v4379
    %v4716 = vpack.c.bf16 %v4388, %v4380
    %v4717 = vpack.c.bf16 %v4389, %v4381
    %v4718 = vpack.c.bf16 %v4398, %v4390
    %v4719 = vpack.c.bf16 %v4399, %v4391
    %v4720 = vpack.c.bf16 %v4400, %v4392
    %v4721 = vpack.c.bf16 %v4401, %v4393
    %v4722 = vpack.c.bf16 %v4402, %v4394
    %v4723 = vpack.c.bf16 %v4403, %v4395
    %v4724 = vpack.c.bf16 %v4404, %v4396
    %v4725 = vpack.c.bf16 %v4405, %v4397
    %v4726 = vpack.c.bf16 %v4414, %v4406
    %v4727 = vpack.c.bf16 %v4415, %v4407
    %v4728 = vpack.c.bf16 %v4416, %v4408
    %v4729 = vpack.c.bf16 %v4417, %v4409
    %v4730 = vpack.c.bf16 %v4418, %v4410
    %v4731 = vpack.c.bf16 %v4419, %v4411
    %v4732 = vpack.c.bf16 %v4420, %v4412
    %v4733 = vpack.c.bf16 %v4421, %v4413
    %v4734 = vpack.c.bf16 %v4430, %v4422
    %v4735 = vpack.c.bf16 %v4431, %v4423
    %v4736 = vpack.c.bf16 %v4432, %v4424
    %v4737 = vpack.c.bf16 %v4433, %v4425
    %v4738 = vpack.c.bf16 %v4434, %v4426
    %v4739 = vpack.c.bf16 %v4435, %v4427
    %v4740 = vpack.c.bf16 %v4436, %v4428
    %v4741 = vpack.c.bf16 %v4437, %v4429
    %v4742 = vpack.c.bf16 %v4446, %v4438
    %v4743 = vpack.c.bf16 %v4447, %v4439
    %v4744 = vpack.c.bf16 %v4448, %v4440
    %v4745 = vpack.c.bf16 %v4449, %v4441
    %v4746 = vpack.c.bf16 %v4450, %v4442
    %v4747 = vpack.c.bf16 %v4451, %v4443
    %v4748 = vpack.c.bf16 %v4452, %v4444
    %v4749 = vpack.c.bf16 %v4453, %v4445
    %v4750 = vpack.c.bf16 %v4462, %v4454
    %v4751 = vpack.c.bf16 %v4463, %v4455
    %v4752 = vpack.c.bf16 %v4464, %v4456
    %v4753 = vpack.c.bf16 %v4465, %v4457
    %v4754 = vpack.c.bf16 %v4466, %v4458
    %v4755 = vpack.c.bf16 %v4467, %v4459
    %v4756 = vpack.c.bf16 %v4468, %v4460
    %v4757 = vpack.c.bf16 %v4469, %v4461
    %v4758 = vpack.c.bf16 %v4478, %v4470
    %v4759 = vpack.c.bf16 %v4479, %v4471
    %v4760 = vpack.c.bf16 %v4480, %v4472
    %v4761 = vpack.c.bf16 %v4481, %v4473
    %v4762 = vpack.c.bf16 %v4482, %v4474
    %v4763 = vpack.c.bf16 %v4483, %v4475
    %v4764 = vpack.c.bf16 %v4484, %v4476
    %v4765 = vpack.c.bf16 %v4485, %v4477
    %v4766 = vpack.c.bf16 %v4494, %v4486
    %v4767 = vpack.c.bf16 %v4495, %v4487
    %v4768 = vpack.c.bf16 %v4496, %v4488
    %v4769 = vpack.c.bf16 %v4497, %v4489
    %v4770 = vpack.c.bf16 %v4498, %v4490
    %v4771 = vpack.c.bf16 %v4499, %v4491
    %v4772 = vpack.c.bf16 %v4500, %v4492
    %v4773 = vpack.c.bf16 %v4501, %v4493
    %v4774 = vpack.c.bf16 %v4510, %v4502
    %v4775 = vpack.c.bf16 %v4511, %v4503
    %v4776 = vpack.c.bf16 %v4512, %v4504
    %v4777 = vpack.c.bf16 %v4513, %v4505
    %v4778 = vpack.c.bf16 %v4514, %v4506
    %v4779 = vpack.c.bf16 %v4515, %v4507
    %v4780 = vpack.c.bf16 %v4516, %v4508
    %v4781 = vpack.c.bf16 %v4517, %v4509
    %v4782 = vpack.c.bf16 %v4526, %v4518
    %v4783 = vpack.c.bf16 %v4527, %v4519
    %v4784 = vpack.c.bf16 %v4528, %v4520
    %v4785 = vpack.c.bf16 %v4529, %v4521
    %v4786 = vpack.c.bf16 %v4530, %v4522
    %v4787 = vpack.c.bf16 %v4531, %v4523
    %v4788 = vpack.c.bf16 %v4532, %v4524
    %v4789 = vpack.c.bf16 %v4533, %v4525
    %v5046 = vunpack.c.l.b16 %v4534
    %v5047 = vunpack.c.l.b16 %v4535
    %v5048 = vunpack.c.l.b16 %v4536
    %v5049 = vunpack.c.l.b16 %v4537
    %v5050 = vunpack.c.l.b16 %v4538
    %v5051 = vunpack.c.l.b16 %v4539
    %v5052 = vunpack.c.l.b16 %v4540
    %v5053 = vunpack.c.l.b16 %v4541
    %v5054 = vunpack.c.h.b16 %v4534
    %v5055 = vunpack.c.h.b16 %v4535
    %v5056 = vunpack.c.h.b16 %v4536
    %v5057 = vunpack.c.h.b16 %v4537
    %v5058 = vunpack.c.h.b16 %v4538
    %v5059 = vunpack.c.h.b16 %v4539
    %v5060 = vunpack.c.h.b16 %v4540
    %v5061 = vunpack.c.h.b16 %v4541
    %v5062 = vunpack.c.l.b16 %v4542
    %v5063 = vunpack.c.l.b16 %v4543
    %v5064 = vunpack.c.l.b16 %v4544
    %v5065 = vunpack.c.l.b16 %v4545
    %v5066 = vunpack.c.l.b16 %v4546
    %v5067 = vunpack.c.l.b16 %v4547
    %v5068 = vunpack.c.l.b16 %v4548
    %v5069 = vunpack.c.l.b16 %v4549
    %v5070 = vunpack.c.h.b16 %v4542
    %v5071 = vunpack.c.h.b16 %v4543
    %v5072 = vunpack.c.h.b16 %v4544
    %v5073 = vunpack.c.h.b16 %v4545
    %v5074 = vunpack.c.h.b16 %v4546
    %v5075 = vunpack.c.h.b16 %v4547
    %v5076 = vunpack.c.h.b16 %v4548
    %v5077 = vunpack.c.h.b16 %v4549
    %v5078 = vunpack.c.l.b16 %v4550
    %v5079 = vunpack.c.l.b16 %v4551
    %v5080 = vunpack.c.l.b16 %v4552
    %v5081 = vunpack.c.l.b16 %v4553
    %v5082 = vunpack.c.l.b16 %v4554
    %v5083 = vunpack.c.l.b16 %v4555
    %v5084 = vunpack.c.l.b16 %v4556
    %v5085 = vunpack.c.l.b16 %v4557
    %v5086 = vunpack.c.h.b16 %v4550
    %v5087 = vunpack.c.h.b16 %v4551
    %v5088 = vunpack.c.h.b16 %v4552
    %v5089 = vunpack.c.h.b16 %v4553
    %v5090 = vunpack.c.h.b16 %v4554
    %v5091 = vunpack.c.h.b16 %v4555
    %v5092 = vunpack.c.h.b16 %v4556
    %v5093 = vunpack.c.h.b16 %v4557
    %v5094 = vunpack.c.l.b16 %v4558
    %v5095 = vunpack.c.l.b16 %v4559
    %v5096 = vunpack.c.l.b16 %v4560
    %v5097 = vunpack.c.l.b16 %v4561
    %v5098 = vunpack.c.l.b16 %v4562
    %v5099 = vunpack.c.l.b16 %v4563
    %v5100 = vunpack.c.l.b16 %v4564
    %v5101 = vunpack.c.l.b16 %v4565
    %v5102 = vunpack.c.h.b16 %v4558
    %v5103 = vunpack.c.h.b16 %v4559
    %v5104 = vunpack.c.h.b16 %v4560
    %v5105 = vunpack.c.h.b16 %v4561
    %v5106 = vunpack.c.h.b16 %v4562
    %v5107 = vunpack.c.h.b16 %v4563
    %v5108 = vunpack.c.h.b16 %v4564
    %v5109 = vunpack.c.h.b16 %v4565
    %v5110 = vunpack.c.l.b16 %v4566
    %v5111 = vunpack.c.l.b16 %v4567
    %v5112 = vunpack.c.l.b16 %v4568
    %v5113 = vunpack.c.l.b16 %v4569
    %v5114 = vunpack.c.l.b16 %v4570
    %v5115 = vunpack.c.l.b16 %v4571
    %v5116 = vunpack.c.l.b16 %v4572
    %v5117 = vunpack.c.l.b16 %v4573
    %v5118 = vunpack.c.h.b16 %v4566
    %v5119 = vunpack.c.h.b16 %v4567
    %v5120 = vunpack.c.h.b16 %v4568
    %v5121 = vunpack.c.h.b16 %v4569
    %v5122 = vunpack.c.h.b16 %v4570
    %v5123 = vunpack.c.h.b16 %v4571
    %v5124 = vunpack.c.h.b16 %v4572
    %v5125 = vunpack.c.h.b16 %v4573
    %v5126 = vunpack.c.l.b16 %v4574
    %v5127 = vunpack.c.l.b16 %v4575
    %v5128 = vunpack.c.l.b16 %v4576
    %v5129 = vunpack.c.l.b16 %v4577
    %v5130 = vunpack.c.l.b16 %v4578
    %v5131 = vunpack.c.l.b16 %v4579
    %v5132 = vunpack.c.l.b16 %v4580
    %v5133 = vunpack.c.l.b16 %v4581
    %v5134 = vunpack.c.h.b16 %v4574
    %v5135 = vunpack.c.h.b16 %v4575
    %v5136 = vunpack.c.h.b16 %v4576
    %v5137 = vunpack.c.h.b16 %v4577
    %v5138 = vunpack.c.h.b16 %v4578
    %v5139 = vunpack.c.h.b16 %v4579
    %v5140 = vunpack.c.h.b16 %v4580
    %v5141 = vunpack.c.h.b16 %v4581
    %v5142 = vunpack.c.l.b16 %v4582
    %v5143 = vunpack.c.l.b16 %v4583
    %v5144 = vunpack.c.l.b16 %v4584
    %v5145 = vunpack.c.l.b16 %v4585
    %v5146 = vunpack.c.l.b16 %v4586
    %v5147 = vunpack.c.l.b16 %v4587
    %v5148 = vunpack.c.l.b16 %v4588
    %v5149 = vunpack.c.l.b16 %v4589
    %v5150 = vunpack.c.h.b16 %v4582
    %v5151 = vunpack.c.h.b16 %v4583
    %v5152 = vunpack.c.h.b16 %v4584
    %v5153 = vunpack.c.h.b16 %v4585
    %v5154 = vunpack.c.h.b16 %v4586
    %v5155 = vunpack.c.h.b16 %v4587
    %v5156 = vunpack.c.h.b16 %v4588
    %v5157 = vunpack.c.h.b16 %v4589
    %v5158 = vunpack.c.l.b16 %v4590
    %v5159 = vunpack.c.l.b16 %v4591
    %v5160 = vunpack.c.l.b16 %v4592
    %v5161 = vunpack.c.l.b16 %v4593
    %v5162 = vunpack.c.l.b16 %v4594
    %v5163 = vunpack.c.l.b16 %v4595
    %v5164 = vunpack.c.l.b16 %v4596
    %v5165 = vunpack.c.l.b16 %v4597
    %v5166 = vunpack.c.h.b16 %v4590
    %v5167 = vunpack.c.h.b16 %v4591
    %v5168 = vunpack.c.h.b16 %v4592
    %v5169 = vunpack.c.h.b16 %v4593
    %v5170 = vunpack.c.h.b16 %v4594
    %v5171 = vunpack.c.h.b16 %v4595
    %v5172 = vunpack.c.h.b16 %v4596
    %v5173 = vunpack.c.h.b16 %v4597
    %v5174 = vunpack.c.l.b16 %v4598
    %v5175 = vunpack.c.l.b16 %v4599
    %v5176 = vunpack.c.l.b16 %v4600
    %v5177 = vunpack.c.l.b16 %v4601
    %v5178 = vunpack.c.l.b16 %v4602
    %v5179 = vunpack.c.l.b16 %v4603
    %v5180 = vunpack.c.l.b16 %v4604
    %v5181 = vunpack.c.l.b16 %v4605
    %v5182 = vunpack.c.h.b16 %v4598
    %v5183 = vunpack.c.h.b16 %v4599
    %v5184 = vunpack.c.h.b16 %v4600
    %v5185 = vunpack.c.h.b16 %v4601
    %v5186 = vunpack.c.h.b16 %v4602
    %v5187 = vunpack.c.h.b16 %v4603
    %v5188 = vunpack.c.h.b16 %v4604
    %v5189 = vunpack.c.h.b16 %v4605
    %v5190 = vunpack.c.l.b16 %v4606
    %v5191 = vunpack.c.l.b16 %v4607
    %v5192 = vunpack.c.l.b16 %v4608
    %v5193 = vunpack.c.l.b16 %v4609
    %v5194 = vunpack.c.l.b16 %v4610
    %v5195 = vunpack.c.l.b16 %v4611
    %v5196 = vunpack.c.l.b16 %v4612
    %v5197 = vunpack.c.l.b16 %v4613
    %v5198 = vunpack.c.h.b16 %v4606
    %v5199 = vunpack.c.h.b16 %v4607
    %v5200 = vunpack.c.h.b16 %v4608
    %v5201 = vunpack.c.h.b16 %v4609
    %v5202 = vunpack.c.h.b16 %v4610
    %v5203 = vunpack.c.h.b16 %v4611
    %v5204 = vunpack.c.h.b16 %v4612
    %v5205 = vunpack.c.h.b16 %v4613
    %v5206 = vunpack.c.l.b16 %v4614
    %v5207 = vunpack.c.l.b16 %v4615
    %v5208 = vunpack.c.l.b16 %v4616
    %v5209 = vunpack.c.l.b16 %v4617
    %v5210 = vunpack.c.l.b16 %v4618
    %v5211 = vunpack.c.l.b16 %v4619
    %v5212 = vunpack.c.l.b16 %v4620
    %v5213 = vunpack.c.l.b16 %v4621
    %v5214 = vunpack.c.h.b16 %v4614
    %v5215 = vunpack.c.h.b16 %v4615
    %v5216 = vunpack.c.h.b16 %v4616
    %v5217 = vunpack.c.h.b16 %v4617
    %v5218 = vunpack.c.h.b16 %v4618
    %v5219 = vunpack.c.h.b16 %v4619
    %v5220 = vunpack.c.h.b16 %v4620
    %v5221 = vunpack.c.h.b16 %v4621
    %v5222 = vunpack.c.l.b16 %v4622
    %v5223 = vunpack.c.l.b16 %v4623
    %v5224 = vunpack.c.l.b16 %v4624
    %v5225 = vunpack.c.l.b16 %v4625
    %v5226 = vunpack.c.l.b16 %v4626
    %v5227 = vunpack.c.l.b16 %v4627
    %v5228 = vunpack.c.l.b16 %v4628
    %v5229 = vunpack.c.l.b16 %v4629
    %v5230 = vunpack.c.h.b16 %v4622
    %v5231 = vunpack.c.h.b16 %v4623
    %v5232 = vunpack.c.h.b16 %v4624
    %v5233 = vunpack.c.h.b16 %v4625
    %v5234 = vunpack.c.h.b16 %v4626
    %v5235 = vunpack.c.h.b16 %v4627
    %v5236 = vunpack.c.h.b16 %v4628
    %v5237 = vunpack.c.h.b16 %v4629
    %v5238 = vunpack.c.l.b16 %v4630
    %v5239 = vunpack.c.l.b16 %v4631
    %v5240 = vunpack.c.l.b16 %v4632
    %v5241 = vunpack.c.l.b16 %v4633
    %v5242 = vunpack.c.l.b16 %v4634
    %v5243 = vunpack.c.l.b16 %v4635
    %v5244 = vunpack.c.l.b16 %v4636
    %v5245 = vunpack.c.l.b16 %v4637
    %v5246 = vunpack.c.h.b16 %v4630
    %v5247 = vunpack.c.h.b16 %v4631
    %v5248 = vunpack.c.h.b16 %v4632
    %v5249 = vunpack.c.h.b16 %v4633
    %v5250 = vunpack.c.h.b16 %v4634
    %v5251 = vunpack.c.h.b16 %v4635
    %v5252 = vunpack.c.h.b16 %v4636
    %v5253 = vunpack.c.h.b16 %v4637
    %v5254 = vunpack.c.l.b16 %v4638
    %v5255 = vunpack.c.l.b16 %v4639
    %v5256 = vunpack.c.l.b16 %v4640
    %v5257 = vunpack.c.l.b16 %v4641
    %v5258 = vunpack.c.l.b16 %v4642
    %v5259 = vunpack.c.l.b16 %v4643
    %v5260 = vunpack.c.l.b16 %v4644
    %v5261 = vunpack.c.l.b16 %v4645
    %v5262 = vunpack.c.h.b16 %v4638
    %v5263 = vunpack.c.h.b16 %v4639
    %v5264 = vunpack.c.h.b16 %v4640
    %v5265 = vunpack.c.h.b16 %v4641
    %v5266 = vunpack.c.h.b16 %v4642
    %v5267 = vunpack.c.h.b16 %v4643
    %v5268 = vunpack.c.h.b16 %v4644
    %v5269 = vunpack.c.h.b16 %v4645
    %v5270 = vunpack.c.l.b16 %v4646
    %v5271 = vunpack.c.l.b16 %v4647
    %v5272 = vunpack.c.l.b16 %v4648
    %v5273 = vunpack.c.l.b16 %v4649
    %v5274 = vunpack.c.l.b16 %v4650
    %v5275 = vunpack.c.l.b16 %v4651
    %v5276 = vunpack.c.l.b16 %v4652
    %v5277 = vunpack.c.l.b16 %v4653
    %v5278 = vunpack.c.h.b16 %v4646
    %v5279 = vunpack.c.h.b16 %v4647
    %v5280 = vunpack.c.h.b16 %v4648
    %v5281 = vunpack.c.h.b16 %v4649
    %v5282 = vunpack.c.h.b16 %v4650
    %v5283 = vunpack.c.h.b16 %v4651
    %v5284 = vunpack.c.h.b16 %v4652
    %v5285 = vunpack.c.h.b16 %v4653
    %v5286 = vunpack.c.l.b16 %v4654
    %v5287 = vunpack.c.l.b16 %v4655
    %v5288 = vunpack.c.l.b16 %v4656
    %v5289 = vunpack.c.l.b16 %v4657
    %v5290 = vunpack.c.l.b16 %v4658
    %v5291 = vunpack.c.l.b16 %v4659
    %v5292 = vunpack.c.l.b16 %v4660
    %v5293 = vunpack.c.l.b16 %v4661
    %v5294 = vunpack.c.h.b16 %v4654
    %v5295 = vunpack.c.h.b16 %v4655
    %v5296 = vunpack.c.h.b16 %v4656
    %v5297 = vunpack.c.h.b16 %v4657
    %v5298 = vunpack.c.h.b16 %v4658
    %v5299 = vunpack.c.h.b16 %v4659
    %v5300 = vunpack.c.h.b16 %v4660
    %v5301 = vunpack.c.h.b16 %v4661
    %v5302 = vunpack.c.l.b16 %v4662
    %v5303 = vunpack.c.l.b16 %v4663
    %v5304 = vunpack.c.l.b16 %v4664
    %v5305 = vunpack.c.l.b16 %v4665
    %v5306 = vunpack.c.l.b16 %v4666
    %v5307 = vunpack.c.l.b16 %v4667
    %v5308 = vunpack.c.l.b16 %v4668
    %v5309 = vunpack.c.l.b16 %v4669
    %v5310 = vunpack.c.h.b16 %v4662
    %v5311 = vunpack.c.h.b16 %v4663
    %v5312 = vunpack.c.h.b16 %v4664
    %v5313 = vunpack.c.h.b16 %v4665
    %v5314 = vunpack.c.h.b16 %v4666
    %v5315 = vunpack.c.h.b16 %v4667
    %v5316 = vunpack.c.h.b16 %v4668
    %v5317 = vunpack.c.h.b16 %v4669
    %v5318 = vunpack.c.l.b16 %v4670
    %v5319 = vunpack.c.l.b16 %v4671
    %v5320 = vunpack.c.l.b16 %v4672
    %v5321 = vunpack.c.l.b16 %v4673
    %v5322 = vunpack.c.l.b16 %v4674
    %v5323 = vunpack.c.l.b16 %v4675
    %v5324 = vunpack.c.l.b16 %v4676
    %v5325 = vunpack.c.l.b16 %v4677
    %v5326 = vunpack.c.h.b16 %v4670
    %v5327 = vunpack.c.h.b16 %v4671
    %v5328 = vunpack.c.h.b16 %v4672
    %v5329 = vunpack.c.h.b16 %v4673
    %v5330 = vunpack.c.h.b16 %v4674
    %v5331 = vunpack.c.h.b16 %v4675
    %v5332 = vunpack.c.h.b16 %v4676
    %v5333 = vunpack.c.h.b16 %v4677
    %v5334 = vunpack.c.l.b16 %v4678
    %v5335 = vunpack.c.l.b16 %v4679
    %v5336 = vunpack.c.l.b16 %v4680
    %v5337 = vunpack.c.l.b16 %v4681
    %v5338 = vunpack.c.l.b16 %v4682
    %v5339 = vunpack.c.l.b16 %v4683
    %v5340 = vunpack.c.l.b16 %v4684
    %v5341 = vunpack.c.l.b16 %v4685
    %v5342 = vunpack.c.h.b16 %v4678
    %v5343 = vunpack.c.h.b16 %v4679
    %v5344 = vunpack.c.h.b16 %v4680
    %v5345 = vunpack.c.h.b16 %v4681
    %v5346 = vunpack.c.h.b16 %v4682
    %v5347 = vunpack.c.h.b16 %v4683
    %v5348 = vunpack.c.h.b16 %v4684
    %v5349 = vunpack.c.h.b16 %v4685
    %v5350 = vunpack.c.l.b16 %v4686
    %v5351 = vunpack.c.l.b16 %v4687
    %v5352 = vunpack.c.l.b16 %v4688
    %v5353 = vunpack.c.l.b16 %v4689
    %v5354 = vunpack.c.l.b16 %v4690
    %v5355 = vunpack.c.l.b16 %v4691
    %v5356 = vunpack.c.l.b16 %v4692
    %v5357 = vunpack.c.l.b16 %v4693
    %v5358 = vunpack.c.h.b16 %v4686
    %v5359 = vunpack.c.h.b16 %v4687
    %v5360 = vunpack.c.h.b16 %v4688
    %v5361 = vunpack.c.h.b16 %v4689
    %v5362 = vunpack.c.h.b16 %v4690
    %v5363 = vunpack.c.h.b16 %v4691
    %v5364 = vunpack.c.h.b16 %v4692
    %v5365 = vunpack.c.h.b16 %v4693
    %v5366 = vunpack.c.l.b16 %v4694
    %v5367 = vunpack.c.l.b16 %v4695
    %v5368 = vunpack.c.l.b16 %v4696
    %v5369 = vunpack.c.l.b16 %v4697
    %v5370 = vunpack.c.l.b16 %v4698
    %v5371 = vunpack.c.l.b16 %v4699
    %v5372 = vunpack.c.l.b16 %v4700
    %v5373 = vunpack.c.l.b16 %v4701
    %v5374 = vunpack.c.h.b16 %v4694
    %v5375 = vunpack.c.h.b16 %v4695
    %v5376 = vunpack.c.h.b16 %v4696
    %v5377 = vunpack.c.h.b16 %v4697
    %v5378 = vunpack.c.h.b16 %v4698
    %v5379 = vunpack.c.h.b16 %v4699
    %v5380 = vunpack.c.h.b16 %v4700
    %v5381 = vunpack.c.h.b16 %v4701
    %v5382 = vunpack.c.l.b16 %v4702
    %v5383 = vunpack.c.l.b16 %v4703
    %v5384 = vunpack.c.l.b16 %v4704
    %v5385 = vunpack.c.l.b16 %v4705
    %v5386 = vunpack.c.l.b16 %v4706
    %v5387 = vunpack.c.l.b16 %v4707
    %v5388 = vunpack.c.l.b16 %v4708
    %v5389 = vunpack.c.l.b16 %v4709
    %v5390 = vunpack.c.h.b16 %v4702
    %v5391 = vunpack.c.h.b16 %v4703
    %v5392 = vunpack.c.h.b16 %v4704
    %v5393 = vunpack.c.h.b16 %v4705
    %v5394 = vunpack.c.h.b16 %v4706
    %v5395 = vunpack.c.h.b16 %v4707
    %v5396 = vunpack.c.h.b16 %v4708
    %v5397 = vunpack.c.h.b16 %v4709
    %v5398 = vunpack.c.l.b16 %v4710
    %v5399 = vunpack.c.l.b16 %v4711
    %v5400 = vunpack.c.l.b16 %v4712
    %v5401 = vunpack.c.l.b16 %v4713
    %v5402 = vunpack.c.l.b16 %v4714
    %v5403 = vunpack.c.l.b16 %v4715
    %v5404 = vunpack.c.l.b16 %v4716
    %v5405 = vunpack.c.l.b16 %v4717
    %v5406 = vunpack.c.h.b16 %v4710
    %v5407 = vunpack.c.h.b16 %v4711
    %v5408 = vunpack.c.h.b16 %v4712
    %v5409 = vunpack.c.h.b16 %v4713
    %v5410 = vunpack.c.h.b16 %v4714
    %v5411 = vunpack.c.h.b16 %v4715
    %v5412 = vunpack.c.h.b16 %v4716
    %v5413 = vunpack.c.h.b16 %v4717
    %v5414 = vunpack.c.l.b16 %v4718
    %v5415 = vunpack.c.l.b16 %v4719
    %v5416 = vunpack.c.l.b16 %v4720
    %v5417 = vunpack.c.l.b16 %v4721
    %v5418 = vunpack.c.l.b16 %v4722
    %v5419 = vunpack.c.l.b16 %v4723
    %v5420 = vunpack.c.l.b16 %v4724
    %v5421 = vunpack.c.l.b16 %v4725
    %v5422 = vunpack.c.h.b16 %v4718
    %v5423 = vunpack.c.h.b16 %v4719
    %v5424 = vunpack.c.h.b16 %v4720
    %v5425 = vunpack.c.h.b16 %v4721
    %v5426 = vunpack.c.h.b16 %v4722
    %v5427 = vunpack.c.h.b16 %v4723
    %v5428 = vunpack.c.h.b16 %v4724
    %v5429 = vunpack.c.h.b16 %v4725
    %v5430 = vunpack.c.l.b16 %v4726
    %v5431 = vunpack.c.l.b16 %v4727
    %v5432 = vunpack.c.l.b16 %v4728
    %v5433 = vunpack.c.l.b16 %v4729
    %v5434 = vunpack.c.l.b16 %v4730
    %v5435 = vunpack.c.l.b16 %v4731
    %v5436 = vunpack.c.l.b16 %v4732
    %v5437 = vunpack.c.l.b16 %v4733
    %v5438 = vunpack.c.h.b16 %v4726
    %v5439 = vunpack.c.h.b16 %v4727
    %v5440 = vunpack.c.h.b16 %v4728
    %v5441 = vunpack.c.h.b16 %v4729
    %v5442 = vunpack.c.h.b16 %v4730
    %v5443 = vunpack.c.h.b16 %v4731
    %v5444 = vunpack.c.h.b16 %v4732
    %v5445 = vunpack.c.h.b16 %v4733
    %v5446 = vunpack.c.l.b16 %v4734
    %v5447 = vunpack.c.l.b16 %v4735
    %v5448 = vunpack.c.l.b16 %v4736
    %v5449 = vunpack.c.l.b16 %v4737
    %v5450 = vunpack.c.l.b16 %v4738
    %v5451 = vunpack.c.l.b16 %v4739
    %v5452 = vunpack.c.l.b16 %v4740
    %v5453 = vunpack.c.l.b16 %v4741
    %v5454 = vunpack.c.h.b16 %v4734
    %v5455 = vunpack.c.h.b16 %v4735
    %v5456 = vunpack.c.h.b16 %v4736
    %v5457 = vunpack.c.h.b16 %v4737
    %v5458 = vunpack.c.h.b16 %v4738
    %v5459 = vunpack.c.h.b16 %v4739
    %v5460 = vunpack.c.h.b16 %v4740
    %v5461 = vunpack.c.h.b16 %v4741
    %v5462 = vunpack.c.l.b16 %v4742
    %v5463 = vunpack.c.l.b16 %v4743
    %v5464 = vunpack.c.l.b16 %v4744
    %v5465 = vunpack.c.l.b16 %v4745
    %v5466 = vunpack.c.l.b16 %v4746
    %v5467 = vunpack.c.l.b16 %v4747
    %v5468 = vunpack.c.l.b16 %v4748
    %v5469 = vunpack.c.l.b16 %v4749
    %v5470 = vunpack.c.h.b16 %v4742
    %v5471 = vunpack.c.h.b16 %v4743
    %v5472 = vunpack.c.h.b16 %v4744
    %v5473 = vunpack.c.h.b16 %v4745
    %v5474 = vunpack.c.h.b16 %v4746
    %v5475 = vunpack.c.h.b16 %v4747
    %v5476 = vunpack.c.h.b16 %v4748
    %v5477 = vunpack.c.h.b16 %v4749
    %v5478 = vunpack.c.l.b16 %v4750
    %v5479 = vunpack.c.l.b16 %v4751
    %v5480 = vunpack.c.l.b16 %v4752
    %v5481 = vunpack.c.l.b16 %v4753
    %v5482 = vunpack.c.l.b16 %v4754
    %v5483 = vunpack.c.l.b16 %v4755
    %v5484 = vunpack.c.l.b16 %v4756
    %v5485 = vunpack.c.l.b16 %v4757
    %v5486 = vunpack.c.h.b16 %v4750
    %v5487 = vunpack.c.h.b16 %v4751
    %v5488 = vunpack.c.h.b16 %v4752
    %v5489 = vunpack.c.h.b16 %v4753
    %v5490 = vunpack.c.h.b16 %v4754
    %v5491 = vunpack.c.h.b16 %v4755
    %v5492 = vunpack.c.h.b16 %v4756
    %v5493 = vunpack.c.h.b16 %v4757
    %v5494 = vunpack.c.l.b16 %v4758
    %v5495 = vunpack.c.l.b16 %v4759
    %v5496 = vunpack.c.l.b16 %v4760
    %v5497 = vunpack.c.l.b16 %v4761
    %v5498 = vunpack.c.l.b16 %v4762
    %v5499 = vunpack.c.l.b16 %v4763
    %v5500 = vunpack.c.l.b16 %v4764
    %v5501 = vunpack.c.l.b16 %v4765
    %v5502 = vunpack.c.h.b16 %v4758
    %v5503 = vunpack.c.h.b16 %v4759
    %v5504 = vunpack.c.h.b16 %v4760
    %v5505 = vunpack.c.h.b16 %v4761
    %v5506 = vunpack.c.h.b16 %v4762
    %v5507 = vunpack.c.h.b16 %v4763
    %v5508 = vunpack.c.h.b16 %v4764
    %v5509 = vunpack.c.h.b16 %v4765
    %v5510 = vunpack.c.l.b16 %v4766
    %v5511 = vunpack.c.l.b16 %v4767
    %v5512 = vunpack.c.l.b16 %v4768
    %v5513 = vunpack.c.l.b16 %v4769
    %v5514 = vunpack.c.l.b16 %v4770
    %v5515 = vunpack.c.l.b16 %v4771
    %v5516 = vunpack.c.l.b16 %v4772
    %v5517 = vunpack.c.l.b16 %v4773
    %v5518 = vunpack.c.h.b16 %v4766
    %v5519 = vunpack.c.h.b16 %v4767
    %v5520 = vunpack.c.h.b16 %v4768
    %v5521 = vunpack.c.h.b16 %v4769
    %v5522 = vunpack.c.h.b16 %v4770
    %v5523 = vunpack.c.h.b16 %v4771
    %v5524 = vunpack.c.h.b16 %v4772
    %v5525 = vunpack.c.h.b16 %v4773
    %v5526 = vunpack.c.l.b16 %v4774
    %v5527 = vunpack.c.l.b16 %v4775
    %v5528 = vunpack.c.l.b16 %v4776
    %v5529 = vunpack.c.l.b16 %v4777
    %v5530 = vunpack.c.l.b16 %v4778
    %v5531 = vunpack.c.l.b16 %v4779
    %v5532 = vunpack.c.l.b16 %v4780
    %v5533 = vunpack.c.l.b16 %v4781
    %v5534 = vunpack.c.h.b16 %v4774
    %v5535 = vunpack.c.h.b16 %v4775
    %v5536 = vunpack.c.h.b16 %v4776
    %v5537 = vunpack.c.h.b16 %v4777
    %v5538 = vunpack.c.h.b16 %v4778
    %v5539 = vunpack.c.h.b16 %v4779
    %v5540 = vunpack.c.h.b16 %v4780
    %v5541 = vunpack.c.h.b16 %v4781
    %v5542 = vunpack.c.l.b16 %v4782
    %v5543 = vunpack.c.l.b16 %v4783
    %v5544 = vunpack.c.l.b16 %v4784
    %v5545 = vunpack.c.l.b16 %v4785
    %v5546 = vunpack.c.l.b16 %v4786
    %v5547 = vunpack.c.l.b16 %v4787
    %v5548 = vunpack.c.l.b16 %v4788
    %v5549 = vunpack.c.l.b16 %v4789
    %v5550 = vunpack.c.h.b16 %v4782
    %v5551 = vunpack.c.h.b16 %v4783
    %v5552 = vunpack.c.h.b16 %v4784
    %v5553 = vunpack.c.h.b16 %v4785
    %v5554 = vunpack.c.h.b16 %v4786
    %v5555 = vunpack.c.h.b16 %v4787
    %v5556 = vunpack.c.h.b16 %v4788
    %v5557 = vunpack.c.h.b16 %v4789
    %v5558 = vpack.c.b16 %v5047, %v5046
    %v5559 = vpack.c.b16 %v5049, %v5048
    %v5560 = vpack.c.b16 %v5051, %v5050
    %v5561 = vpack.c.b16 %v5053, %v5052
    %v5562 = vpack.c.b16 %v5055, %v5054
    %v5563 = vpack.c.b16 %v5057, %v5056
    %v5564 = vpack.c.b16 %v5059, %v5058
    %v5565 = vpack.c.b16 %v5061, %v5060
    %v5566 = vpack.c.b16 %v5063, %v5062
    %v5567 = vpack.c.b16 %v5065, %v5064
    %v5568 = vpack.c.b16 %v5067, %v5066
    %v5569 = vpack.c.b16 %v5069, %v5068
    %v5570 = vpack.c.b16 %v5071, %v5070
    %v5571 = vpack.c.b16 %v5073, %v5072
    %v5572 = vpack.c.b16 %v5075, %v5074
    %v5573 = vpack.c.b16 %v5077, %v5076
    %v5574 = vpack.c.b16 %v5079, %v5078
    %v5575 = vpack.c.b16 %v5081, %v5080
    %v5576 = vpack.c.b16 %v5083, %v5082
    %v5577 = vpack.c.b16 %v5085, %v5084
    %v5578 = vpack.c.b16 %v5087, %v5086
    %v5579 = vpack.c.b16 %v5089, %v5088
    %v5580 = vpack.c.b16 %v5091, %v5090
    %v5581 = vpack.c.b16 %v5093, %v5092
    %v5582 = vpack.c.b16 %v5095, %v5094
    %v5583 = vpack.c.b16 %v5097, %v5096
    %v5584 = vpack.c.b16 %v5099, %v5098
    %v5585 = vpack.c.b16 %v5101, %v5100
    %v5586 = vpack.c.b16 %v5103, %v5102
    %v5587 = vpack.c.b16 %v5105, %v5104
    %v5588 = vpack.c.b16 %v5107, %v5106
    %v5589 = vpack.c.b16 %v5109, %v5108
    %v5590 = vpack.c.b16 %v5111, %v5110
    %v5591 = vpack.c.b16 %v5113, %v5112
    %v5592 = vpack.c.b16 %v5115, %v5114
    %v5593 = vpack.c.b16 %v5117, %v5116
    %v5594 = vpack.c.b16 %v5119, %v5118
    %v5595 = vpack.c.b16 %v5121, %v5120
    %v5596 = vpack.c.b16 %v5123, %v5122
    %v5597 = vpack.c.b16 %v5125, %v5124
    %v5598 = vpack.c.b16 %v5127, %v5126
    %v5599 = vpack.c.b16 %v5129, %v5128
    %v5600 = vpack.c.b16 %v5131, %v5130
    %v5601 = vpack.c.b16 %v5133, %v5132
    %v5602 = vpack.c.b16 %v5135, %v5134
    %v5603 = vpack.c.b16 %v5137, %v5136
    %v5604 = vpack.c.b16 %v5139, %v5138
    %v5605 = vpack.c.b16 %v5141, %v5140
    %v5606 = vpack.c.b16 %v5143, %v5142
    %v5607 = vpack.c.b16 %v5145, %v5144
    %v5608 = vpack.c.b16 %v5147, %v5146
    %v5609 = vpack.c.b16 %v5149, %v5148
    %v5610 = vpack.c.b16 %v5151, %v5150
    %v5611 = vpack.c.b16 %v5153, %v5152
    %v5612 = vpack.c.b16 %v5155, %v5154
    %v5613 = vpack.c.b16 %v5157, %v5156
    %v5614 = vpack.c.b16 %v5159, %v5158
    %v5615 = vpack.c.b16 %v5161, %v5160
    %v5616 = vpack.c.b16 %v5163, %v5162
    %v5617 = vpack.c.b16 %v5165, %v5164
    %v5618 = vpack.c.b16 %v5167, %v5166
    %v5619 = vpack.c.b16 %v5169, %v5168
    %v5620 = vpack.c.b16 %v5171, %v5170
    %v5621 = vpack.c.b16 %v5173, %v5172
    %v5622 = vpack.c.b16 %v5175, %v5174
    %v5623 = vpack.c.b16 %v5177, %v5176
    %v5624 = vpack.c.b16 %v5179, %v5178
    %v5625 = vpack.c.b16 %v5181, %v5180
    %v5626 = vpack.c.b16 %v5183, %v5182
    %v5627 = vpack.c.b16 %v5185, %v5184
    %v5628 = vpack.c.b16 %v5187, %v5186
    %v5629 = vpack.c.b16 %v5189, %v5188
    %v5630 = vpack.c.b16 %v5191, %v5190
    %v5631 = vpack.c.b16 %v5193, %v5192
    %v5632 = vpack.c.b16 %v5195, %v5194
    %v5633 = vpack.c.b16 %v5197, %v5196
    %v5634 = vpack.c.b16 %v5199, %v5198
    %v5635 = vpack.c.b16 %v5201, %v5200
    %v5636 = vpack.c.b16 %v5203, %v5202
    %v5637 = vpack.c.b16 %v5205, %v5204
    %v5638 = vpack.c.b16 %v5207, %v5206
    %v5639 = vpack.c.b16 %v5209, %v5208
    %v5640 = vpack.c.b16 %v5211, %v5210
    %v5641 = vpack.c.b16 %v5213, %v5212
    %v5642 = vpack.c.b16 %v5215, %v5214
    %v5643 = vpack.c.b16 %v5217, %v5216
    %v5644 = vpack.c.b16 %v5219, %v5218
    %v5645 = vpack.c.b16 %v5221, %v5220
    %v5646 = vpack.c.b16 %v5223, %v5222
    %v5647 = vpack.c.b16 %v5225, %v5224
    %v5648 = vpack.c.b16 %v5227, %v5226
    %v5649 = vpack.c.b16 %v5229, %v5228
    %v5650 = vpack.c.b16 %v5231, %v5230
    %v5651 = vpack.c.b16 %v5233, %v5232
    %v5652 = vpack.c.b16 %v5235, %v5234
    %v5653 = vpack.c.b16 %v5237, %v5236
    %v5654 = vpack.c.b16 %v5239, %v5238
    %v5655 = vpack.c.b16 %v5241, %v5240
    %v5656 = vpack.c.b16 %v5243, %v5242
    %v5657 = vpack.c.b16 %v5245, %v5244
    %v5658 = vpack.c.b16 %v5247, %v5246
    %v5659 = vpack.c.b16 %v5249, %v5248
    %v5660 = vpack.c.b16 %v5251, %v5250
    %v5661 = vpack.c.b16 %v5253, %v5252
    %v5662 = vpack.c.b16 %v5255, %v5254
    %v5663 = vpack.c.b16 %v5257, %v5256
    %v5664 = vpack.c.b16 %v5259, %v5258
    %v5665 = vpack.c.b16 %v5261, %v5260
    %v5666 = vpack.c.b16 %v5263, %v5262
    %v5667 = vpack.c.b16 %v5265, %v5264
    %v5668 = vpack.c.b16 %v5267, %v5266
    %v5669 = vpack.c.b16 %v5269, %v5268
    %v5670 = vpack.c.b16 %v5271, %v5270
    %v5671 = vpack.c.b16 %v5273, %v5272
    %v5672 = vpack.c.b16 %v5275, %v5274
    %v5673 = vpack.c.b16 %v5277, %v5276
    %v5674 = vpack.c.b16 %v5279, %v5278
    %v5675 = vpack.c.b16 %v5281, %v5280
    %v5676 = vpack.c.b16 %v5283, %v5282
    %v5677 = vpack.c.b16 %v5285, %v5284
    %v5678 = vpack.c.b16 %v5287, %v5286
    %v5679 = vpack.c.b16 %v5289, %v5288
    %v5680 = vpack.c.b16 %v5291, %v5290
    %v5681 = vpack.c.b16 %v5293, %v5292
    %v5682 = vpack.c.b16 %v5295, %v5294
    %v5683 = vpack.c.b16 %v5297, %v5296
    %v5684 = vpack.c.b16 %v5299, %v5298
    %v5685 = vpack.c.b16 %v5301, %v5300
    %v5686 = vpack.c.b16 %v5303, %v5302
    %v5687 = vpack.c.b16 %v5305, %v5304
    %v5688 = vpack.c.b16 %v5307, %v5306
    %v5689 = vpack.c.b16 %v5309, %v5308
    %v5690 = vpack.c.b16 %v5311, %v5310
    %v5691 = vpack.c.b16 %v5313, %v5312
    %v5692 = vpack.c.b16 %v5315, %v5314
    %v5693 = vpack.c.b16 %v5317, %v5316
    %v5694 = vpack.c.b16 %v5319, %v5318
    %v5695 = vpack.c.b16 %v5321, %v5320
    %v5696 = vpack.c.b16 %v5323, %v5322
    %v5697 = vpack.c.b16 %v5325, %v5324
    %v5698 = vpack.c.b16 %v5327, %v5326
    %v5699 = vpack.c.b16 %v5329, %v5328
    %v5700 = vpack.c.b16 %v5331, %v5330
    %v5701 = vpack.c.b16 %v5333, %v5332
    %v5702 = vpack.c.b16 %v5335, %v5334
    %v5703 = vpack.c.b16 %v5337, %v5336
    %v5704 = vpack.c.b16 %v5339, %v5338
    %v5705 = vpack.c.b16 %v5341, %v5340
    %v5706 = vpack.c.b16 %v5343, %v5342
    %v5707 = vpack.c.b16 %v5345, %v5344
    %v5708 = vpack.c.b16 %v5347, %v5346
    %v5709 = vpack.c.b16 %v5349, %v5348
    %v5710 = vpack.c.b16 %v5351, %v5350
    %v5711 = vpack.c.b16 %v5353, %v5352
    %v5712 = vpack.c.b16 %v5355, %v5354
    %v5713 = vpack.c.b16 %v5357, %v5356
    %v5714 = vpack.c.b16 %v5359, %v5358
    %v5715 = vpack.c.b16 %v5361, %v5360
    %v5716 = vpack.c.b16 %v5363, %v5362
    %v5717 = vpack.c.b16 %v5365, %v5364
    %v5718 = vpack.c.b16 %v5367, %v5366
    %v5719 = vpack.c.b16 %v5369, %v5368
    %v5720 = vpack.c.b16 %v5371, %v5370
    %v5721 = vpack.c.b16 %v5373, %v5372
    %v5722 = vpack.c.b16 %v5375, %v5374
    %v5723 = vpack.c.b16 %v5377, %v5376
    %v5724 = vpack.c.b16 %v5379, %v5378
    %v5725 = vpack.c.b16 %v5381, %v5380
    %v5726 = vpack.c.b16 %v5383, %v5382
    %v5727 = vpack.c.b16 %v5385, %v5384
    %v5728 = vpack.c.b16 %v5387, %v5386
    %v5729 = vpack.c.b16 %v5389, %v5388
    %v5730 = vpack.c.b16 %v5391, %v5390
    %v5731 = vpack.c.b16 %v5393, %v5392
    %v5732 = vpack.c.b16 %v5395, %v5394
    %v5733 = vpack.c.b16 %v5397, %v5396
    %v5734 = vpack.c.b16 %v5399, %v5398
    %v5735 = vpack.c.b16 %v5401, %v5400
    %v5736 = vpack.c.b16 %v5403, %v5402
    %v5737 = vpack.c.b16 %v5405, %v5404
    %v5738 = vpack.c.b16 %v5407, %v5406
    %v5739 = vpack.c.b16 %v5409, %v5408
    %v5740 = vpack.c.b16 %v5411, %v5410
    %v5741 = vpack.c.b16 %v5413, %v5412
    %v5742 = vpack.c.b16 %v5415, %v5414
    %v5743 = vpack.c.b16 %v5417, %v5416
    %v5744 = vpack.c.b16 %v5419, %v5418
    %v5745 = vpack.c.b16 %v5421, %v5420
    %v5746 = vpack.c.b16 %v5423, %v5422
    %v5747 = vpack.c.b16 %v5425, %v5424
    %v5748 = vpack.c.b16 %v5427, %v5426
    %v5749 = vpack.c.b16 %v5429, %v5428
    %v5750 = vpack.c.b16 %v5431, %v5430
    %v5751 = vpack.c.b16 %v5433, %v5432
    %v5752 = vpack.c.b16 %v5435, %v5434
    %v5753 = vpack.c.b16 %v5437, %v5436
    %v5754 = vpack.c.b16 %v5439, %v5438
    %v5755 = vpack.c.b16 %v5441, %v5440
    %v5756 = vpack.c.b16 %v5443, %v5442
    %v5757 = vpack.c.b16 %v5445, %v5444
    %v5758 = vpack.c.b16 %v5447, %v5446
    %v5759 = vpack.c.b16 %v5449, %v5448
    %v5760 = vpack.c.b16 %v5451, %v5450
    %v5761 = vpack.c.b16 %v5453, %v5452
    %v5762 = vpack.c.b16 %v5455, %v5454
    %v5763 = vpack.c.b16 %v5457, %v5456
    %v5764 = vpack.c.b16 %v5459, %v5458
    %v5765 = vpack.c.b16 %v5461, %v5460
    %v5766 = vpack.c.b16 %v5463, %v5462
    %v5767 = vpack.c.b16 %v5465, %v5464
    %v5768 = vpack.c.b16 %v5467, %v5466
    %v5769 = vpack.c.b16 %v5469, %v5468
    %v5770 = vpack.c.b16 %v5471, %v5470
    %v5771 = vpack.c.b16 %v5473, %v5472
    %v5772 = vpack.c.b16 %v5475, %v5474
    %v5773 = vpack.c.b16 %v5477, %v5476
    %v5774 = vpack.c.b16 %v5479, %v5478
    %v5775 = vpack.c.b16 %v5481, %v5480
    %v5776 = vpack.c.b16 %v5483, %v5482
    %v5777 = vpack.c.b16 %v5485, %v5484
    %v5778 = vpack.c.b16 %v5487, %v5486
    %v5779 = vpack.c.b16 %v5489, %v5488
    %v5780 = vpack.c.b16 %v5491, %v5490
    %v5781 = vpack.c.b16 %v5493, %v5492
    %v5782 = vpack.c.b16 %v5495, %v5494
    %v5783 = vpack.c.b16 %v5497, %v5496
    %v5784 = vpack.c.b16 %v5499, %v5498
    %v5785 = vpack.c.b16 %v5501, %v5500
    %v5786 = vpack.c.b16 %v5503, %v5502
    %v5787 = vpack.c.b16 %v5505, %v5504
    %v5788 = vpack.c.b16 %v5507, %v5506
    %v5789 = vpack.c.b16 %v5509, %v5508
    %v5790 = vpack.c.b16 %v5511, %v5510
    %v5791 = vpack.c.b16 %v5513, %v5512
    %v5792 = vpack.c.b16 %v5515, %v5514
    %v5793 = vpack.c.b16 %v5517, %v5516
    %v5794 = vpack.c.b16 %v5519, %v5518
    %v5795 = vpack.c.b16 %v5521, %v5520
    %v5796 = vpack.c.b16 %v5523, %v5522
    %v5797 = vpack.c.b16 %v5525, %v5524
    %v5798 = vpack.c.b16 %v5527, %v5526
    %v5799 = vpack.c.b16 %v5529, %v5528
    %v5800 = vpack.c.b16 %v5531, %v5530
    %v5801 = vpack.c.b16 %v5533, %v5532
    %v5802 = vpack.c.b16 %v5535, %v5534
    %v5803 = vpack.c.b16 %v5537, %v5536
    %v5804 = vpack.c.b16 %v5539, %v5538
    %v5805 = vpack.c.b16 %v5541, %v5540
    %v5806 = vpack.c.b16 %v5543, %v5542
    %v5807 = vpack.c.b16 %v5545, %v5544
    %v5808 = vpack.c.b16 %v5547, %v5546
    %v5809 = vpack.c.b16 %v5549, %v5548
    %v5810 = vpack.c.b16 %v5551, %v5550
    %v5811 = vpack.c.b16 %v5553, %v5552
    %v5812 = vpack.c.b16 %v5555, %v5554
    %v5813 = vpack.c.b16 %v5557, %v5556
    %6070 = vst [vmem:[#allocation2] sm:$0xff] %v5558
    %6071 = vst [vmem:[#allocation2 + $0x8] sm:$0xff] %v5559
    %6072 = vst [vmem:[#allocation2 + $0x10] sm:$0xff] %v5560
    %6073 = vst [vmem:[#allocation2 + $0x18] sm:$0xff] %v5561
    %6074 = vst [vmem:[#allocation2 + $0x20] sm:$0xff] %v5562
    %6075 = vst [vmem:[#allocation2 + $0x28] sm:$0xff] %v5563
    %6076 = vst [vmem:[#allocation2 + $0x30] sm:$0xff] %v5564
    %6077 = vst [vmem:[#allocation2 + $0x38] sm:$0xff] %v5565
    %6078 = vst [vmem:[#allocation2 + $0x40] sm:$0xff] %v5566
    %6079 = vst [vmem:[#allocation2 + $0x48] sm:$0xff] %v5567
    %6080 = vst [vmem:[#allocation2 + $0x50] sm:$0xff] %v5568
    %6081 = vst [vmem:[#allocation2 + $0x58] sm:$0xff] %v5569
    %6082 = vst [vmem:[#allocation2 + $0x60] sm:$0xff] %v5570
    %6083 = vst [vmem:[#allocation2 + $0x68] sm:$0xff] %v5571
    %6084 = vst [vmem:[#allocation2 + $0x70] sm:$0xff] %v5572
    %6085 = vst [vmem:[#allocation2 + $0x78] sm:$0xff] %v5573
    %6086 = vst [vmem:[#allocation2 + $0x80] sm:$0xff] %v5574
    %6087 = vst [vmem:[#allocation2 + $0x88] sm:$0xff] %v5575
    %6088 = vst [vmem:[#allocation2 + $0x90] sm:$0xff] %v5576
    %6089 = vst [vmem:[#allocation2 + $0x98] sm:$0xff] %v5577
    %6090 = vst [vmem:[#allocation2 + $0xa0] sm:$0xff] %v5578
    %6091 = vst [vmem:[#allocation2 + $0xa8] sm:$0xff] %v5579
    %6092 = vst [vmem:[#allocation2 + $0xb0] sm:$0xff] %v5580
    %6093 = vst [vmem:[#allocation2 + $0xb8] sm:$0xff] %v5581
    %6094 = vst [vmem:[#allocation2 + $0xc0] sm:$0xff] %v5582
    %6095 = vst [vmem:[#allocation2 + $0xc8] sm:$0xff] %v5583
    %6096 = vst [vmem:[#allocation2 + $0xd0] sm:$0xff] %v5584
    %6097 = vst [vmem:[#allocation2 + $0xd8] sm:$0xff] %v5585
    %6098 = vst [vmem:[#allocation2 + $0xe0] sm:$0xff] %v5586
    %6099 = vst [vmem:[#allocation2 + $0xe8] sm:$0xff] %v5587
    %6100 = vst [vmem:[#allocation2 + $0xf0] sm:$0xff] %v5588
    %6101 = vst [vmem:[#allocation2 + $0xf8] sm:$0xff] %v5589
    %6102 = vst [vmem:[#allocation2 + $0x100] sm:$0xff] %v5590
    %6103 = vst [vmem:[#allocation2 + $0x108] sm:$0xff] %v5591
    %6104 = vst [vmem:[#allocation2 + $0x110] sm:$0xff] %v5592
    %6105 = vst [vmem:[#allocation2 + $0x118] sm:$0xff] %v5593
    %6106 = vst [vmem:[#allocation2 + $0x120] sm:$0xff] %v5594
    %6107 = vst [vmem:[#allocation2 + $0x128] sm:$0xff] %v5595
    %6108 = vst [vmem:[#allocation2 + $0x130] sm:$0xff] %v5596
    %6109 = vst [vmem:[#allocation2 + $0x138] sm:$0xff] %v5597
    %6110 = vst [vmem:[#allocation2 + $0x140] sm:$0xff] %v5598
    %6111 = vst [vmem:[#allocation2 + $0x148] sm:$0xff] %v5599
    %6112 = vst [vmem:[#allocation2 + $0x150] sm:$0xff] %v5600
    %6113 = vst [vmem:[#allocation2 + $0x158] sm:$0xff] %v5601
    %6114 = vst [vmem:[#allocation2 + $0x160] sm:$0xff] %v5602
    %6115 = vst [vmem:[#allocation2 + $0x168] sm:$0xff] %v5603
    %6116 = vst [vmem:[#allocation2 + $0x170] sm:$0xff] %v5604
    %6117 = vst [vmem:[#allocation2 + $0x178] sm:$0xff] %v5605
    %6118 = vst [vmem:[#allocation2 + $0x180] sm:$0xff] %v5606
    %6119 = vst [vmem:[#allocation2 + $0x188] sm:$0xff] %v5607
    %6120 = vst [vmem:[#allocation2 + $0x190] sm:$0xff] %v5608
    %6121 = vst [vmem:[#allocation2 + $0x198] sm:$0xff] %v5609
    %6122 = vst [vmem:[#allocation2 + $0x1a0] sm:$0xff] %v5610
    %6123 = vst [vmem:[#allocation2 + $0x1a8] sm:$0xff] %v5611
    %6124 = vst [vmem:[#allocation2 + $0x1b0] sm:$0xff] %v5612
    %6125 = vst [vmem:[#allocation2 + $0x1b8] sm:$0xff] %v5613
    %6126 = vst [vmem:[#allocation2 + $0x1c0] sm:$0xff] %v5614
    %6127 = vst [vmem:[#allocation2 + $0x1c8] sm:$0xff] %v5615
    %6128 = vst [vmem:[#allocation2 + $0x1d0] sm:$0xff] %v5616
    %6129 = vst [vmem:[#allocation2 + $0x1d8] sm:$0xff] %v5617
    %6130 = vst [vmem:[#allocation2 + $0x1e0] sm:$0xff] %v5618
    %6131 = vst [vmem:[#allocation2 + $0x1e8] sm:$0xff] %v5619
    %6132 = vst [vmem:[#allocation2 + $0x1f0] sm:$0xff] %v5620
    %6133 = vst [vmem:[#allocation2 + $0x1f8] sm:$0xff] %v5621
    %6134 = vst [vmem:[#allocation2 + $0x200] sm:$0xff] %v5622
    %6135 = vst [vmem:[#allocation2 + $0x208] sm:$0xff] %v5623
    %6136 = vst [vmem:[#allocation2 + $0x210] sm:$0xff] %v5624
    %6137 = vst [vmem:[#allocation2 + $0x218] sm:$0xff] %v5625
    %6138 = vst [vmem:[#allocation2 + $0x220] sm:$0xff] %v5626
    %6139 = vst [vmem:[#allocation2 + $0x228] sm:$0xff] %v5627
    %6140 = vst [vmem:[#allocation2 + $0x230] sm:$0xff] %v5628
    %6141 = vst [vmem:[#allocation2 + $0x238] sm:$0xff] %v5629
    %6142 = vst [vmem:[#allocation2 + $0x240] sm:$0xff] %v5630
    %6143 = vst [vmem:[#allocation2 + $0x248] sm:$0xff] %v5631
    %6144 = vst [vmem:[#allocation2 + $0x250] sm:$0xff] %v5632
    %6145 = vst [vmem:[#allocation2 + $0x258] sm:$0xff] %v5633
    %6146 = vst [vmem:[#allocation2 + $0x260] sm:$0xff] %v5634
    %6147 = vst [vmem:[#allocation2 + $0x268] sm:$0xff] %v5635
    %6148 = vst [vmem:[#allocation2 + $0x270] sm:$0xff] %v5636
    %6149 = vst [vmem:[#allocation2 + $0x278] sm:$0xff] %v5637
    %6150 = vst [vmem:[#allocation2 + $0x280] sm:$0xff] %v5638
    %6151 = vst [vmem:[#allocation2 + $0x288] sm:$0xff] %v5639
    %6152 = vst [vmem:[#allocation2 + $0x290] sm:$0xff] %v5640
    %6153 = vst [vmem:[#allocation2 + $0x298] sm:$0xff] %v5641
    %6154 = vst [vmem:[#allocation2 + $0x2a0] sm:$0xff] %v5642
    %6155 = vst [vmem:[#allocation2 + $0x2a8] sm:$0xff] %v5643
    %6156 = vst [vmem:[#allocation2 + $0x2b0] sm:$0xff] %v5644
    %6157 = vst [vmem:[#allocation2 + $0x2b8] sm:$0xff] %v5645
    %6158 = vst [vmem:[#allocation2 + $0x2c0] sm:$0xff] %v5646
    %6159 = vst [vmem:[#allocation2 + $0x2c8] sm:$0xff] %v5647
    %6160 = vst [vmem:[#allocation2 + $0x2d0] sm:$0xff] %v5648
    %6161 = vst [vmem:[#allocation2 + $0x2d8] sm:$0xff] %v5649
    %6162 = vst [vmem:[#allocation2 + $0x2e0] sm:$0xff] %v5650
    %6163 = vst [vmem:[#allocation2 + $0x2e8] sm:$0xff] %v5651
    %6164 = vst [vmem:[#allocation2 + $0x2f0] sm:$0xff] %v5652
    %6165 = vst [vmem:[#allocation2 + $0x2f8] sm:$0xff] %v5653
    %6166 = vst [vmem:[#allocation2 + $0x300] sm:$0xff] %v5654
    %6167 = vst [vmem:[#allocation2 + $0x308] sm:$0xff] %v5655
    %6168 = vst [vmem:[#allocation2 + $0x310] sm:$0xff] %v5656
    %6169 = vst [vmem:[#allocation2 + $0x318] sm:$0xff] %v5657
    %6170 = vst [vmem:[#allocation2 + $0x320] sm:$0xff] %v5658
    %6171 = vst [vmem:[#allocation2 + $0x328] sm:$0xff] %v5659
    %6172 = vst [vmem:[#allocation2 + $0x330] sm:$0xff] %v5660
    %6173 = vst [vmem:[#allocation2 + $0x338] sm:$0xff] %v5661
    %6174 = vst [vmem:[#allocation2 + $0x340] sm:$0xff] %v5662
    %6175 = vst [vmem:[#allocation2 + $0x348] sm:$0xff] %v5663
    %6176 = vst [vmem:[#allocation2 + $0x350] sm:$0xff] %v5664
    %6177 = vst [vmem:[#allocation2 + $0x358] sm:$0xff] %v5665
    %6178 = vst [vmem:[#allocation2 + $0x360] sm:$0xff] %v5666
    %6179 = vst [vmem:[#allocation2 + $0x368] sm:$0xff] %v5667
    %6180 = vst [vmem:[#allocation2 + $0x370] sm:$0xff] %v5668
    %6181 = vst [vmem:[#allocation2 + $0x378] sm:$0xff] %v5669
    %6182 = vst [vmem:[#allocation2 + $0x380] sm:$0xff] %v5670
    %6183 = vst [vmem:[#allocation2 + $0x388] sm:$0xff] %v5671
    %6184 = vst [vmem:[#allocation2 + $0x390] sm:$0xff] %v5672
    %6185 = vst [vmem:[#allocation2 + $0x398] sm:$0xff] %v5673
    %6186 = vst [vmem:[#allocation2 + $0x3a0] sm:$0xff] %v5674
    %6187 = vst [vmem:[#allocation2 + $0x3a8] sm:$0xff] %v5675
    %6188 = vst [vmem:[#allocation2 + $0x3b0] sm:$0xff] %v5676
    %6189 = vst [vmem:[#allocation2 + $0x3b8] sm:$0xff] %v5677
    %6190 = vst [vmem:[#allocation2 + $0x3c0] sm:$0xff] %v5678
    %6191 = vst [vmem:[#allocation2 + $0x3c8] sm:$0xff] %v5679
    %6192 = vst [vmem:[#allocation2 + $0x3d0] sm:$0xff] %v5680
    %6193 = vst [vmem:[#allocation2 + $0x3d8] sm:$0xff] %v5681
    %6194 = vst [vmem:[#allocation2 + $0x3e0] sm:$0xff] %v5682
    %6195 = vst [vmem:[#allocation2 + $0x3e8] sm:$0xff] %v5683
    %6196 = vst [vmem:[#allocation2 + $0x3f0] sm:$0xff] %v5684
    %6197 = vst [vmem:[#allocation2 + $0x3f8] sm:$0xff] %v5685
    %6198 = vst [vmem:[#allocation2 + $0x400] sm:$0xff] %v5686
    %6199 = vst [vmem:[#allocation2 + $0x408] sm:$0xff] %v5687
    %6200 = vst [vmem:[#allocation2 + $0x410] sm:$0xff] %v5688
    %6201 = vst [vmem:[#allocation2 + $0x418] sm:$0xff] %v5689
    %6202 = vst [vmem:[#allocation2 + $0x420] sm:$0xff] %v5690
    %6203 = vst [vmem:[#allocation2 + $0x428] sm:$0xff] %v5691
    %6204 = vst [vmem:[#allocation2 + $0x430] sm:$0xff] %v5692
    %6205 = vst [vmem:[#allocation2 + $0x438] sm:$0xff] %v5693
    %6206 = vst [vmem:[#allocation2 + $0x440] sm:$0xff] %v5694
    %6207 = vst [vmem:[#allocation2 + $0x448] sm:$0xff] %v5695
    %6208 = vst [vmem:[#allocation2 + $0x450] sm:$0xff] %v5696
    %6209 = vst [vmem:[#allocation2 + $0x458] sm:$0xff] %v5697
    %6210 = vst [vmem:[#allocation2 + $0x460] sm:$0xff] %v5698
    %6211 = vst [vmem:[#allocation2 + $0x468] sm:$0xff] %v5699
    %6212 = vst [vmem:[#allocation2 + $0x470] sm:$0xff] %v5700
    %6213 = vst [vmem:[#allocation2 + $0x478] sm:$0xff] %v5701
    %6214 = vst [vmem:[#allocation2 + $0x480] sm:$0xff] %v5702
    %6215 = vst [vmem:[#allocation2 + $0x488] sm:$0xff] %v5703
    %6216 = vst [vmem:[#allocation2 + $0x490] sm:$0xff] %v5704
    %6217 = vst [vmem:[#allocation2 + $0x498] sm:$0xff] %v5705
    %6218 = vst [vmem:[#allocation2 + $0x4a0] sm:$0xff] %v5706
    %6219 = vst [vmem:[#allocation2 + $0x4a8] sm:$0xff] %v5707
    %6220 = vst [vmem:[#allocation2 + $0x4b0] sm:$0xff] %v5708
    %6221 = vst [vmem:[#allocation2 + $0x4b8] sm:$0xff] %v5709
    %6222 = vst [vmem:[#allocation2 + $0x4c0] sm:$0xff] %v5710
    %6223 = vst [vmem:[#allocation2 + $0x4c8] sm:$0xff] %v5711
    %6224 = vst [vmem:[#allocation2 + $0x4d0] sm:$0xff] %v5712
    %6225 = vst [vmem:[#allocation2 + $0x4d8] sm:$0xff] %v5713
    %6226 = vst [vmem:[#allocation2 + $0x4e0] sm:$0xff] %v5714
    %6227 = vst [vmem:[#allocation2 + $0x4e8] sm:$0xff] %v5715
    %6228 = vst [vmem:[#allocation2 + $0x4f0] sm:$0xff] %v5716
    %6229 = vst [vmem:[#allocation2 + $0x4f8] sm:$0xff] %v5717
    %6230 = vst [vmem:[#allocation2 + $0x500] sm:$0xff] %v5718
    %6231 = vst [vmem:[#allocation2 + $0x508] sm:$0xff] %v5719
    %6232 = vst [vmem:[#allocation2 + $0x510] sm:$0xff] %v5720
    %6233 = vst [vmem:[#allocation2 + $0x518] sm:$0xff] %v5721
    %6234 = vst [vmem:[#allocation2 + $0x520] sm:$0xff] %v5722
    %6235 = vst [vmem:[#allocation2 + $0x528] sm:$0xff] %v5723
    %6236 = vst [vmem:[#allocation2 + $0x530] sm:$0xff] %v5724
    %6237 = vst [vmem:[#allocation2 + $0x538] sm:$0xff] %v5725
    %6238 = vst [vmem:[#allocation2 + $0x540] sm:$0xff] %v5726
    %6239 = vst [vmem:[#allocation2 + $0x548] sm:$0xff] %v5727
    %6240 = vst [vmem:[#allocation2 + $0x550] sm:$0xff] %v5728
    %6241 = vst [vmem:[#allocation2 + $0x558] sm:$0xff] %v5729
    %6242 = vst [vmem:[#allocation2 + $0x560] sm:$0xff] %v5730
    %6243 = vst [vmem:[#allocation2 + $0x568] sm:$0xff] %v5731
    %6244 = vst [vmem:[#allocation2 + $0x570] sm:$0xff] %v5732
    %6245 = vst [vmem:[#allocation2 + $0x578] sm:$0xff] %v5733
    %6246 = vst [vmem:[#allocation2 + $0x580] sm:$0xff] %v5734
    %6247 = vst [vmem:[#allocation2 + $0x588] sm:$0xff] %v5735
    %6248 = vst [vmem:[#allocation2 + $0x590] sm:$0xff] %v5736
    %6249 = vst [vmem:[#allocation2 + $0x598] sm:$0xff] %v5737
    %6250 = vst [vmem:[#allocation2 + $0x5a0] sm:$0xff] %v5738
    %6251 = vst [vmem:[#allocation2 + $0x5a8] sm:$0xff] %v5739
    %6252 = vst [vmem:[#allocation2 + $0x5b0] sm:$0xff] %v5740
    %6253 = vst [vmem:[#allocation2 + $0x5b8] sm:$0xff] %v5741
    %6254 = vst [vmem:[#allocation2 + $0x5c0] sm:$0xff] %v5742
    %6255 = vst [vmem:[#allocation2 + $0x5c8] sm:$0xff] %v5743
    %6256 = vst [vmem:[#allocation2 + $0x5d0] sm:$0xff] %v5744
    %6257 = vst [vmem:[#allocation2 + $0x5d8] sm:$0xff] %v5745
    %6258 = vst [vmem:[#allocation2 + $0x5e0] sm:$0xff] %v5746
    %6259 = vst [vmem:[#allocation2 + $0x5e8] sm:$0xff] %v5747
    %6260 = vst [vmem:[#allocation2 + $0x5f0] sm:$0xff] %v5748
    %6261 = vst [vmem:[#allocation2 + $0x5f8] sm:$0xff] %v5749
    %6262 = vst [vmem:[#allocation2 + $0x600] sm:$0xff] %v5750
    %6263 = vst [vmem:[#allocation2 + $0x608] sm:$0xff] %v5751
    %6264 = vst [vmem:[#allocation2 + $0x610] sm:$0xff] %v5752
    %6265 = vst [vmem:[#allocation2 + $0x618] sm:$0xff] %v5753
    %6266 = vst [vmem:[#allocation2 + $0x620] sm:$0xff] %v5754
    %6267 = vst [vmem:[#allocation2 + $0x628] sm:$0xff] %v5755
    %6268 = vst [vmem:[#allocation2 + $0x630] sm:$0xff] %v5756
    %6269 = vst [vmem:[#allocation2 + $0x638] sm:$0xff] %v5757
    %6270 = vst [vmem:[#allocation2 + $0x640] sm:$0xff] %v5758
    %6271 = vst [vmem:[#allocation2 + $0x648] sm:$0xff] %v5759
    %6272 = vst [vmem:[#allocation2 + $0x650] sm:$0xff] %v5760
    %6273 = vst [vmem:[#allocation2 + $0x658] sm:$0xff] %v5761
    %6274 = vst [vmem:[#allocation2 + $0x660] sm:$0xff] %v5762
    %6275 = vst [vmem:[#allocation2 + $0x668] sm:$0xff] %v5763
    %6276 = vst [vmem:[#allocation2 + $0x670] sm:$0xff] %v5764
    %6277 = vst [vmem:[#allocation2 + $0x678] sm:$0xff] %v5765
    %6278 = vst [vmem:[#allocation2 + $0x680] sm:$0xff] %v5766
    %6279 = vst [vmem:[#allocation2 + $0x688] sm:$0xff] %v5767
    %6280 = vst [vmem:[#allocation2 + $0x690] sm:$0xff] %v5768
    %6281 = vst [vmem:[#allocation2 + $0x698] sm:$0xff] %v5769
    %6282 = vst [vmem:[#allocation2 + $0x6a0] sm:$0xff] %v5770
    %6283 = vst [vmem:[#allocation2 + $0x6a8] sm:$0xff] %v5771
    %6284 = vst [vmem:[#allocation2 + $0x6b0] sm:$0xff] %v5772
    %6285 = vst [vmem:[#allocation2 + $0x6b8] sm:$0xff] %v5773
    %6286 = vst [vmem:[#allocation2 + $0x6c0] sm:$0xff] %v5774
    %6287 = vst [vmem:[#allocation2 + $0x6c8] sm:$0xff] %v5775
    %6288 = vst [vmem:[#allocation2 + $0x6d0] sm:$0xff] %v5776
    %6289 = vst [vmem:[#allocation2 + $0x6d8] sm:$0xff] %v5777
    %6290 = vst [vmem:[#allocation2 + $0x6e0] sm:$0xff] %v5778
    %6291 = vst [vmem:[#allocation2 + $0x6e8] sm:$0xff] %v5779
    %6292 = vst [vmem:[#allocation2 + $0x6f0] sm:$0xff] %v5780
    %6293 = vst [vmem:[#allocation2 + $0x6f8] sm:$0xff] %v5781
    %6294 = vst [vmem:[#allocation2 + $0x700] sm:$0xff] %v5782
    %6295 = vst [vmem:[#allocation2 + $0x708] sm:$0xff] %v5783
    %6296 = vst [vmem:[#allocation2 + $0x710] sm:$0xff] %v5784
    %6297 = vst [vmem:[#allocation2 + $0x718] sm:$0xff] %v5785
    %6298 = vst [vmem:[#allocation2 + $0x720] sm:$0xff] %v5786
    %6299 = vst [vmem:[#allocation2 + $0x728] sm:$0xff] %v5787
    %6300 = vst [vmem:[#allocation2 + $0x730] sm:$0xff] %v5788
    %6301 = vst [vmem:[#allocation2 + $0x738] sm:$0xff] %v5789
    %6302 = vst [vmem:[#allocation2 + $0x740] sm:$0xff] %v5790
    %6303 = vst [vmem:[#allocation2 + $0x748] sm:$0xff] %v5791
    %6304 = vst [vmem:[#allocation2 + $0x750] sm:$0xff] %v5792
    %6305 = vst [vmem:[#allocation2 + $0x758] sm:$0xff] %v5793
    %6306 = vst [vmem:[#allocation2 + $0x760] sm:$0xff] %v5794
    %6307 = vst [vmem:[#allocation2 + $0x768] sm:$0xff] %v5795
    %6308 = vst [vmem:[#allocation2 + $0x770] sm:$0xff] %v5796
    %6309 = vst [vmem:[#allocation2 + $0x778] sm:$0xff] %v5797
    %6310 = vst [vmem:[#allocation2 + $0x780] sm:$0xff] %v5798
    %6311 = vst [vmem:[#allocation2 + $0x788] sm:$0xff] %v5799
    %6312 = vst [vmem:[#allocation2 + $0x790] sm:$0xff] %v5800
    %6313 = vst [vmem:[#allocation2 + $0x798] sm:$0xff] %v5801
    %6314 = vst [vmem:[#allocation2 + $0x7a0] sm:$0xff] %v5802
    %6315 = vst [vmem:[#allocation2 + $0x7a8] sm:$0xff] %v5803
    %6316 = vst [vmem:[#allocation2 + $0x7b0] sm:$0xff] %v5804
    %6317 = vst [vmem:[#allocation2 + $0x7b8] sm:$0xff] %v5805
    %6318 = vst [vmem:[#allocation2 + $0x7c0] sm:$0xff] %v5806
    %6319 = vst [vmem:[#allocation2 + $0x7c8] sm:$0xff] %v5807
    %6320 = vst [vmem:[#allocation2 + $0x7d0] sm:$0xff] %v5808
    %6321 = vst [vmem:[#allocation2 + $0x7d8] sm:$0xff] %v5809
    %6322 = vst [vmem:[#allocation2 + $0x7e0] sm:$0xff] %v5810
    %6323 = vst [vmem:[#allocation2 + $0x7e8] sm:$0xff] %v5811
    %6324 = vst [vmem:[#allocation2 + $0x7f0] sm:$0xff] %v5812
    %6325 = vst [vmem:[#allocation2 + $0x7f8] sm:$0xff] %v5813
    // Predicated region
    $region42: #{tpu_custom_call.1} parent=1 // pred_check
      _
    $region43: #{tpu_custom_call.1} parent=1 // pred_check_branch
      %6327 = sbr.rel (0) target = $region45
    $region44: #{tpu_custom_call.1} parent=1 // pred_region
      %s6329 = ssub.s32 32768, 32768
      %6330 = vsyncadd [#allocation3], %s6329
      %s6331 = sshll.u32 [#allocation2], 4
      %s6332 = int_to_ptr.vmem [resolvable:$true] %s6331
      %6337 = dma.vmem_to_hbm [thread:$0]  %s6332, 32768, %s10, [#allocation3], 512, 512, 32
    $region45: #{tpu_custom_call.1} parent=1 // pred_fallthru
      _
    // Predicated region
    $region46: #{tpu_custom_call.1} parent=1 // pred_check
      _
    $region47: #{tpu_custom_call.1} parent=1 // pred_check_branch
      %6339 = sbr.rel (0) target = $region49
    $region48: #{tpu_custom_call.1} parent=1 // pred_region
      %6340 = dma.done [#allocation3], 32768
    $region49: #{tpu_custom_call.1} parent=1 // pred_fallthru
      _
    %6341 = vsyncpa [#allocation3], 1

</llo_original>
